<compile_context>
chip_gen: v7x
topology: tpu7x:2x2x1
jax: 0.10.0
libtpu: 0.0.40
codegen_flags: <defaults>
</compile_context>

<pallas_src>
import math

import jax
import jax.numpy as jnp
from jax import lax
from jax.experimental import pallas as pl
from jax.experimental.pallas import tpu as pltpu

H = 32              # para['encoder_attention_size']
N_HEADS = 2
HEAD_DIM = H // N_HEADS
LN_EPS = 1e-5
NEG_INF = -1e9


def _layer_norm(x, g, b):
    mu = jnp.mean(x, axis=-1, keepdims=True)
    var = jnp.mean((x - mu) ** 2, axis=-1, keepdims=True)
    return (x - mu) * lax.rsqrt(var + LN_EPS) * g + b


# --------------------------------------------------------------------------
# Pallas kernel: one batch element per grid step, everything fused in VMEM
# --------------------------------------------------------------------------
def decoder_kernel(coords_ref, ego_ref, hmid_ref, hlane_ref, bias_ref,
                   wm_ref, wv_ref, out_ref):
    n = coords_ref.shape[1]
    d = HEAD_DIM

    coords = coords_ref[0]          # (N, 8)   lanes 3.. are zero padding
    ego = ego_ref[0]                # (1, H)
    hmid = hmid_ref[0]              # (M, H)
    hlane = hlane_ref[0]            # (M, H)   zero-padded past the real lane tokens
    bias = bias_ref[0]              # (4, 1, M) additive mask bias per (attn, head)

    # ---- packed weights (static slices, loaded once per program) ----
    w_ego_c = wm_ref[0:8, 0:H]        # (8, H)   coords part (rows 3.. are zero)
    w_ego_e = wm_ref[8:40, 0:H]       # (H, H)   ego part
    wq_j    = wm_ref[40:72, :]        # (H, 2H)  [a1.Wq | a2.Wq]
    wkv1    = wm_ref[72:104, :]       # (H, 2H)  [a1.Wk | a1.Wv]
    wkv2    = wm_ref[104:136, :]      # (H, 2H)  [a2.Wk | a2.Wv]
    wo_bd   = wm_ref[136:200, :]      # (2H, 2H) blockdiag(a1.Wo, a2.Wo)
    cv_w1   = wm_ref[200:328, 0:H]    # (4H, H)

    b_ego  = wv_ref[0:1, 0:H]
    g1     = wv_ref[1:2, 0:H]
    beta1  = wv_ref[2:3, 0:H]
    bq_j   = wv_ref[3:4, 0:2 * H]
    bkv1   = wv_ref[4:5, 0:2 * H]
    bkv2   = wv_ref[5:6, 0:2 * H]
    bo_j   = wv_ref[6:7, 0:2 * H]
    cv_b1  = wv_ref[7:8, 0:H]
    g2     = wv_ref[8:9, 0:H]
    beta2  = wv_ref[9:10, 0:H]
    w2a    = wv_ref[10:11, :]         # (1, 4H)  final fc rows for li
    w2b    = wv_ref[11:12, 0:H]       # (1, H)   final fc rows for hid
    b2     = wv_ref[12:13, 0:1]       # (1, 1)

    # ---- EgoAssign : Linear(cat(coords, ego)) + LayerNorm + ReLU ----
    ego_proj = jnp.dot(ego, w_ego_e, preferred_element_type=jnp.float32)   # (1, H)
    h = jnp.dot(coords, w_ego_c, preferred_element_type=jnp.float32) + ego_proj + b_ego
    pos1 = jax.nn.relu(_layer_norm(h, g1, beta1))                          # (N, H)

    # ---- joint projections: one matmul feeds both attentions' queries; K|V packed ----
    q_j = jnp.dot(pos1, wq_j, preferred_element_type=jnp.float32) + bq_j   # (N, 2H)
    kv1 = jnp.dot(hmid, wkv1, preferred_element_type=jnp.float32) + bkv1   # (M, 2H)
    kv2 = jnp.dot(hlane, wkv2, preferred_element_type=jnp.float32) + bkv2  # (M, 2H)

    # group axis g = (attention, head) = [a1h1, a1h2, a2h1, a2h2]
    q_g = jnp.stack([q_j[:, 0:d], q_j[:, d:2 * d],
                     q_j[:, 2 * d:3 * d], q_j[:, 3 * d:4 * d]], axis=0)     # (4, N, d)
    k_g = jnp.stack([kv1[:, 0:d], kv1[:, d:2 * d],
                     kv2[:, 0:d], kv2[:, d:2 * d]], axis=0)                 # (4, M, d)
    v_g = jnp.stack([kv1[:, H:H + d], kv1[:, H + d:2 * H],
                     kv2[:, H:H + d], kv2[:, H + d:2 * H]], axis=0)         # (4, M, d)

    # ---- both attentions, both heads, one batched matmul pair (no k.T) ----
    s = jnp.einsum('gqd,gkd->gqk', q_g, k_g,
                   preferred_element_type=jnp.float32) * (1.0 / math.sqrt(d))
    s = s + bias                                                            # (4, N, M)
    s = s - jnp.max(s, axis=-1, keepdims=True)
    p = jnp.exp(s)
    p = p * pl.reciprocal(jnp.sum(p, axis=-1, keepdims=True), approx=True)
    o = jnp.einsum('gqk,gkd->gqd', p, v_g,
                   preferred_element_type=jnp.float32)                      # (4, N, d)

    o_cat = jnp.concatenate([o[0], o[1], o[2], o[3]], axis=-1)              # (N, 2H)
    pos23 = jnp.dot(o_cat, wo_bd, preferred_element_type=jnp.float32) + bo_j  # (N, 2H)

    # ---- DecoderResCat(4H, H, 1); final fc split to avoid the 5H-wide concat ----
    li = jnp.concatenate([jnp.broadcast_to(ego, (n, H)), pos1, pos23], axis=-1)  # (N, 4H)
    hid = jax.nn.relu(_layer_norm(
        jnp.dot(li, cv_w1, preferred_element_type=jnp.float32) + cv_b1, g2, beta2))  # (N, H)

    out_row = (lax.dot_general(w2a, li, (((1,), (1,)), ((), ())),
                               preferred_element_type=jnp.float32)
               + lax.dot_general(w2b, hid, (((1,), (1,)), ((), ())),
                                 preferred_element_type=jnp.float32)
               + b2)                                                         # (1, N), lane-dense
    out_ref[0] = out_row


# --------------------------------------------------------------------------
# parameter packing: 14 tensors -> 2 lane-dense slabs (single DMA each)
# --------------------------------------------------------------------------
def pack_params(p):
    f32 = jnp.float32
    # (328, 2H) matrix slab
    w_ego_c = jnp.zeros((8, H), f32).at[:3].set(p["ego_w"][:3])
    w_ego = jnp.pad(jnp.concatenate([w_ego_c, p["ego_w"][3:]], axis=0),
                    ((0, 0), (0, H)))                                   # (40, 2H)
    wq_j = jnp.concatenate([p["a1_w"][0], p["a2_w"][0]], axis=1)        # (H, 2H)
    wkv1 = jnp.concatenate([p["a1_w"][1], p["a1_w"][2]], axis=1)        # (H, 2H)
    wkv2 = jnp.concatenate([p["a2_w"][1], p["a2_w"][2]], axis=1)        # (H, 2H)
    wo_bd = (jnp.zeros((2 * H, 2 * H), f32)
             .at[:H, :H].set(p["a1_w"][3])
             .at[H:, H:].set(p["a2_w"][3]))                             # (2H, 2H)
    cv_w1 = jnp.pad(p["cv_w1"], ((0, 0), (0, H)))                       # (4H, 2H)
    wmat = jnp.concatenate([w_ego, wq_j, wkv1, wkv2, wo_bd, cv_w1],
                           axis=0).astype(f32)                          # (328, 2H)

    # (16, 4H) vector slab
    def row(v):
        v = jnp.asarray(v, f32).reshape(1, -1)
        return jnp.pad(v, ((0, 0), (0, 4 * H - v.shape[1])))

    rows = [
        row(p["ego_b"]), row(p["ego_g"]), row(p["ego_beta"]),
        row(jnp.concatenate([p["a1_b"][0], p["a2_b"][0]], axis=1)),     # joint q bias
        row(jnp.concatenate([p["a1_b"][1], p["a1_b"][2]], axis=1)),     # [bk1|bv1]
        row(jnp.concatenate([p["a2_b"][1], p["a2_b"][2]], axis=1)),     # [bk2|bv2]
        row(jnp.concatenate([p["a1_b"][3], p["a2_b"][3]], axis=1)),     # [bo1|bo2]
        row(p["cv_b1"]), row(p["cv_g"]), row(p["cv_beta"]),
        row(p["cv_w2"][:4 * H, 0]),                                     # w2a (li part)
        row(p["cv_w2"][4 * H:, 0]),                                     # w2b (hid part)
        row(p["cv_b2"]),
    ]
    wvec = jnp.concatenate(rows + [jnp.zeros((16 - len(rows), 4 * H), f32)], axis=0)
    return wmat, wvec


# --------------------------------------------------------------------------
# wrapper: glue (coordinate/timestamp assembly, padding, mask bias) in JAX,
# hot path fully fused in the Pallas kernel
# --------------------------------------------------------------------------
def _assemble_coords(coordinates, timestamp, gtpoint, batch, test):
    s_order = jnp.stack([jnp.ones_like(coordinates[..., :1]) * s for s in timestamp])
    coords = jnp.broadcast_to(coordinates[None], (batch,) + coordinates.shape)
    coords = jnp.concatenate([coords, s_order], axis=-1)                # (B, Nc, 3)
    if not test:
        coords = jnp.concatenate([coords, gtpoint], axis=-2)            # (B, N, 3)
    return coords.astype(jnp.float32)


def vector_decoder(params, hlane, hmid, hinteraction, coordinates, c_mask,
                   timestamp, gtpoint, test=False):
    B = hlane.shape[0]
    coords = _assemble_coords(coordinates, timestamp, gtpoint, B, test)  # (B, N, 3)
    ego = hinteraction[:, 55:56].astype(jnp.float32)                     # (B, 1, H)
    N = coords.shape[1]
    M = hmid.shape[1]
    L = hlane.shape[1]
    assert N % 8 == 0 and M % 8 == 0 and 55 <= M and L <= M

    coords_p = jnp.pad(coords, ((0, 0), (0, 0), (0, 8 - coords.shape[-1])))
    hlane_p = jnp.pad(hlane.astype(jnp.float32), ((0, 0), (0, M - L), (0, 0)))
    hmid_f = hmid.astype(jnp.float32)

    mask1 = c_mask.astype(jnp.float32)                                   # (B, M)
    mask2 = jnp.pad(c_mask[:, :55].astype(jnp.float32), ((0, 0), (0, M - 55)))
    bias1 = jnp.where(mask1 > 0.0, 0.0, NEG_INF).astype(jnp.float32)
    bias2 = jnp.where(mask2 > 0.0, 0.0, NEG_INF).astype(jnp.float32)
    mask_bias = jnp.stack([bias1, bias1, bias2, bias2], axis=1)[:, :, None, :]  # (B,4,1,M)

    wmat, wvec = pack_params(params)
    RW = wmat.shape[0]

    per_b3 = lambda b: (b, 0, 0)
    per_b4 = lambda b: (b, 0, 0, 0)
    const2 = lambda b: (0, 0)

    out = pl.pallas_call(
        decoder_kernel,
        out_shape=jax.ShapeDtypeStruct((B, 1, N), jnp.float32),
        grid=(B,),
        in_specs=[
            pl.BlockSpec((1, N, 8), per_b3),          # coords (lane-padded to 8)
            pl.BlockSpec((1, 1, H), per_b3),          # ego = hinteraction[:, 55:56]
            pl.BlockSpec((1, M, H), per_b3),          # hmid
            pl.BlockSpec((1, M, H), per_b3),          # hlane (row-padded to M keys)
            pl.BlockSpec((1, 4, 1, M), per_b4),       # additive mask bias per (attn, head)
            pl.BlockSpec((RW, 2 * H), const2),        # packed weight matrices
            pl.BlockSpec((16, 4 * H), const2),        # packed biases / LN / final fc
        ],
        out_specs=pl.BlockSpec((1, 1, N), per_b3),
        compiler_params=pltpu.CompilerParams(dimension_semantics=("parallel",)),
    )(coords_p, ego, hmid_f, hlane_p, mask_bias, wmat, wvec)

    return jnp.squeeze(out, axis=1)     # torch .squeeze() -> (B, N)


# --------------------------------------------------------------------------
# pure-JAX reference (original, unfused formulation on the logical params)
# --------------------------------------------------------------------------
def _mhca_ref(q_in, kv, mask, w, bias):
    q = jnp.dot(q_in, w[0]) + bias[0]
    k = jnp.dot(kv, w[1]) + bias[1]
    v = jnp.dot(kv, w[2]) + bias[2]
    scale = 1.0 / math.sqrt(HEAD_DIM)
    outs = []
    for h in range(N_HEADS):
        sl = slice(h * HEAD_DIM, (h + 1) * HEAD_DIM)
        s = jnp.dot(q[:, sl], k[:, sl].T) * scale
        s = jnp.where(mask > 0.0, s, NEG_INF)
        s = s - jnp.max(s, axis=-1, keepdims=True)
        p = jnp.exp(s)
        p = p / jnp.sum(p, axis=-1, keepdims=True)
        outs.append(jnp.dot(p, v[:, sl]))
    o = jnp.concatenate(outs, axis=-1)
    return jnp.dot(o, w[3]) + bias[3]


def _decode_one_ref(coords, ego, hmid, hlane, mmid, mlane, p):
    n = coords.shape[0]
    h = jnp.dot(coords, p["ego_w"][:3]) + jnp.dot(ego, p["ego_w"][3:]) + p["ego_b"]
    pos1 = jax.nn.relu(_layer_norm(h, p["ego_g"], p["ego_beta"]))
    pos2 = _mhca_ref(pos1, hmid, mmid, p["a1_w"], p["a1_b"])
    pos3 = _mhca_ref(pos1, hlane, mlane, p["a2_w"], p["a2_b"])
    li = jnp.concatenate([jnp.broadcast_to(ego, (n, H)), pos1, pos2, pos3], axis=-1)
    hid = jax.nn.relu(_layer_norm(jnp.dot(li, p["cv_w1"]) + p["cv_b1"],
                                  p["cv_g"], p["cv_beta"]))
    cat = jnp.concatenate([li, hid], axis=-1)
    return jnp.dot(cat, p["cv_w2"]) + p["cv_b2"]


def vector_decoder_reference(params, hlane, hmid, hinteraction, coordinates, c_mask,
                             timestamp, gtpoint, test=False):
    B = hlane.shape[0]
    coords = _assemble_coords(coordinates, timestamp, gtpoint, B, test)
    ego = hinteraction[:, 55:56].astype(jnp.float32)
    mmid = c_mask[:, None, :].astype(jnp.float32)
    mlane = c_mask[:, None, :55].astype(jnp.float32)
    out = jax.vmap(lambda c, e, hm, hl, m1, m2:
                   _decode_one_ref(c, e, hm, hl, m1, m2, params))(
        coords, ego, hmid.astype(jnp.float32), hlane.astype(jnp.float32), mmid, mlane)
    return jnp.squeeze(out, axis=-1)


# --------------------------------------------------------------------------
# deterministic parameter init (logical / unpacked layout)
# --------------------------------------------------------------------------
def init_params(key):
    ks = jax.random.split(key, 7)

    def w(k, shape, scale=0.05):
        return jax.random.normal(k, shape, jnp.float32) * scale

    return dict(
        ego_w=w(ks[0], (3 + H, H)),
        ego_b=jnp.zeros((1, H), jnp.float32),
        ego_g=jnp.ones((1, H), jnp.float32),
        ego_beta=jnp.zeros((1, H), jnp.float32),
        a1_w=w(ks[1], (4, H, H)),
        a1_b=w(ks[2], (4, 1, H), 0.01),
        a2_w=w(ks[3], (4, H, H)),
        a2_b=w(ks[4], (4, 1, H), 0.01),
        cv_w1=w(ks[5], (4 * H, H)),
        cv_b1=jnp.zeros((1, H), jnp.float32),
        cv_g=jnp.ones((1, H), jnp.float32),
        cv_beta=jnp.zeros((1, H), jnp.float32),
        cv_w2=w(ks[6], (5 * H, 1)),
        cv_b2=jnp.zeros((1, 1), jnp.float32),
    )


if __name__ == "__main__":
    key = jax.random.PRNGKey(0)
    kp, kd = jax.random.split(key)
    params = init_params(kp)

    B, M, L, NC, NG = 2, 64, 55, 48, 16          # N = NC + NG = 64 query points
    ks = jax.random.split(kd, 6)
    hlane = jax.random.normal(ks[0], (B, L, H), jnp.float32)
    hmid = jax.random.normal(ks[1], (B, M, H), jnp.float32)
    hinteraction = jax.random.normal(ks[2], (B, M, H), jnp.float32)   # >= 56 tokens
    coordinates = jax.random.normal(ks[3], (NC, 2), jnp.float32)
    c_mask = (jax.random.uniform(ks[4], (B, M)) > 0.2).astype(jnp.float32)
    gtpoint = jax.random.normal(ks[5], (B, NG, 3), jnp.float32)
    timestamp = [1.0, 2.0]                       # one scalar per batch element

    heatmap = vector_decoder(params, hlane, hmid, hinteraction, coordinates,
                             c_mask, timestamp, gtpoint, test=False)
    heatmap = jax.block_until_ready(heatmap)

    ref = vector_decoder_reference(params, hlane, hmid, hinteraction, coordinates,
                                   c_mask, timestamp, gtpoint, test=False)

    assert heatmap.shape == (B, NC + NG), heatmap.shape
    max_err = float(jnp.max(jnp.abs(heatmap - ref)))
    assert jnp.allclose(heatmap, ref, rtol=2e-3, atol=2e-3), max_err
    print("KERNEL_OK")
</pallas_src>

<mosaic_0001>
module attributes {stable_mosaic.version = 11 : i64} {
  func.func @decoder_kernel(%arg0: i32, %arg1: memref<1x64x8xf32, #tpu.memory_space<vmem>>, %arg2: memref<1x1x32xf32, #tpu.memory_space<vmem>>, %arg3: memref<1x64x32xf32, #tpu.memory_space<vmem>>, %arg4: memref<1x64x32xf32, #tpu.memory_space<vmem>>, %arg5: memref<1x4x1x64xf32, #tpu.memory_space<vmem>>, %arg6: memref<328x64xf32, #tpu.memory_space<vmem>>, %arg7: memref<16x128xf32, #tpu.memory_space<vmem>>, %arg8: memref<1x1x64xf32, #tpu.memory_space<vmem>>) attributes {dimension_semantics = [#tpu.dimension_semantics<parallel>], iteration_bounds = array<i64: 2>, scalar_prefetch = 0 : i64, scratch_operands = 0 : i64, tpu.core_type = #tpu.core_type<tc>, window_params = [{transform_indices = @transform_0, window_bounds = array<i64: 1, 64, 8>}, {transform_indices = @transform_1, window_bounds = array<i64: 1, 1, 32>}, {transform_indices = @transform_2, window_bounds = array<i64: 1, 64, 32>}, {transform_indices = @transform_3, window_bounds = array<i64: 1, 64, 32>}, {transform_indices = @transform_4, window_bounds = array<i64: 1, 4, 1, 64>}, {pipeline_mode = #tpu.pipeline_mode<synchronous>, transform_indices = @transform_5, window_bounds = array<i64: 328, 64>}, {pipeline_mode = #tpu.pipeline_mode<synchronous>, transform_indices = @transform_6, window_bounds = array<i64: 16, 128>}, {transform_indices = @transform_7, window_bounds = array<i64: 1, 1, 64>}]} {
    %c0 = arith.constant 0 : index
    %c0_0 = arith.constant 0 : index
    %c0_1 = arith.constant 0 : index
    %0 = vector.load %arg1[%c0, %c0_0, %c0_1] : memref<1x64x8xf32, #tpu.memory_space<vmem>>, vector<1x64x8xf32>
    %1 = vector.shape_cast %0 : vector<1x64x8xf32> to vector<64x8xf32>
    %c0_2 = arith.constant 0 : index
    %c0_3 = arith.constant 0 : index
    %c0_4 = arith.constant 0 : index
    %2 = vector.load %arg2[%c0_2, %c0_3, %c0_4] : memref<1x1x32xf32, #tpu.memory_space<vmem>>, vector<1x1x32xf32>
    %3 = vector.shape_cast %2 : vector<1x1x32xf32> to vector<1x32xf32>
    %c0_5 = arith.constant 0 : index
    %c0_6 = arith.constant 0 : index
    %c0_7 = arith.constant 0 : index
    %4 = vector.load %arg3[%c0_5, %c0_6, %c0_7] : memref<1x64x32xf32, #tpu.memory_space<vmem>>, vector<1x64x32xf32>
    %5 = vector.shape_cast %4 : vector<1x64x32xf32> to vector<64x32xf32>
    %c0_8 = arith.constant 0 : index
    %c0_9 = arith.constant 0 : index
    %c0_10 = arith.constant 0 : index
    %6 = vector.load %arg4[%c0_8, %c0_9, %c0_10] : memref<1x64x32xf32, #tpu.memory_space<vmem>>, vector<1x64x32xf32>
    %7 = vector.shape_cast %6 : vector<1x64x32xf32> to vector<64x32xf32>
    %c0_11 = arith.constant 0 : index
    %c0_12 = arith.constant 0 : index
    %c0_13 = arith.constant 0 : index
    %c0_14 = arith.constant 0 : index
    %8 = vector.load %arg5[%c0_11, %c0_12, %c0_13, %c0_14] : memref<1x4x1x64xf32, #tpu.memory_space<vmem>>, vector<1x4x1x64xf32>
    %9 = vector.shape_cast %8 : vector<1x4x1x64xf32> to vector<4x1x64xf32>
    %c0_15 = arith.constant 0 : index
    %c0_16 = arith.constant 0 : index
    %10 = vector.load %arg6[%c0_15, %c0_16] : memref<328x64xf32, #tpu.memory_space<vmem>>, vector<8x32xf32>
    %c8 = arith.constant 8 : index
    %c0_17 = arith.constant 0 : index
    %11 = vector.load %arg6[%c8, %c0_17] : memref<328x64xf32, #tpu.memory_space<vmem>>, vector<32x32xf32>
    %c40 = arith.constant 40 : index
    %c0_18 = arith.constant 0 : index
    %12 = vector.load %arg6[%c40, %c0_18] : memref<328x64xf32, #tpu.memory_space<vmem>>, vector<32x64xf32>
    %c72 = arith.constant 72 : index
    %c0_19 = arith.constant 0 : index
    %13 = vector.load %arg6[%c72, %c0_19] : memref<328x64xf32, #tpu.memory_space<vmem>>, vector<32x64xf32>
    %c104 = arith.constant 104 : index
    %c0_20 = arith.constant 0 : index
    %14 = vector.load %arg6[%c104, %c0_20] : memref<328x64xf32, #tpu.memory_space<vmem>>, vector<32x64xf32>
    %c136 = arith.constant 136 : index
    %c0_21 = arith.constant 0 : index
    %15 = vector.load %arg6[%c136, %c0_21] : memref<328x64xf32, #tpu.memory_space<vmem>>, vector<64x64xf32>
    %c200 = arith.constant 200 : index
    %c0_22 = arith.constant 0 : index
    %16 = vector.load %arg6[%c200, %c0_22] : memref<328x64xf32, #tpu.memory_space<vmem>>, vector<128x32xf32>
    %c0_23 = arith.constant 0 : index
    %c0_24 = arith.constant 0 : index
    %17 = vector.load %arg7[%c0_23, %c0_24] : memref<16x128xf32, #tpu.memory_space<vmem>>, vector<1x32xf32>
    %c1 = arith.constant 1 : index
    %c0_25 = arith.constant 0 : index
    %18 = vector.load %arg7[%c1, %c0_25] : memref<16x128xf32, #tpu.memory_space<vmem>>, vector<1x32xf32>
    %c2 = arith.constant 2 : index
    %c0_26 = arith.constant 0 : index
    %19 = vector.load %arg7[%c2, %c0_26] : memref<16x128xf32, #tpu.memory_space<vmem>>, vector<1x32xf32>
    %c3 = arith.constant 3 : index
    %c0_27 = arith.constant 0 : index
    %20 = vector.load %arg7[%c3, %c0_27] : memref<16x128xf32, #tpu.memory_space<vmem>>, vector<1x64xf32>
    %c4 = arith.constant 4 : index
    %c0_28 = arith.constant 0 : index
    %21 = vector.load %arg7[%c4, %c0_28] : memref<16x128xf32, #tpu.memory_space<vmem>>, vector<1x64xf32>
    %c5 = arith.constant 5 : index
    %c0_29 = arith.constant 0 : index
    %22 = vector.load %arg7[%c5, %c0_29] : memref<16x128xf32, #tpu.memory_space<vmem>>, vector<1x64xf32>
    %c6 = arith.constant 6 : index
    %c0_30 = arith.constant 0 : index
    %23 = vector.load %arg7[%c6, %c0_30] : memref<16x128xf32, #tpu.memory_space<vmem>>, vector<1x64xf32>
    %c7 = arith.constant 7 : index
    %c0_31 = arith.constant 0 : index
    %24 = vector.load %arg7[%c7, %c0_31] : memref<16x128xf32, #tpu.memory_space<vmem>>, vector<1x32xf32>
    %c8_32 = arith.constant 8 : index
    %c0_33 = arith.constant 0 : index
    %25 = vector.load %arg7[%c8_32, %c0_33] : memref<16x128xf32, #tpu.memory_space<vmem>>, vector<1x32xf32>
    %c9 = arith.constant 9 : index
    %c0_34 = arith.constant 0 : index
    %26 = vector.load %arg7[%c9, %c0_34] : memref<16x128xf32, #tpu.memory_space<vmem>>, vector<1x32xf32>
    %c10 = arith.constant 10 : index
    %c0_35 = arith.constant 0 : index
    %27 = vector.load %arg7[%c10, %c0_35] : memref<16x128xf32, #tpu.memory_space<vmem>>, vector<1x128xf32>
    %c11 = arith.constant 11 : index
    %c0_36 = arith.constant 0 : index
    %28 = vector.load %arg7[%c11, %c0_36] : memref<16x128xf32, #tpu.memory_space<vmem>>, vector<1x32xf32>
    %c12 = arith.constant 12 : index
    %c0_37 = arith.constant 0 : index
    %29 = vector.load %arg7[%c12, %c0_37] : memref<16x128xf32, #tpu.memory_space<vmem>>, vector<1x1xf32>
    %cst = arith.constant dense<0.000000e+00> : vector<1x32xf32>
    %30 = tpu.matmul %3, %11, %cst {dimension_numbers = #tpu.dot_dimension_numbers<[1], [0], [0], [1], [0, 0, 1, 1], [], []>} : vector<1x32xf32>, vector<32x32xf32>, vector<1x32xf32> -> vector<1x32xf32>
    %cst_38 = arith.constant dense<0.000000e+00> : vector<64x32xf32>
    %31 = tpu.matmul %1, %10, %cst_38 {dimension_numbers = #tpu.dot_dimension_numbers<[1], [0], [0], [1], [0, 0, 1, 1], [], []>} : vector<64x8xf32>, vector<8x32xf32>, vector<64x32xf32> -> vector<64x32xf32>
    %32 = vector.broadcast %30 : vector<1x32xf32> to vector<64x32xf32>
    %33 = arith.addf %31, %32 : vector<64x32xf32>
    %34 = vector.broadcast %17 : vector<1x32xf32> to vector<64x32xf32>
    %35 = arith.addf %33, %34 : vector<64x32xf32>
    %cst_39 = arith.constant dense<0.000000e+00> : vector<64xf32>
    %36 = vector.multi_reduction <add>, %35, %cst_39 [1] : vector<64x32xf32> to vector<64xf32>
    %37 = vector.shape_cast %36 : vector<64xf32> to vector<64x1xf32>
    %cst_40 = arith.constant 3.200000e+01 : f32
    %38 = vector.broadcast %cst_40 : f32 to vector<64x1xf32>
    %39 = arith.divf %37, %38 : vector<64x1xf32>
    %40 = vector.broadcast %39 : vector<64x1xf32> to vector<64x32xf32>
    %41 = arith.subf %35, %40 : vector<64x32xf32>
    %42 = arith.mulf %41, %41 : vector<64x32xf32>
    %cst_41 = arith.constant dense<0.000000e+00> : vector<64xf32>
    %43 = vector.multi_reduction <add>, %42, %cst_41 [1] : vector<64x32xf32> to vector<64xf32>
    %44 = vector.shape_cast %43 : vector<64xf32> to vector<64x1xf32>
    %cst_42 = arith.constant 3.200000e+01 : f32
    %45 = vector.broadcast %cst_42 : f32 to vector<64x1xf32>
    %46 = arith.divf %44, %45 : vector<64x1xf32>
    %47 = vector.broadcast %39 : vector<64x1xf32> to vector<64x32xf32>
    %48 = arith.subf %35, %47 : vector<64x32xf32>
    %cst_43 = arith.constant 9.99999974E-6 : f32
    %49 = vector.broadcast %cst_43 : f32 to vector<64x1xf32>
    %50 = arith.addf %46, %49 : vector<64x1xf32>
    %51 = math.rsqrt %50 : vector<64x1xf32>
    %52 = vector.broadcast %51 : vector<64x1xf32> to vector<64x32xf32>
    %53 = arith.mulf %48, %52 : vector<64x32xf32>
    %54 = vector.broadcast %18 : vector<1x32xf32> to vector<64x32xf32>
    %55 = arith.mulf %53, %54 : vector<64x32xf32>
    %56 = vector.broadcast %19 : vector<1x32xf32> to vector<64x32xf32>
    %57 = arith.addf %55, %56 : vector<64x32xf32>
    %cst_44 = arith.constant 0.000000e+00 : f32
    %58 = vector.broadcast %cst_44 : f32 to vector<64x32xf32>
    %59 = arith.maximumf %57, %58 : vector<64x32xf32>
    %cst_45 = arith.constant dense<0.000000e+00> : vector<64x64xf32>
    %60 = tpu.matmul %59, %12, %cst_45 {dimension_numbers = #tpu.dot_dimension_numbers<[1], [0], [0], [1], [0, 0, 1, 1], [], []>} : vector<64x32xf32>, vector<32x64xf32>, vector<64x64xf32> -> vector<64x64xf32>
    %61 = vector.broadcast %20 : vector<1x64xf32> to vector<64x64xf32>
    %62 = arith.addf %60, %61 : vector<64x64xf32>
    %cst_46 = arith.constant dense<0.000000e+00> : vector<64x64xf32>
    %63 = tpu.matmul %5, %13, %cst_46 {dimension_numbers = #tpu.dot_dimension_numbers<[1], [0], [0], [1], [0, 0, 1, 1], [], []>} : vector<64x32xf32>, vector<32x64xf32>, vector<64x64xf32> -> vector<64x64xf32>
    %64 = vector.broadcast %21 : vector<1x64xf32> to vector<64x64xf32>
    %65 = arith.addf %63, %64 : vector<64x64xf32>
    %cst_47 = arith.constant dense<0.000000e+00> : vector<64x64xf32>
    %66 = tpu.matmul %7, %14, %cst_47 {dimension_numbers = #tpu.dot_dimension_numbers<[1], [0], [0], [1], [0, 0, 1, 1], [], []>} : vector<64x32xf32>, vector<32x64xf32>, vector<64x64xf32> -> vector<64x64xf32>
    %67 = vector.broadcast %22 : vector<1x64xf32> to vector<64x64xf32>
    %68 = arith.addf %66, %67 : vector<64x64xf32>
    %69 = vector.extract_strided_slice %62 {offsets = [0, 0], sizes = [64, 16], strides = [1, 1]} : vector<64x64xf32> to vector<64x16xf32>
    %70 = vector.extract_strided_slice %62 {offsets = [0, 16], sizes = [64, 16], strides = [1, 1]} : vector<64x64xf32> to vector<64x16xf32>
    %71 = vector.extract_strided_slice %62 {offsets = [0, 32], sizes = [64, 16], strides = [1, 1]} : vector<64x64xf32> to vector<64x16xf32>
    %72 = vector.extract_strided_slice %62 {offsets = [0, 48], sizes = [64, 16], strides = [1, 1]} : vector<64x64xf32> to vector<64x16xf32>
    %73 = vector.shape_cast %69 : vector<64x16xf32> to vector<1x64x16xf32>
    %74 = vector.shape_cast %70 : vector<64x16xf32> to vector<1x64x16xf32>
    %75 = vector.shape_cast %71 : vector<64x16xf32> to vector<1x64x16xf32>
    %76 = vector.shape_cast %72 : vector<64x16xf32> to vector<1x64x16xf32>
    %77 = tpu.concatenate %73, %74, %75, %76 in 0 : vector<1x64x16xf32>, vector<1x64x16xf32>, vector<1x64x16xf32>, vector<1x64x16xf32> -> vector<4x64x16xf32>
    %78 = vector.extract_strided_slice %65 {offsets = [0, 0], sizes = [64, 16], strides = [1, 1]} : vector<64x64xf32> to vector<64x16xf32>
    %79 = vector.extract_strided_slice %65 {offsets = [0, 16], sizes = [64, 16], strides = [1, 1]} : vector<64x64xf32> to vector<64x16xf32>
    %80 = vector.extract_strided_slice %68 {offsets = [0, 0], sizes = [64, 16], strides = [1, 1]} : vector<64x64xf32> to vector<64x16xf32>
    %81 = vector.extract_strided_slice %68 {offsets = [0, 16], sizes = [64, 16], strides = [1, 1]} : vector<64x64xf32> to vector<64x16xf32>
    %82 = vector.shape_cast %78 : vector<64x16xf32> to vector<1x64x16xf32>
    %83 = vector.shape_cast %79 : vector<64x16xf32> to vector<1x64x16xf32>
    %84 = vector.shape_cast %80 : vector<64x16xf32> to vector<1x64x16xf32>
    %85 = vector.shape_cast %81 : vector<64x16xf32> to vector<1x64x16xf32>
    %86 = tpu.concatenate %82, %83, %84, %85 in 0 : vector<1x64x16xf32>, vector<1x64x16xf32>, vector<1x64x16xf32>, vector<1x64x16xf32> -> vector<4x64x16xf32>
    %87 = vector.extract_strided_slice %65 {offsets = [0, 32], sizes = [64, 16], strides = [1, 1]} : vector<64x64xf32> to vector<64x16xf32>
    %88 = vector.extract_strided_slice %65 {offsets = [0, 48], sizes = [64, 16], strides = [1, 1]} : vector<64x64xf32> to vector<64x16xf32>
    %89 = vector.extract_strided_slice %68 {offsets = [0, 32], sizes = [64, 16], strides = [1, 1]} : vector<64x64xf32> to vector<64x16xf32>
    %90 = vector.extract_strided_slice %68 {offsets = [0, 48], sizes = [64, 16], strides = [1, 1]} : vector<64x64xf32> to vector<64x16xf32>
    %91 = vector.shape_cast %87 : vector<64x16xf32> to vector<1x64x16xf32>
    %92 = vector.shape_cast %88 : vector<64x16xf32> to vector<1x64x16xf32>
    %93 = vector.shape_cast %89 : vector<64x16xf32> to vector<1x64x16xf32>
    %94 = vector.shape_cast %90 : vector<64x16xf32> to vector<1x64x16xf32>
    %95 = tpu.concatenate %91, %92, %93, %94 in 0 : vector<1x64x16xf32>, vector<1x64x16xf32>, vector<1x64x16xf32>, vector<1x64x16xf32> -> vector<4x64x16xf32>
    "tpu.trace_start"() <{level = 10 : i32, message = "gqd,gkd->gqk"}> : () -> ()
    %cst_48 = arith.constant dense<0.000000e+00> : vector<4x64x64xf32>
    %96 = tpu.matmul %77, %86, %cst_48 {dimension_numbers = #tpu.dot_dimension_numbers<[2], [2], [1], [1], [0, 0, 0, 1, 1, 1], [0], [0]>} : vector<4x64x16xf32>, vector<4x64x16xf32>, vector<4x64x64xf32> -> vector<4x64x64xf32>
    "tpu.trace_stop"() : () -> ()
    %cst_49 = arith.constant 2.500000e-01 : f32
    %97 = vector.broadcast %cst_49 : f32 to vector<4x64x64xf32>
    %98 = arith.mulf %96, %97 : vector<4x64x64xf32>
    %99 = vector.broadcast %9 : vector<4x1x64xf32> to vector<4x64x64xf32>
    %100 = arith.addf %98, %99 : vector<4x64x64xf32>
    %cst_50 = arith.constant dense<0xFF800000> : vector<4x64xf32>
    %101 = vector.multi_reduction <maximumf>, %100, %cst_50 [2] : vector<4x64x64xf32> to vector<4x64xf32>
    %102 = vector.shape_cast %101 : vector<4x64xf32> to vector<4x64x1xf32>
    %103 = vector.broadcast %102 : vector<4x64x1xf32> to vector<4x64x64xf32>
    %104 = arith.subf %100, %103 : vector<4x64x64xf32>
    %105 = math.exp %104 : vector<4x64x64xf32>
    %cst_51 = arith.constant dense<0.000000e+00> : vector<4x64xf32>
    %106 = vector.multi_reduction <add>, %105, %cst_51 [2] : vector<4x64x64xf32> to vector<4x64xf32>
    %107 = vector.shape_cast %106 : vector<4x64xf32> to vector<4x64x1xf32>
    %108 = tpu.reciprocal %107 {approx = true} : vector<4x64x1xf32> -> vector<4x64x1xf32>
    %109 = vector.broadcast %108 : vector<4x64x1xf32> to vector<4x64x64xf32>
    %110 = arith.mulf %105, %109 : vector<4x64x64xf32>
    "tpu.trace_start"() <{level = 10 : i32, message = "gqk,gkd->gqd"}> : () -> ()
    %cst_52 = arith.constant dense<0.000000e+00> : vector<4x64x16xf32>
    %111 = tpu.matmul %110, %95, %cst_52 {dimension_numbers = #tpu.dot_dimension_numbers<[2], [1], [1], [2], [0, 0, 0, 1, 1, 2], [0], [0]>} : vector<4x64x64xf32>, vector<4x64x16xf32>, vector<4x64x16xf32> -> vector<4x64x16xf32>
    "tpu.trace_stop"() : () -> ()
    %112 = vector.extract_strided_slice %111 {offsets = [0, 0, 0], sizes = [1, 64, 16], strides = [1, 1, 1]} : vector<4x64x16xf32> to vector<1x64x16xf32>
    %113 = vector.shape_cast %112 : vector<1x64x16xf32> to vector<64x16xf32>
    %114 = vector.extract_strided_slice %111 {offsets = [1, 0, 0], sizes = [1, 64, 16], strides = [1, 1, 1]} : vector<4x64x16xf32> to vector<1x64x16xf32>
    %115 = vector.shape_cast %114 : vector<1x64x16xf32> to vector<64x16xf32>
    %116 = vector.extract_strided_slice %111 {offsets = [2, 0, 0], sizes = [1, 64, 16], strides = [1, 1, 1]} : vector<4x64x16xf32> to vector<1x64x16xf32>
    %117 = vector.shape_cast %116 : vector<1x64x16xf32> to vector<64x16xf32>
    %118 = vector.extract_strided_slice %111 {offsets = [3, 0, 0], sizes = [1, 64, 16], strides = [1, 1, 1]} : vector<4x64x16xf32> to vector<1x64x16xf32>
    %119 = vector.shape_cast %118 : vector<1x64x16xf32> to vector<64x16xf32>
    %120 = tpu.concatenate %113, %115, %117, %119 in 1 : vector<64x16xf32>, vector<64x16xf32>, vector<64x16xf32>, vector<64x16xf32> -> vector<64x64xf32>
    %cst_53 = arith.constant dense<0.000000e+00> : vector<64x64xf32>
    %121 = tpu.matmul %120, %15, %cst_53 {dimension_numbers = #tpu.dot_dimension_numbers<[1], [0], [0], [1], [0, 0, 1, 1], [], []>} : vector<64x64xf32>, vector<64x64xf32>, vector<64x64xf32> -> vector<64x64xf32>
    %122 = vector.broadcast %23 : vector<1x64xf32> to vector<64x64xf32>
    %123 = arith.addf %121, %122 : vector<64x64xf32>
    %124 = vector.shape_cast %3 : vector<1x32xf32> to vector<1x32xf32>
    %125 = vector.broadcast %124 : vector<1x32xf32> to vector<64x32xf32>
    %126 = tpu.concatenate %125, %59, %123 in 1 : vector<64x32xf32>, vector<64x32xf32>, vector<64x64xf32> -> vector<64x128xf32>
    %cst_54 = arith.constant dense<0.000000e+00> : vector<64x32xf32>
    %127 = tpu.matmul %126, %16, %cst_54 {dimension_numbers = #tpu.dot_dimension_numbers<[1], [0], [0], [1], [0, 0, 1, 1], [], []>} : vector<64x128xf32>, vector<128x32xf32>, vector<64x32xf32> -> vector<64x32xf32>
    %128 = vector.broadcast %24 : vector<1x32xf32> to vector<64x32xf32>
    %129 = arith.addf %127, %128 : vector<64x32xf32>
    %cst_55 = arith.constant dense<0.000000e+00> : vector<64xf32>
    %130 = vector.multi_reduction <add>, %129, %cst_55 [1] : vector<64x32xf32> to vector<64xf32>
    %131 = vector.shape_cast %130 : vector<64xf32> to vector<64x1xf32>
    %cst_56 = arith.constant 3.200000e+01 : f32
    %132 = vector.broadcast %cst_56 : f32 to vector<64x1xf32>
    %133 = arith.divf %131, %132 : vector<64x1xf32>
    %134 = vector.broadcast %133 : vector<64x1xf32> to vector<64x32xf32>
    %135 = arith.subf %129, %134 : vector<64x32xf32>
    %136 = arith.mulf %135, %135 : vector<64x32xf32>
    %cst_57 = arith.constant dense<0.000000e+00> : vector<64xf32>
    %137 = vector.multi_reduction <add>, %136, %cst_57 [1] : vector<64x32xf32> to vector<64xf32>
    %138 = vector.shape_cast %137 : vector<64xf32> to vector<64x1xf32>
    %cst_58 = arith.constant 3.200000e+01 : f32
    %139 = vector.broadcast %cst_58 : f32 to vector<64x1xf32>
    %140 = arith.divf %138, %139 : vector<64x1xf32>
    %141 = vector.broadcast %133 : vector<64x1xf32> to vector<64x32xf32>
    %142 = arith.subf %129, %141 : vector<64x32xf32>
    %cst_59 = arith.constant 9.99999974E-6 : f32
    %143 = vector.broadcast %cst_59 : f32 to vector<64x1xf32>
    %144 = arith.addf %140, %143 : vector<64x1xf32>
    %145 = math.rsqrt %144 : vector<64x1xf32>
    %146 = vector.broadcast %145 : vector<64x1xf32> to vector<64x32xf32>
    %147 = arith.mulf %142, %146 : vector<64x32xf32>
    %148 = vector.broadcast %25 : vector<1x32xf32> to vector<64x32xf32>
    %149 = arith.mulf %147, %148 : vector<64x32xf32>
    %150 = vector.broadcast %26 : vector<1x32xf32> to vector<64x32xf32>
    %151 = arith.addf %149, %150 : vector<64x32xf32>
    %cst_60 = arith.constant 0.000000e+00 : f32
    %152 = vector.broadcast %cst_60 : f32 to vector<64x32xf32>
    %153 = arith.maximumf %151, %152 : vector<64x32xf32>
    %cst_61 = arith.constant dense<0.000000e+00> : vector<1x64xf32>
    %154 = tpu.matmul %27, %126, %cst_61 {dimension_numbers = #tpu.dot_dimension_numbers<[1], [1], [0], [0], [0, 0, 1, 0], [], []>} : vector<1x128xf32>, vector<64x128xf32>, vector<1x64xf32> -> vector<1x64xf32>
    %cst_62 = arith.constant dense<0.000000e+00> : vector<1x64xf32>
    %155 = tpu.matmul %28, %153, %cst_62 {dimension_numbers = #tpu.dot_dimension_numbers<[1], [1], [0], [0], [0, 0, 1, 0], [], []>} : vector<1x32xf32>, vector<64x32xf32>, vector<1x64xf32> -> vector<1x64xf32>
    %156 = arith.addf %154, %155 : vector<1x64xf32>
    %157 = vector.broadcast %29 : vector<1x1xf32> to vector<1x64xf32>
    %158 = arith.addf %156, %157 : vector<1x64xf32>
    %c0_63 = arith.constant 0 : index
    %c0_64 = arith.constant 0 : index
    %c0_65 = arith.constant 0 : index
    %159 = vector.load %arg8[%c0_63, %c0_64, %c0_65] : memref<1x1x64xf32, #tpu.memory_space<vmem>>, vector<1x1x64xf32>
    %160 = vector.shape_cast %159 : vector<1x1x64xf32> to vector<1x64xf32>
    %161 = vector.shape_cast %158 : vector<1x64xf32> to vector<1x1x64xf32>
    tpu.vector_store %arg8[%c0_63, %c0_64, %c0_65], %161 {strides = array<i32>} : memref<1x1x64xf32, #tpu.memory_space<vmem>>, vector<1x1x64xf32>,
    return
  }
  func.func @transform_0(%arg0: i32) -> (i32, i32, i32) {
    %c0_i32 = arith.constant 0 : i32
    %c0_i32_0 = arith.constant 0 : i32
    %c0_i32_1 = arith.constant 0 : i32
    return %arg0, %c0_i32, %c0_i32_0 : i32, i32, i32
  }
  func.func @transform_1(%arg0: i32) -> (i32, i32, i32) {
    %c0_i32 = arith.constant 0 : i32
    %c0_i32_0 = arith.constant 0 : i32
    %c0_i32_1 = arith.constant 0 : i32
    return %arg0, %c0_i32, %c0_i32_0 : i32, i32, i32
  }
  func.func @transform_2(%arg0: i32) -> (i32, i32, i32) {
    %c0_i32 = arith.constant 0 : i32
    %c0_i32_0 = arith.constant 0 : i32
    %c0_i32_1 = arith.constant 0 : i32
    return %arg0, %c0_i32, %c0_i32_0 : i32, i32, i32
  }
  func.func @transform_3(%arg0: i32) -> (i32, i32, i32) {
    %c0_i32 = arith.constant 0 : i32
    %c0_i32_0 = arith.constant 0 : i32
    %c0_i32_1 = arith.constant 0 : i32
    return %arg0, %c0_i32, %c0_i32_0 : i32, i32, i32
  }
  func.func @transform_4(%arg0: i32) -> (i32, i32, i32, i32) {
    %c0_i32 = arith.constant 0 : i32
    %c0_i32_0 = arith.constant 0 : i32
    %c0_i32_1 = arith.constant 0 : i32
    %c0_i32_2 = arith.constant 0 : i32
    return %arg0, %c0_i32, %c0_i32_0, %c0_i32_1 : i32, i32, i32, i32
  }
  func.func @transform_5(%arg0: i32) -> (i32, i32) {
    %c0_i32 = arith.constant 0 : i32
    %c0_i32_0 = arith.constant 0 : i32
    %c0_i32_1 = arith.constant 0 : i32
    return %c0_i32, %c0_i32_0 : i32, i32
  }
  func.func @transform_6(%arg0: i32) -> (i32, i32) {
    %c0_i32 = arith.constant 0 : i32
    %c0_i32_0 = arith.constant 0 : i32
    %c0_i32_1 = arith.constant 0 : i32
    return %c0_i32, %c0_i32_0 : i32, i32
  }
  func.func @transform_7(%arg0: i32) -> (i32, i32, i32) {
    %c0_i32 = arith.constant 0 : i32
    %c0_i32_0 = arith.constant 0 : i32
    %c0_i32_1 = arith.constant 0 : i32
    return %arg0, %c0_i32, %c0_i32_0 : i32, i32, i32
  }
}

</mosaic_0001>

<llo_original>
// kernel: tpu_custom_call.1
$region0: #{tpu_custom_call.1}
  #allocation0 [shape = 'u32[]', space=smem, size = 0x4, offset = 0x4, fixed_abs, tag = 'smem constant byte address 0x4 - core index']
  #allocation1 [shape = 'u32[144,128]{1,0:T(1,128)}', space=vmem, size = 0x12000, scoped, tag = 'internal scratch']
  %s0 = inlined_call_operand.vmem [shape: f32[2,64,8], index: 0, kind: input, shape index: {}]
  %s1 = inlined_call_operand.vmem [shape: f32[2,1,32], index: 1, kind: input, shape index: {}]
  %s2 = inlined_call_operand.vmem [shape: f32[2,64,32], index: 2, kind: input, shape index: {}]
  %s3 = inlined_call_operand.vmem [shape: f32[2,64,32], index: 3, kind: input, shape index: {}]
  %s4 = inlined_call_operand.vmem [shape: f32[2,4,1,64], index: 4, kind: input, shape index: {}]
  %s5 = inlined_call_operand.vmem [shape: f32[328,64], index: 5, kind: input, shape index: {}]
  %s6 = inlined_call_operand.vmem [shape: f32[16,128], index: 6, kind: input, shape index: {}]
  %s7 = inlined_call_operand.hbm [shape: f32[2,1,64], index: 7, kind: output, shape index: {}]
  %s8 = sld [smem:[#allocation0]]
  $region61: #{tpu_custom_call.1} parent=0
    _
  %s10 = ssub.s32 1, %s8
  %s11 = scalar_select 0, %s10, %s8
  $region1: #{tpu_custom_call.1} parent=0
    #allocation2 [shape = 'u8[1024]{0}', space=vmem, size = 0x400, scoped, tag = 'output window, operand 0']
    #allocation3 [shape = 's32[2]{0}', space=sflag, size = 0x8, scoped, tag = 'scoped memory for tpu_custom_call.1']
    %12 = vsyncpa [#allocation3], 0
    %s13 = scalar_lea.sflag [#allocation3], 1
    %14 = vsyncpa %s13, 0
    loop: start=0, step=1, limit=4
    $region2: #{tpu_custom_call.1} parent=1 // loop_pre_header
      _
    $region3: #{tpu_custom_call.1} parent=1 // loop_header
      %s16 = sphi 0, %s20
      %p17 = scmp.ge.s32.totalorder %s16, 4
      %s26 = sphi 0, %s28
      %s29 = sphi 0, %s26
      %s30 = sphi 0, %s29
      %s46 = sphi 0, %s30
      %s52 = sphi 0, %s54
      %s55 = sphi 0, %s52
      %s56 = sphi 0, %s55
      %s72 = sphi 0, %s56
      %s78 = sphi 0, %s80
      %s81 = sphi 0, %s78
      %s82 = sphi 0, %s81
      %s98 = sphi 0, %s82
      %s104 = sphi 0, %s106
      %s107 = sphi 0, %s104
      %s108 = sphi 0, %s107
      %s124 = sphi 0, %s108
      %s130 = sphi 0, %s132
      %s133 = sphi 0, %s130
      %s134 = sphi 0, %s133
      %s150 = sphi 0, %s134
      %s154 = sphi 0, %s154
      %s156 = sphi 0, %s154
      %s157 = sphi 0, %s156
      %s171 = sphi 0, %s157
      %s175 = sphi 0, %s175
      %s177 = sphi 0, %s175
      %s178 = sphi 0, %s177
      %s192 = sphi 0, %s178
      %s198 = sphi 0, %s200
      %s201 = sphi 0, %s198
      %s202 = sphi 0, %s201
      %s218 = sphi 0, %s202
    $region4: #{tpu_custom_call.1} parent=1 // loop_header_branch
      %19 = sbr.rel (%p17) target = $region8
    $region5: #{tpu_custom_call.1} parent=1 // loop_body
      %s21 = ssub.s32 %s16, 1
      %s22 = ssub.s32 %s16, 2
      %s23 = sadd.s32 %s16, 1
      %s24 = ssub.s32 %s16, %s23
      %p25 = scmp.eq.s32.totalorder %s24, 0
      %s27 = sadd.s32 %s26, 1
      %s28 = scalar_select %p25, %s26, %s27
      %p31 = pneg %p25
      %p32 = scmp.eq.s32.totalorder %s16, 1
      %p33 = por %p31, %p32
      %p34 = scmp.ne.s32.totalorder %s26, %s29
      %p35 = scmp.eq.s32.totalorder %s16, 0
      %p36 = por %p34, %p35
      %p37 = scmp.ne.s32.totalorder %s26, %s29
      %p38 = scmp.eq.s32.totalorder %s21, 1
      %p39 = por %p37, %p38
      %p40 = scmp.ne.s32.totalorder %s29, %s30
      %p41 = scmp.eq.s32.totalorder %s21, 0
      %p42 = por %p40, %p41
      %p43 = scmp.ne.s32.totalorder %s29, %s30
      %p44 = scmp.eq.s32.totalorder %s22, 1
      %p45 = por %p43, %p44
      %p47 = scmp.ne.s32.totalorder %s30, %s46
      %p48 = scmp.eq.s32.totalorder %s22, 0
      %p49 = por %p47, %p48
      %s50 = ssub.s32 %s16, %s23
      %p51 = scmp.eq.s32.totalorder %s50, 0
      %s53 = sadd.s32 %s52, 1
      %s54 = scalar_select %p51, %s52, %s53
      %p57 = pneg %p51
      %p58 = scmp.eq.s32.totalorder %s16, 1
      %p59 = por %p57, %p58
      %p60 = scmp.ne.s32.totalorder %s52, %s55
      %p61 = scmp.eq.s32.totalorder %s16, 0
      %p62 = por %p60, %p61
      %p63 = scmp.ne.s32.totalorder %s52, %s55
      %p64 = scmp.eq.s32.totalorder %s21, 1
      %p65 = por %p63, %p64
      %p66 = scmp.ne.s32.totalorder %s55, %s56
      %p67 = scmp.eq.s32.totalorder %s21, 0
      %p68 = por %p66, %p67
      %p69 = scmp.ne.s32.totalorder %s55, %s56
      %p70 = scmp.eq.s32.totalorder %s22, 1
      %p71 = por %p69, %p70
      %p73 = scmp.ne.s32.totalorder %s56, %s72
      %p74 = scmp.eq.s32.totalorder %s22, 0
      %p75 = por %p73, %p74
      %s76 = ssub.s32 %s16, %s23
      %p77 = scmp.eq.s32.totalorder %s76, 0
      %s79 = sadd.s32 %s78, 1
      %s80 = scalar_select %p77, %s78, %s79
      %p83 = pneg %p77
      %p84 = scmp.eq.s32.totalorder %s16, 1
      %p85 = por %p83, %p84
      %p86 = scmp.ne.s32.totalorder %s78, %s81
      %p87 = scmp.eq.s32.totalorder %s16, 0
      %p88 = por %p86, %p87
      %p89 = scmp.ne.s32.totalorder %s78, %s81
      %p90 = scmp.eq.s32.totalorder %s21, 1
      %p91 = por %p89, %p90
      %p92 = scmp.ne.s32.totalorder %s81, %s82
      %p93 = scmp.eq.s32.totalorder %s21, 0
      %p94 = por %p92, %p93
      %p95 = scmp.ne.s32.totalorder %s81, %s82
      %p96 = scmp.eq.s32.totalorder %s22, 1
      %p97 = por %p95, %p96
      %p99 = scmp.ne.s32.totalorder %s82, %s98
      %p100 = scmp.eq.s32.totalorder %s22, 0
      %p101 = por %p99, %p100
      %s102 = ssub.s32 %s16, %s23
      %p103 = scmp.eq.s32.totalorder %s102, 0
      %s105 = sadd.s32 %s104, 1
      %s106 = scalar_select %p103, %s104, %s105
      %p109 = pneg %p103
      %p110 = scmp.eq.s32.totalorder %s16, 1
      %p111 = por %p109, %p110
      %p112 = scmp.ne.s32.totalorder %s104, %s107
      %p113 = scmp.eq.s32.totalorder %s16, 0
      %p114 = por %p112, %p113
      %p115 = scmp.ne.s32.totalorder %s104, %s107
      %p116 = scmp.eq.s32.totalorder %s21, 1
      %p117 = por %p115, %p116
      %p118 = scmp.ne.s32.totalorder %s107, %s108
      %p119 = scmp.eq.s32.totalorder %s21, 0
      %p120 = por %p118, %p119
      %p121 = scmp.ne.s32.totalorder %s107, %s108
      %p122 = scmp.eq.s32.totalorder %s22, 1
      %p123 = por %p121, %p122
      %p125 = scmp.ne.s32.totalorder %s108, %s124
      %p126 = scmp.eq.s32.totalorder %s22, 0
      %p127 = por %p125, %p126
      %s128 = ssub.s32 %s16, %s23
      %p129 = scmp.eq.s32.totalorder %s128, 0
      %s131 = sadd.s32 %s130, 1
      %s132 = scalar_select %p129, %s130, %s131
      %p135 = pneg %p129
      %p136 = scmp.eq.s32.totalorder %s16, 1
      %p137 = por %p135, %p136
      %p138 = scmp.ne.s32.totalorder %s130, %s133
      %p139 = scmp.eq.s32.totalorder %s16, 0
      %p140 = por %p138, %p139
      %p141 = scmp.ne.s32.totalorder %s130, %s133
      %p142 = scmp.eq.s32.totalorder %s21, 1
      %p143 = por %p141, %p142
      %p144 = scmp.ne.s32.totalorder %s133, %s134
      %p145 = scmp.eq.s32.totalorder %s21, 0
      %p146 = por %p144, %p145
      %p147 = scmp.ne.s32.totalorder %s133, %s134
      %p148 = scmp.eq.s32.totalorder %s22, 1
      %p149 = por %p147, %p148
      %p151 = scmp.ne.s32.totalorder %s134, %s150
      %p152 = scmp.eq.s32.totalorder %s22, 0
      %p153 = por %p151, %p152
      %s155 = sadd.s32 %s154, 1
      %p158 = scmp.eq.s32.totalorder %s16, 1
      %p159 = scmp.ne.s32.totalorder %s154, %s156
      %p160 = scmp.eq.s32.totalorder %s16, 0
      %p161 = por %p159, %p160
      %p162 = scmp.ne.s32.totalorder %s154, %s156
      %p163 = scmp.eq.s32.totalorder %s21, 1
      %p164 = por %p162, %p163
      %p165 = scmp.ne.s32.totalorder %s156, %s157
      %p166 = scmp.eq.s32.totalorder %s21, 0
      %p167 = por %p165, %p166
      %p168 = scmp.ne.s32.totalorder %s156, %s157
      %p169 = scmp.eq.s32.totalorder %s22, 1
      %p170 = por %p168, %p169
      %p172 = scmp.ne.s32.totalorder %s157, %s171
      %p173 = scmp.eq.s32.totalorder %s22, 0
      %p174 = por %p172, %p173
      %s176 = sadd.s32 %s175, 1
      %p179 = scmp.eq.s32.totalorder %s16, 1
      %p180 = scmp.ne.s32.totalorder %s175, %s177
      %p181 = scmp.eq.s32.totalorder %s16, 0
      %p182 = por %p180, %p181
      %p183 = scmp.ne.s32.totalorder %s175, %s177
      %p184 = scmp.eq.s32.totalorder %s21, 1
      %p185 = por %p183, %p184
      %p186 = scmp.ne.s32.totalorder %s177, %s178
      %p187 = scmp.eq.s32.totalorder %s21, 0
      %p188 = por %p186, %p187
      %p189 = scmp.ne.s32.totalorder %s177, %s178
      %p190 = scmp.eq.s32.totalorder %s22, 1
      %p191 = por %p189, %p190
      %p193 = scmp.ne.s32.totalorder %s178, %s192
      %p194 = scmp.eq.s32.totalorder %s22, 0
      %p195 = por %p193, %p194
      %s196 = ssub.s32 %s16, %s23
      %p197 = scmp.eq.s32.totalorder %s196, 0
      %s199 = sadd.s32 %s198, 1
      %s200 = scalar_select %p197, %s198, %s199
      %p203 = pneg %p197
      %p204 = scmp.eq.s32.totalorder %s16, 1
      %p205 = por %p203, %p204
      %p206 = scmp.ne.s32.totalorder %s198, %s201
      %p207 = scmp.eq.s32.totalorder %s16, 0
      %p208 = por %p206, %p207
      %p209 = scmp.ne.s32.totalorder %s198, %s201
      %p210 = scmp.eq.s32.totalorder %s21, 1
      %p211 = por %p209, %p210
      %p212 = scmp.ne.s32.totalorder %s201, %s202
      %p213 = scmp.eq.s32.totalorder %s21, 0
      %p214 = por %p212, %p213
      %p215 = scmp.ne.s32.totalorder %s201, %s202
      %p216 = scmp.eq.s32.totalorder %s22, 1
      %p217 = por %p215, %p216
      %p219 = scmp.ne.s32.totalorder %s202, %s218
      %p220 = scmp.eq.s32.totalorder %s22, 0
      %p221 = por %p219, %p220
      %p222 = scmp.le.s32.totalorder 1, %s16
      %p223 = scmp.lt.s32.totalorder %s16, 3
      %p224 = pnand %p222, %p223
      %p225 = pneg %p224
      // Predicated region
      $region9: #{tpu_custom_call.1} parent=5 // pred_check
        _
      $region10: #{tpu_custom_call.1} parent=5 // pred_check_branch
        %227 = sbr.rel (%p224) target = $region12
      $region11: #{tpu_custom_call.1} parent=5 // pred_region
        %s228 = ssub.s32 %s16, 1
        // Predicated region
        $region13: #{tpu_custom_call.1} parent=11 // pred_check
          %p229 = pneg %p167
        $region14: #{tpu_custom_call.1} parent=11 // pred_check_branch
          %231 = sbr.rel (%p229) target = $region16
        $region15: #{tpu_custom_call.1} parent=11 // pred_region
          _
        $region16: #{tpu_custom_call.1} parent=11 // pred_fallthru
          _
        // Predicated region
        $region17: #{tpu_custom_call.1} parent=11 // pred_check
          %p232 = pneg %p188
        $region18: #{tpu_custom_call.1} parent=11 // pred_check_branch
          %234 = sbr.rel (%p232) target = $region20
        $region19: #{tpu_custom_call.1} parent=11 // pred_region
          _
        $region20: #{tpu_custom_call.1} parent=11 // pred_fallthru
          _
      $region12: #{tpu_custom_call.1} parent=5 // pred_fallthru
        _
      %p235 = scmp.lt.s32.totalorder %s16, 2
      // Predicated region
      $region21: #{tpu_custom_call.1} parent=5 // pred_check
        %p236 = pneg %p235
      $region22: #{tpu_custom_call.1} parent=5 // pred_check_branch
        %238 = sbr.rel (%p236) target = $region24
      $region23: #{tpu_custom_call.1} parent=5 // pred_region
        // Predicated region
        $region25: #{tpu_custom_call.1} parent=23 // pred_check
          %p239 = pneg %p36
        $region26: #{tpu_custom_call.1} parent=23 // pred_check_branch
          %241 = sbr.rel (%p239) target = $region28
        $region27: #{tpu_custom_call.1} parent=23 // pred_region
          %p242 = scmp.lt.s32.totalorder %s16, 1
          %s243 = scalar_select %p242, %s16, 1
          %s244 = smul.addr %s243, 8
          %s245 = smul.addr %s244, 8
          %s246 = scalar_lea.vmem %s0, %s245
        $region28: #{tpu_custom_call.1} parent=23 // pred_fallthru
          _
        // Predicated region
        $region29: #{tpu_custom_call.1} parent=23 // pred_check
          %p247 = pneg %p62
        $region30: #{tpu_custom_call.1} parent=23 // pred_check_branch
          %249 = sbr.rel (%p247) target = $region32
        $region31: #{tpu_custom_call.1} parent=23 // pred_region
          %p250 = scmp.lt.s32.totalorder %s16, 1
          %s251 = scalar_select %p250, %s16, 1
          %s252 = scalar_lea.vmem %s1, %s251
        $region32: #{tpu_custom_call.1} parent=23 // pred_fallthru
          _
        // Predicated region
        $region33: #{tpu_custom_call.1} parent=23 // pred_check
          %p253 = pneg %p88
        $region34: #{tpu_custom_call.1} parent=23 // pred_check_branch
          %255 = sbr.rel (%p253) target = $region36
        $region35: #{tpu_custom_call.1} parent=23 // pred_region
          %p256 = scmp.lt.s32.totalorder %s16, 1
          %s257 = scalar_select %p256, %s16, 1
          %s258 = smul.addr %s257, 8
          %s259 = smul.addr %s258, 8
          %s260 = scalar_lea.vmem %s2, %s259
        $region36: #{tpu_custom_call.1} parent=23 // pred_fallthru
          _
        // Predicated region
        $region37: #{tpu_custom_call.1} parent=23 // pred_check
          %p261 = pneg %p114
        $region38: #{tpu_custom_call.1} parent=23 // pred_check_branch
          %263 = sbr.rel (%p261) target = $region40
        $region39: #{tpu_custom_call.1} parent=23 // pred_region
          %p264 = scmp.lt.s32.totalorder %s16, 1
          %s265 = scalar_select %p264, %s16, 1
          %s266 = smul.addr %s265, 8
          %s267 = smul.addr %s266, 8
          %s268 = scalar_lea.vmem %s3, %s267
        $region40: #{tpu_custom_call.1} parent=23 // pred_fallthru
          _
        // Predicated region
        $region41: #{tpu_custom_call.1} parent=23 // pred_check
          %p269 = pneg %p140
        $region42: #{tpu_custom_call.1} parent=23 // pred_check_branch
          %271 = sbr.rel (%p269) target = $region44
        $region43: #{tpu_custom_call.1} parent=23 // pred_region
          %p272 = scmp.lt.s32.totalorder %s16, 1
          %s273 = scalar_select %p272, %s16, 1
          %s274 = smul.addr %s273, 4
          %s275 = scalar_lea.vmem %s4, %s274
        $region44: #{tpu_custom_call.1} parent=23 // pred_fallthru
          _
      $region24: #{tpu_custom_call.1} parent=5 // pred_fallthru
        _
      %p276 = scmp.le.s32.totalorder 1, %s16
      %p277 = scmp.lt.s32.totalorder %s16, 3
      %p278 = pnand %p276, %p277
      %p279 = pneg %p278
      // Predicated region
      $region45: #{tpu_custom_call.1} parent=5 // pred_check
        _
      $region46: #{tpu_custom_call.1} parent=5 // pred_check_branch
        %281 = sbr.rel (%p278) target = $region48
      $region47: #{tpu_custom_call.1} parent=5 // pred_region
        %s282 = ssub.s32 %s16, 1
        %p283 = scmp.lt.s32.totalorder %s21, 1
        %s284 = scalar_select %p283, %s21, 1
        %s285 = smul.addr %s284, 8
        %s286 = smul.addr %s285, 8
        %s287 = scalar_lea.vmem %s0, %s286
        %p288 = pneg %p42
        %p289 = pneg %p39
        %p290 = scmp.lt.s32.totalorder %s21, 1
        %s291 = scalar_select %p290, %s21, 1
        %s292 = scalar_lea.vmem %s1, %s291
        %p293 = pneg %p68
        %p294 = pneg %p65
        %p295 = scmp.lt.s32.totalorder %s21, 1
        %s296 = scalar_select %p295, %s21, 1
        %s297 = smul.addr %s296, 8
        %s298 = smul.addr %s297, 8
        %s299 = scalar_lea.vmem %s2, %s298
        %p300 = pneg %p94
        %p301 = pneg %p91
        %p302 = scmp.lt.s32.totalorder %s21, 1
        %s303 = scalar_select %p302, %s21, 1
        %s304 = smul.addr %s303, 8
        %s305 = smul.addr %s304, 8
        %s306 = scalar_lea.vmem %s3, %s305
        %p307 = pneg %p120
        %p308 = pneg %p117
        %p309 = scmp.lt.s32.totalorder %s21, 1
        %s310 = scalar_select %p309, %s21, 1
        %s311 = smul.addr %s310, 4
        %s312 = scalar_lea.vmem %s4, %s311
        %p313 = pneg %p146
        %p314 = pneg %p143
        %p315 = pneg %p167
        %p316 = pneg %p164
        %p317 = pneg %p188
        %p318 = pneg %p185
        %p319 = pneg %p214
        %p320 = pneg %p211
        %s321 = sand.u32 %s201, 1
        %s322 = scalar_lea.sflag [#allocation3], %s321
        %s323 = sand.u32 %s201, 1
        %s324 = scalar_lea.vmem [#allocation2], %s323
        %p325 = scmp.lt.s32.totalorder %s21, 1
        %s326 = scalar_select %p325, %s21, 1
        %s327 = smul.addr %s326, 8
        %s328 = smul.addr %s327, 8
        %s329 = scalar_lea.vmem %s0, %s328
        %p330 = scmp.lt.s32.totalorder %s21, 1
        %s331 = scalar_select %p330, %s21, 1
        %s332 = scalar_lea.vmem %s1, %s331
        %p333 = scmp.lt.s32.totalorder %s21, 1
        %s334 = scalar_select %p333, %s21, 1
        %s335 = smul.addr %s334, 8
        %s336 = smul.addr %s335, 8
        %s337 = scalar_lea.vmem %s2, %s336
        %p338 = scmp.lt.s32.totalorder %s21, 1
        %s339 = scalar_select %p338, %s21, 1
        %s340 = smul.addr %s339, 8
        %s341 = smul.addr %s340, 8
        %s342 = scalar_lea.vmem %s3, %s341
        %p343 = scmp.lt.s32.totalorder %s21, 1
        %s344 = scalar_select %p343, %s21, 1
        %s345 = smul.addr %s344, 4
        %s346 = scalar_lea.vmem %s4, %s345
        %v347 = vld [vmem:[%s329] sm:$0xff]
        %v348 = vld [vmem:[%s329 + $0x8] sm:$0xff]
        %v349 = vld [vmem:[%s329 + $0x10] sm:$0xff]
        %v350 = vld [vmem:[%s329 + $0x18] sm:$0xff]
        %v351 = vld [vmem:[%s329 + $0x20] sm:$0xff]
        %v352 = vld [vmem:[%s329 + $0x28] sm:$0xff]
        %v353 = vld [vmem:[%s329 + $0x30] sm:$0xff]
        %v354 = vld [vmem:[%s329 + $0x38] sm:$0xff]
        %v355 = vld [vmem:[%s332] sm:$0x1]
        %v356 = vld [vmem:[%s337] sm:$0xff]
        %v357 = vld [vmem:[%s337 + $0x8] sm:$0xff]
        %v358 = vld [vmem:[%s337 + $0x10] sm:$0xff]
        %v359 = vld [vmem:[%s337 + $0x18] sm:$0xff]
        %v360 = vld [vmem:[%s337 + $0x20] sm:$0xff]
        %v361 = vld [vmem:[%s337 + $0x28] sm:$0xff]
        %v362 = vld [vmem:[%s337 + $0x30] sm:$0xff]
        %v363 = vld [vmem:[%s337 + $0x38] sm:$0xff]
        %v364 = vld [vmem:[%s342] sm:$0xff]
        %v365 = vld [vmem:[%s342 + $0x8] sm:$0xff]
        %v366 = vld [vmem:[%s342 + $0x10] sm:$0xff]
        %v367 = vld [vmem:[%s342 + $0x18] sm:$0xff]
        %v368 = vld [vmem:[%s342 + $0x20] sm:$0xff]
        %v369 = vld [vmem:[%s342 + $0x28] sm:$0xff]
        %v370 = vld [vmem:[%s342 + $0x30] sm:$0xff]
        %v371 = vld [vmem:[%s342 + $0x38] sm:$0xff]
        %v372 = vld [vmem:[%s346] sm:$0x1]
        %v373 = vld [vmem:[%s346 + $0x1] sm:$0x1]
        %v374 = vld [vmem:[%s346 + $0x2] sm:$0x1]
        %v375 = vld [vmem:[%s346 + $0x3] sm:$0x1]
        %v376 = vld [vmem:[%s5] sm:$0xff]
        %v377 = vld [vmem:[%s5 + $0x8] sm:$0xff]
        %v378 = vld [vmem:[%s5 + $0x10] sm:$0xff]
        %v379 = vld [vmem:[%s5 + $0x18] sm:$0xff]
        %v380 = vld [vmem:[%s5 + $0x20] sm:$0xff]
        %v381 = vld [vmem:[%s5 + $0x28] sm:$0xff]
        %v382 = vld [vmem:[%s5 + $0x30] sm:$0xff]
        %v383 = vld [vmem:[%s5 + $0x38] sm:$0xff]
        %v384 = vld [vmem:[%s5 + $0x40] sm:$0xff]
        %v385 = vld [vmem:[%s5 + $0x48] sm:$0xff]
        %v386 = vld [vmem:[%s5 + $0x50] sm:$0xff]
        %v387 = vld [vmem:[%s5 + $0x58] sm:$0xff]
        %v388 = vld [vmem:[%s5 + $0x60] sm:$0xff]
        %v389 = vld [vmem:[%s5 + $0x68] sm:$0xff]
        %v390 = vld [vmem:[%s5 + $0x70] sm:$0xff]
        %v391 = vld [vmem:[%s5 + $0x78] sm:$0xff]
        %v392 = vld [vmem:[%s5 + $0x80] sm:$0xff]
        %v393 = vld [vmem:[%s5 + $0x88] sm:$0xff]
        %v394 = vld [vmem:[%s5 + $0x90] sm:$0xff]
        %v395 = vld [vmem:[%s5 + $0x98] sm:$0xff]
        %v396 = vld [vmem:[%s5 + $0xa0] sm:$0xff]
        %v397 = vld [vmem:[%s5 + $0xa8] sm:$0xff]
        %v398 = vld [vmem:[%s5 + $0xb0] sm:$0xff]
        %v399 = vld [vmem:[%s5 + $0xb8] sm:$0xff]
        %v400 = vld [vmem:[%s5 + $0xc0] sm:$0xff]
        %v401 = vld [vmem:[%s5 + $0xc8] sm:$0xff]
        %v402 = vld [vmem:[%s5 + $0xd0] sm:$0xff]
        %v403 = vld [vmem:[%s5 + $0xd8] sm:$0xff]
        %v404 = vld [vmem:[%s5 + $0xe0] sm:$0xff]
        %v405 = vld [vmem:[%s5 + $0xe8] sm:$0xff]
        %v406 = vld [vmem:[%s5 + $0xf0] sm:$0xff]
        %v407 = vld [vmem:[%s5 + $0xf8] sm:$0xff]
        %v408 = vld [vmem:[%s5 + $0x100] sm:$0xff]
        %v409 = vld [vmem:[%s5 + $0x108] sm:$0xff]
        %v410 = vld [vmem:[%s5 + $0x110] sm:$0xff]
        %v411 = vld [vmem:[%s5 + $0x118] sm:$0xff]
        %v412 = vld [vmem:[%s5 + $0x120] sm:$0xff]
        %v413 = vld [vmem:[%s5 + $0x128] sm:$0xff]
        %v414 = vld [vmem:[%s5 + $0x130] sm:$0xff]
        %v415 = vld [vmem:[%s5 + $0x138] sm:$0xff]
        %v416 = vld [vmem:[%s5 + $0x140] sm:$0xff]
        %v417 = vld [vmem:[%s6] sm:$0x1]
        %v418 = vld [vmem:[%s6 + $0x1] sm:$0x1]
        %v419 = vld [vmem:[%s6 + $0x2] sm:$0x1]
        %v420 = vld [vmem:[%s6 + $0x3] sm:$0x1]
        %v421 = vld [vmem:[%s6 + $0x4] sm:$0x1]
        %v422 = vld [vmem:[%s6 + $0x5] sm:$0x1]
        %v423 = vld [vmem:[%s6 + $0x6] sm:$0x1]
        %v424 = vld [vmem:[%s6 + $0x7] sm:$0x1]
        %v425 = vld [vmem:[%s6 + $0x8] sm:$0x1]
        %v426 = vld [vmem:[%s6 + $0x9] sm:$0x1]
        %v427 = vld [vmem:[%s6 + $0xa] sm:$0x1]
        %v428 = vld [vmem:[%s6 + $0xb] sm:$0x1]
        %v429 = vld [vmem:[%s6 + $0xc] sm:$0x1]
        %vm430 = vcmask 261120
        %v432 = vsel %vm430, %v355, 0
        %434 = vmatprep.subr.mxu0 0.0
        %435 = vmatpush1.msra.mxu0 %v377
        %436 = vmatprep.subr.mxu0 0.0
        %437 = vmatpush1.msra.mxu0 %v378
        %438 = vmatprep.subr.mxu0 0.0
        %439 = vmatpush1.msra.mxu0 %v379
        %440 = vmatprep.subr.mxu0 0.0
        %441 = vmatpush1.msra.mxu0 %v380
        %442 = vmatprep.subr.mxu0 0.0
        %443 = vmatpush1.msra.mxu0 0.0
        %444 = vmatprep.subr.mxu0 0.0
        %445 = vmatpush1.msra.mxu0 0.0
        %446 = vmatprep.subr.mxu0 0.0
        %447 = vmatpush1.msra.mxu0 0.0
        %448 = vmatprep.subr.mxu0 0.0
        %449 = vmatpush1.msra.mxu0 0.0
        %450 = vmatprep.subr.mxu0 0.0
        %451 = vmatpush1.msra.mxu0 0.0
        %452 = vmatprep.subr.mxu0 0.0
        %453 = vmatpush1.msra.mxu0 0.0
        %454 = vmatprep.subr.mxu0 0.0
        %455 = vmatpush1.msra.mxu0 0.0
        %456 = vmatprep.subr.mxu0 0.0
        %457 = vmatpush1.msra.mxu0 0.0
        %458 = vmatprep.subr.mxu0 0.0
        %459 = vmatpush1.msra.mxu0 0.0
        %460 = vmatprep.subr.mxu0 0.0
        %461 = vmatpush1.msra.mxu0 0.0
        %462 = vmatprep.subr.mxu0 0.0
        %463 = vmatpush1.msra.mxu0 0.0
        %464 = vmatprep.subr.mxu0 0.0
        %465 = vmatpush1.msra.mxu0 0.0
        %466 = vmatprep.subr.mxu0 0.0
        %467 = vmatpush1.msra.mxu0 0.0
        %468 = vmatprep.subr.mxu0 0.0
        %469 = vmatpush1.msra.mxu0 0.0
        %470 = vmatprep.subr.mxu0 0.0
        %471 = vmatpush1.msra.mxu0 0.0
        %472 = vmatprep.subr.mxu0 0.0
        %473 = vmatpush1.msra.mxu0 0.0
        %474 = vmatprep.subr.mxu0 0.0
        %475 = vmatpush1.msra.mxu0 0.0
        %476 = vmatprep.subr.mxu0 0.0
        %477 = vmatpush1.msra.mxu0 0.0
        %478 = vmatprep.subr.mxu0 0.0
        %479 = vmatpush1.msra.mxu0 0.0
        %480 = vmatprep.subr.mxu0 0.0
        %481 = vmatpush1.msra.mxu0 0.0
        %482 = vmatprep.subr.mxu0 0.0
        %483 = vmatpush1.msra.mxu0 0.0
        %484 = vmatprep.subr.mxu0 0.0
        %485 = vmatpush1.msra.mxu0 0.0
        %486 = vmatprep.subr.mxu0 0.0
        %487 = vmatpush1.msra.mxu0 0.0
        %488 = vmatprep.subr.mxu0 0.0
        %489 = vmatpush1.msra.mxu0 0.0
        %490 = vmatprep.subr.mxu0 0.0
        %491 = vmatpush1.msra.mxu0 0.0
        %492 = vmatprep.subr.mxu0 0.0
        %493 = vmatpush1.msra.mxu0 0.0
        %494 = vmatprep.subr.mxu0 0.0
        %495 = vmatpush1.msra.mxu0 0.0
        %496 = vmatprep.subr.mxu0 0.0
        %497 = vmatpush1.msra.mxu0 0.0
        %498 = vmatprep.mubr.f32.mxu0 0.0
        %499 = vmatmul.mubr.f32.gmra.mrb[0].mxu0 %v432
        %v500 = vpop.f32.mrb[0].mxu0
        %v501 = vadd.f32 0.0, %v500
        %v502 = vpop.f32.mrb[0].mxu0
        %503 = vdwg.mxu0
        %v504 = vlaneseq
        %v505 = vshrl.u32 %v504, 7
        %v506 = vsub.s32 0, %v505
        %v507 = vrot.slane %v501, %v506
        %vm508 = vcmask 64512
        %v510 = vsel %vm508, %v347, 0
        %v513 = vsel %vm508, %v348, 0
        %v516 = vsel %vm508, %v349, 0
        %v519 = vsel %vm508, %v350, 0
        %v522 = vsel %vm508, %v351, 0
        %v525 = vsel %vm508, %v352, 0
        %v528 = vsel %vm508, %v353, 0
        %v531 = vsel %vm508, %v354, 0
        %533 = vmatprep.subr.mxu0 0.0
        %534 = vmatpush1.msra.mxu0 %v376
        %535 = vmatprep.subr.mxu0 0.0
        %536 = vmatpush1.msra.mxu0 0.0
        %537 = vmatprep.subr.mxu0 0.0
        %538 = vmatpush1.msra.mxu0 0.0
        %539 = vmatprep.subr.mxu0 0.0
        %540 = vmatpush1.msra.mxu0 0.0
        %541 = vmatprep.subr.mxu0 0.0
        %542 = vmatpush1.msra.mxu0 0.0
        %543 = vmatprep.subr.mxu0 0.0
        %544 = vmatpush1.msra.mxu0 0.0
        %545 = vmatprep.subr.mxu0 0.0
        %546 = vmatpush1.msra.mxu0 0.0
        %547 = vmatprep.subr.mxu0 0.0
        %548 = vmatpush1.msra.mxu0 0.0
        %549 = vmatprep.subr.mxu0 0.0
        %550 = vmatpush1.msra.mxu0 0.0
        %551 = vmatprep.subr.mxu0 0.0
        %552 = vmatpush1.msra.mxu0 0.0
        %553 = vmatprep.subr.mxu0 0.0
        %554 = vmatpush1.msra.mxu0 0.0
        %555 = vmatprep.subr.mxu0 0.0
        %556 = vmatpush1.msra.mxu0 0.0
        %557 = vmatprep.subr.mxu0 0.0
        %558 = vmatpush1.msra.mxu0 0.0
        %559 = vmatprep.subr.mxu0 0.0
        %560 = vmatpush1.msra.mxu0 0.0
        %561 = vmatprep.subr.mxu0 0.0
        %562 = vmatpush1.msra.mxu0 0.0
        %563 = vmatprep.subr.mxu0 0.0
        %564 = vmatpush1.msra.mxu0 0.0
        %565 = vmatprep.subr.mxu0 0.0
        %566 = vmatpush1.msra.mxu0 0.0
        %567 = vmatprep.subr.mxu0 0.0
        %568 = vmatpush1.msra.mxu0 0.0
        %569 = vmatprep.subr.mxu0 0.0
        %570 = vmatpush1.msra.mxu0 0.0
        %571 = vmatprep.subr.mxu0 0.0
        %572 = vmatpush1.msra.mxu0 0.0
        %573 = vmatprep.subr.mxu0 0.0
        %574 = vmatpush1.msra.mxu0 0.0
        %575 = vmatprep.subr.mxu0 0.0
        %576 = vmatpush1.msra.mxu0 0.0
        %577 = vmatprep.subr.mxu0 0.0
        %578 = vmatpush1.msra.mxu0 0.0
        %579 = vmatprep.subr.mxu0 0.0
        %580 = vmatpush1.msra.mxu0 0.0
        %581 = vmatprep.subr.mxu0 0.0
        %582 = vmatpush1.msra.mxu0 0.0
        %583 = vmatprep.subr.mxu0 0.0
        %584 = vmatpush1.msra.mxu0 0.0
        %585 = vmatprep.subr.mxu0 0.0
        %586 = vmatpush1.msra.mxu0 0.0
        %587 = vmatprep.subr.mxu0 0.0
        %588 = vmatpush1.msra.mxu0 0.0
        %589 = vmatprep.subr.mxu0 0.0
        %590 = vmatpush1.msra.mxu0 0.0
        %591 = vmatprep.subr.mxu0 0.0
        %592 = vmatpush1.msra.mxu0 0.0
        %593 = vmatprep.subr.mxu0 0.0
        %594 = vmatpush1.msra.mxu0 0.0
        %595 = vmatprep.subr.mxu0 0.0
        %596 = vmatpush1.msra.mxu0 0.0
        %597 = vmatprep.mubr.f32.mxu0 0.0
        %598 = vmatmul.mubr.f32.gmra.mrb[0].mxu0 %v510
        %v599 = vpop.f32.mrb[0].mxu0
        %v600 = vadd.f32 %v507, %v599
        %v601 = vpop.f32.mrb[0].mxu0
        %602 = vmatprep.mubr.f32.mxu0 0.0
        %603 = vmatmul.mubr.f32.gmra.mrb[0].mxu0 %v513
        %v604 = vpop.f32.mrb[0].mxu0
        %v605 = vadd.f32 %v507, %v604
        %v606 = vpop.f32.mrb[0].mxu0
        %607 = vmatprep.mubr.f32.mxu0 0.0
        %608 = vmatmul.mubr.f32.gmra.mrb[0].mxu0 %v516
        %v609 = vpop.f32.mrb[0].mxu0
        %v610 = vadd.f32 %v507, %v609
        %v611 = vpop.f32.mrb[0].mxu0
        %612 = vmatprep.mubr.f32.mxu0 0.0
        %613 = vmatmul.mubr.f32.gmra.mrb[0].mxu0 %v519
        %v614 = vpop.f32.mrb[0].mxu0
        %v615 = vadd.f32 %v507, %v614
        %v616 = vpop.f32.mrb[0].mxu0
        %617 = vmatprep.mubr.f32.mxu0 0.0
        %618 = vmatmul.mubr.f32.gmra.mrb[0].mxu0 %v522
        %v619 = vpop.f32.mrb[0].mxu0
        %v620 = vadd.f32 %v507, %v619
        %v621 = vpop.f32.mrb[0].mxu0
        %622 = vmatprep.mubr.f32.mxu0 0.0
        %623 = vmatmul.mubr.f32.gmra.mrb[0].mxu0 %v525
        %v624 = vpop.f32.mrb[0].mxu0
        %v625 = vadd.f32 %v507, %v624
        %v626 = vpop.f32.mrb[0].mxu0
        %627 = vmatprep.mubr.f32.mxu0 0.0
        %628 = vmatmul.mubr.f32.gmra.mrb[0].mxu0 %v528
        %v629 = vpop.f32.mrb[0].mxu0
        %v630 = vadd.f32 %v507, %v629
        %v631 = vpop.f32.mrb[0].mxu0
        %632 = vmatprep.mubr.f32.mxu0 0.0
        %633 = vmatmul.mubr.f32.gmra.mrb[0].mxu0 %v531
        %v634 = vpop.f32.mrb[0].mxu0
        %v635 = vadd.f32 %v507, %v634
        %v636 = vpop.f32.mrb[0].mxu0
        %637 = vdwg.mxu0
        %v638 = vlaneseq
        %v639 = vshrl.u32 %v638, 7
        %v640 = vsub.s32 0, %v639
        %v641 = vrot.slane %v417, %v640
        %v642 = vadd.f32 %v600, %v641
        %v643 = vadd.f32 %v605, %v641
        %v644 = vadd.f32 %v610, %v641
        %v645 = vadd.f32 %v615, %v641
        %v646 = vadd.f32 %v620, %v641
        %v647 = vadd.f32 %v625, %v641
        %v648 = vadd.f32 %v630, %v641
        %v649 = vadd.f32 %v635, %v641
        %v650 = vsel %vm430, %v642, 0.0
        %651 = vadd.xlane.f32.xlu0 %v650
        %v652 = vpop.xlane.xlu0 %651
        %v653 = vsel %vm430, %v643, 0.0
        %654 = vadd.xlane.f32.xlu0 %v653
        %v655 = vpop.xlane.xlu0 %654
        %v656 = vsel %vm430, %v644, 0.0
        %657 = vadd.xlane.f32.xlu0 %v656
        %v658 = vpop.xlane.xlu0 %657
        %v659 = vsel %vm430, %v645, 0.0
        %660 = vadd.xlane.f32.xlu0 %v659
        %v661 = vpop.xlane.xlu0 %660
        %v662 = vsel %vm430, %v646, 0.0
        %663 = vadd.xlane.f32.xlu0 %v662
        %v664 = vpop.xlane.xlu0 %663
        %v665 = vsel %vm430, %v647, 0.0
        %666 = vadd.xlane.f32.xlu0 %v665
        %v667 = vpop.xlane.xlu0 %666
        %v668 = vsel %vm430, %v648, 0.0
        %669 = vadd.xlane.f32.xlu0 %v668
        %v670 = vpop.xlane.xlu0 %669
        %v671 = vsel %vm430, %v649, 0.0
        %672 = vadd.xlane.f32.xlu0 %v671
        %v673 = vpop.xlane.xlu0 %672
        %v674 = vrcp.pop 32.0
        %v675 = vmul.f32 %v652, %v674
        %v676 = vmul.f32 %v655, %v674
        %v677 = vmul.f32 %v658, %v674
        %v678 = vmul.f32 %v661, %v674
        %v679 = vmul.f32 %v664, %v674
        %v680 = vmul.f32 %v667, %v674
        %v681 = vmul.f32 %v670, %v674
        %v682 = vmul.f32 %v673, %v674
        %v683 = vsub.f32 %v642, %v675
        %v684 = vsub.f32 %v643, %v676
        %v685 = vsub.f32 %v644, %v677
        %v686 = vsub.f32 %v645, %v678
        %v687 = vsub.f32 %v646, %v679
        %v688 = vsub.f32 %v647, %v680
        %v689 = vsub.f32 %v648, %v681
        %v690 = vsub.f32 %v649, %v682
        %v691 = vmul.f32 %v683, %v683
        %v692 = vmul.f32 %v684, %v684
        %v693 = vmul.f32 %v685, %v685
        %v694 = vmul.f32 %v686, %v686
        %v695 = vmul.f32 %v687, %v687
        %v696 = vmul.f32 %v688, %v688
        %v697 = vmul.f32 %v689, %v689
        %v698 = vmul.f32 %v690, %v690
        %v699 = vsel %vm430, %v691, 0.0
        %700 = vadd.xlane.f32.xlu0 %v699
        %v701 = vpop.xlane.xlu0 %700
        %v702 = vsel %vm430, %v692, 0.0
        %703 = vadd.xlane.f32.xlu0 %v702
        %v704 = vpop.xlane.xlu0 %703
        %v705 = vsel %vm430, %v693, 0.0
        %706 = vadd.xlane.f32.xlu0 %v705
        %v707 = vpop.xlane.xlu0 %706
        %v708 = vsel %vm430, %v694, 0.0
        %709 = vadd.xlane.f32.xlu0 %v708
        %v710 = vpop.xlane.xlu0 %709
        %v711 = vsel %vm430, %v695, 0.0
        %712 = vadd.xlane.f32.xlu0 %v711
        %v713 = vpop.xlane.xlu0 %712
        %v714 = vsel %vm430, %v696, 0.0
        %715 = vadd.xlane.f32.xlu0 %v714
        %v716 = vpop.xlane.xlu0 %715
        %v717 = vsel %vm430, %v697, 0.0
        %718 = vadd.xlane.f32.xlu0 %v717
        %v719 = vpop.xlane.xlu0 %718
        %v720 = vsel %vm430, %v698, 0.0
        %721 = vadd.xlane.f32.xlu0 %v720
        %v722 = vpop.xlane.xlu0 %721
        %v723 = vmul.f32 %v701, %v674
        %v724 = vmul.f32 %v704, %v674
        %v725 = vmul.f32 %v707, %v674
        %v726 = vmul.f32 %v710, %v674
        %v727 = vmul.f32 %v713, %v674
        %v728 = vmul.f32 %v716, %v674
        %v729 = vmul.f32 %v719, %v674
        %v730 = vmul.f32 %v722, %v674
        %v731 = vadd.f32 %v723, 1e-05
        %v732 = vadd.f32 %v724, 1e-05
        %v733 = vadd.f32 %v725, 1e-05
        %v734 = vadd.f32 %v726, 1e-05
        %v735 = vadd.f32 %v727, 1e-05
        %v736 = vadd.f32 %v728, 1e-05
        %v737 = vadd.f32 %v729, 1e-05
        %v738 = vadd.f32 %v730, 1e-05
        %v739 = vrsqrt.pop %v731
        %v740 = vrsqrt.pop %v732
        %v741 = vrsqrt.pop %v733
        %v742 = vrsqrt.pop %v734
        %v743 = vrsqrt.pop %v735
        %v744 = vrsqrt.pop %v736
        %v745 = vrsqrt.pop %v737
        %v746 = vrsqrt.pop %v738
        %v747 = vmul.f32 %v683, %v739
        %v748 = vmul.f32 %v684, %v740
        %v749 = vmul.f32 %v685, %v741
        %v750 = vmul.f32 %v686, %v742
        %v751 = vmul.f32 %v687, %v743
        %v752 = vmul.f32 %v688, %v744
        %v753 = vmul.f32 %v689, %v745
        %v754 = vmul.f32 %v690, %v746
        %v755 = vlaneseq
        %v756 = vshrl.u32 %v755, 7
        %v757 = vsub.s32 0, %v756
        %v758 = vrot.slane %v418, %v757
        %v759 = vmul.f32 %v747, %v758
        %v760 = vmul.f32 %v748, %v758
        %v761 = vmul.f32 %v749, %v758
        %v762 = vmul.f32 %v750, %v758
        %v763 = vmul.f32 %v751, %v758
        %v764 = vmul.f32 %v752, %v758
        %v765 = vmul.f32 %v753, %v758
        %v766 = vmul.f32 %v754, %v758
        %v767 = vlaneseq
        %v768 = vshrl.u32 %v767, 7
        %v769 = vsub.s32 0, %v768
        %v770 = vrot.slane %v419, %v769
        %v771 = vadd.f32 %v759, %v770
        %v772 = vadd.f32 %v760, %v770
        %v773 = vadd.f32 %v761, %v770
        %v774 = vadd.f32 %v762, %v770
        %v775 = vadd.f32 %v763, %v770
        %v776 = vadd.f32 %v764, %v770
        %v777 = vadd.f32 %v765, %v770
        %v778 = vadd.f32 %v766, %v770
        %v779 = vmax.f32 %v771, 0.0
        %v780 = vmax.f32 %v772, 0.0
        %v781 = vmax.f32 %v773, 0.0
        %v782 = vmax.f32 %v774, 0.0
        %v783 = vmax.f32 %v775, 0.0
        %v784 = vmax.f32 %v776, 0.0
        %v785 = vmax.f32 %v777, 0.0
        %v786 = vmax.f32 %v778, 0.0
        %v787 = vlaneseq
        %v788 = vshrl.u32 %v787, 7
        %v789 = vsub.s32 0, %v788
        %v790 = vrot.slane %v420, %v789
        %v792 = vsel %vm430, %v779, 0
        %v795 = vsel %vm430, %v780, 0
        %v798 = vsel %vm430, %v781, 0
        %v801 = vsel %vm430, %v782, 0
        %v804 = vsel %vm430, %v783, 0
        %v807 = vsel %vm430, %v784, 0
        %v810 = vsel %vm430, %v785, 0
        %v813 = vsel %vm430, %v786, 0
        %815 = vmatprep.subr.mxu0 0.0
        %816 = vmatpush1.msra.mxu0 %v381
        %817 = vmatprep.subr.mxu0 0.0
        %818 = vmatpush1.msra.mxu0 %v382
        %819 = vmatprep.subr.mxu0 0.0
        %820 = vmatpush1.msra.mxu0 %v383
        %821 = vmatprep.subr.mxu0 0.0
        %822 = vmatpush1.msra.mxu0 %v384
        %823 = vmatprep.subr.mxu0 0.0
        %824 = vmatpush1.msra.mxu0 0.0
        %825 = vmatprep.subr.mxu0 0.0
        %826 = vmatpush1.msra.mxu0 0.0
        %827 = vmatprep.subr.mxu0 0.0
        %828 = vmatpush1.msra.mxu0 0.0
        %829 = vmatprep.subr.mxu0 0.0
        %830 = vmatpush1.msra.mxu0 0.0
        %831 = vmatprep.subr.mxu0 0.0
        %832 = vmatpush1.msra.mxu0 0.0
        %833 = vmatprep.subr.mxu0 0.0
        %834 = vmatpush1.msra.mxu0 0.0
        %835 = vmatprep.subr.mxu0 0.0
        %836 = vmatpush1.msra.mxu0 0.0
        %837 = vmatprep.subr.mxu0 0.0
        %838 = vmatpush1.msra.mxu0 0.0
        %839 = vmatprep.subr.mxu0 0.0
        %840 = vmatpush1.msra.mxu0 0.0
        %841 = vmatprep.subr.mxu0 0.0
        %842 = vmatpush1.msra.mxu0 0.0
        %843 = vmatprep.subr.mxu0 0.0
        %844 = vmatpush1.msra.mxu0 0.0
        %845 = vmatprep.subr.mxu0 0.0
        %846 = vmatpush1.msra.mxu0 0.0
        %847 = vmatprep.subr.mxu0 0.0
        %848 = vmatpush1.msra.mxu0 0.0
        %849 = vmatprep.subr.mxu0 0.0
        %850 = vmatpush1.msra.mxu0 0.0
        %851 = vmatprep.subr.mxu0 0.0
        %852 = vmatpush1.msra.mxu0 0.0
        %853 = vmatprep.subr.mxu0 0.0
        %854 = vmatpush1.msra.mxu0 0.0
        %855 = vmatprep.subr.mxu0 0.0
        %856 = vmatpush1.msra.mxu0 0.0
        %857 = vmatprep.subr.mxu0 0.0
        %858 = vmatpush1.msra.mxu0 0.0
        %859 = vmatprep.subr.mxu0 0.0
        %860 = vmatpush1.msra.mxu0 0.0
        %861 = vmatprep.subr.mxu0 0.0
        %862 = vmatpush1.msra.mxu0 0.0
        %863 = vmatprep.subr.mxu0 0.0
        %864 = vmatpush1.msra.mxu0 0.0
        %865 = vmatprep.subr.mxu0 0.0
        %866 = vmatpush1.msra.mxu0 0.0
        %867 = vmatprep.subr.mxu0 0.0
        %868 = vmatpush1.msra.mxu0 0.0
        %869 = vmatprep.subr.mxu0 0.0
        %870 = vmatpush1.msra.mxu0 0.0
        %871 = vmatprep.subr.mxu0 0.0
        %872 = vmatpush1.msra.mxu0 0.0
        %873 = vmatprep.subr.mxu0 0.0
        %874 = vmatpush1.msra.mxu0 0.0
        %875 = vmatprep.subr.mxu0 0.0
        %876 = vmatpush1.msra.mxu0 0.0
        %877 = vmatprep.subr.mxu0 0.0
        %878 = vmatpush1.msra.mxu0 0.0
        %879 = vmatprep.mubr.f32.mxu0 0.0
        %880 = vmatmul.mubr.f32.gmra.mrb[0].mxu0 %v792
        %v881 = vpop.f32.mrb[0].mxu0
        %v882 = vadd.f32 %v790, %v881
        %v883 = vpop.f32.mrb[0].mxu0
        %884 = vmatprep.mubr.f32.mxu0 0.0
        %885 = vmatmul.mubr.f32.gmra.mrb[0].mxu0 %v795
        %v886 = vpop.f32.mrb[0].mxu0
        %v887 = vadd.f32 %v790, %v886
        %v888 = vpop.f32.mrb[0].mxu0
        %889 = vmatprep.mubr.f32.mxu0 0.0
        %890 = vmatmul.mubr.f32.gmra.mrb[0].mxu0 %v798
        %v891 = vpop.f32.mrb[0].mxu0
        %v892 = vadd.f32 %v790, %v891
        %v893 = vpop.f32.mrb[0].mxu0
        %894 = vmatprep.mubr.f32.mxu0 0.0
        %895 = vmatmul.mubr.f32.gmra.mrb[0].mxu0 %v801
        %v896 = vpop.f32.mrb[0].mxu0
        %v897 = vadd.f32 %v790, %v896
        %v898 = vpop.f32.mrb[0].mxu0
        %899 = vmatprep.mubr.f32.mxu0 0.0
        %900 = vmatmul.mubr.f32.gmra.mrb[0].mxu0 %v804
        %v901 = vpop.f32.mrb[0].mxu0
        %v902 = vadd.f32 %v790, %v901
        %v903 = vpop.f32.mrb[0].mxu0
        %904 = vmatprep.mubr.f32.mxu0 0.0
        %905 = vmatmul.mubr.f32.gmra.mrb[0].mxu0 %v807
        %v906 = vpop.f32.mrb[0].mxu0
        %v907 = vadd.f32 %v790, %v906
        %v908 = vpop.f32.mrb[0].mxu0
        %909 = vmatprep.mubr.f32.mxu0 0.0
        %910 = vmatmul.mubr.f32.gmra.mrb[0].mxu0 %v810
        %v911 = vpop.f32.mrb[0].mxu0
        %v912 = vadd.f32 %v790, %v911
        %v913 = vpop.f32.mrb[0].mxu0
        %914 = vmatprep.mubr.f32.mxu0 0.0
        %915 = vmatmul.mubr.f32.gmra.mrb[0].mxu0 %v813
        %v916 = vpop.f32.mrb[0].mxu0
        %v917 = vadd.f32 %v790, %v916
        %v918 = vpop.f32.mrb[0].mxu0
        %919 = vdwg.mxu0
        %v920 = vlaneseq
        %v921 = vshrl.u32 %v920, 7
        %v922 = vsub.s32 0, %v921
        %v923 = vrot.slane %v421, %v922
        %v925 = vsel %vm430, %v356, 0
        %v928 = vsel %vm430, %v357, 0
        %v931 = vsel %vm430, %v358, 0
        %v934 = vsel %vm430, %v359, 0
        %v937 = vsel %vm430, %v360, 0
        %v940 = vsel %vm430, %v361, 0
        %v943 = vsel %vm430, %v362, 0
        %v946 = vsel %vm430, %v363, 0
        %948 = vmatprep.subr.mxu0 0.0
        %949 = vmatpush1.msra.mxu0 %v385
        %950 = vmatprep.subr.mxu0 0.0
        %951 = vmatpush1.msra.mxu0 %v386
        %952 = vmatprep.subr.mxu0 0.0
        %953 = vmatpush1.msra.mxu0 %v387
        %954 = vmatprep.subr.mxu0 0.0
        %955 = vmatpush1.msra.mxu0 %v388
        %956 = vmatprep.subr.mxu0 0.0
        %957 = vmatpush1.msra.mxu0 0.0
        %958 = vmatprep.subr.mxu0 0.0
        %959 = vmatpush1.msra.mxu0 0.0
        %960 = vmatprep.subr.mxu0 0.0
        %961 = vmatpush1.msra.mxu0 0.0
        %962 = vmatprep.subr.mxu0 0.0
        %963 = vmatpush1.msra.mxu0 0.0
        %964 = vmatprep.subr.mxu0 0.0
        %965 = vmatpush1.msra.mxu0 0.0
        %966 = vmatprep.subr.mxu0 0.0
        %967 = vmatpush1.msra.mxu0 0.0
        %968 = vmatprep.subr.mxu0 0.0
        %969 = vmatpush1.msra.mxu0 0.0
        %970 = vmatprep.subr.mxu0 0.0
        %971 = vmatpush1.msra.mxu0 0.0
        %972 = vmatprep.subr.mxu0 0.0
        %973 = vmatpush1.msra.mxu0 0.0
        %974 = vmatprep.subr.mxu0 0.0
        %975 = vmatpush1.msra.mxu0 0.0
        %976 = vmatprep.subr.mxu0 0.0
        %977 = vmatpush1.msra.mxu0 0.0
        %978 = vmatprep.subr.mxu0 0.0
        %979 = vmatpush1.msra.mxu0 0.0
        %980 = vmatprep.subr.mxu0 0.0
        %981 = vmatpush1.msra.mxu0 0.0
        %982 = vmatprep.subr.mxu0 0.0
        %983 = vmatpush1.msra.mxu0 0.0
        %984 = vmatprep.subr.mxu0 0.0
        %985 = vmatpush1.msra.mxu0 0.0
        %986 = vmatprep.subr.mxu0 0.0
        %987 = vmatpush1.msra.mxu0 0.0
        %988 = vmatprep.subr.mxu0 0.0
        %989 = vmatpush1.msra.mxu0 0.0
        %990 = vmatprep.subr.mxu0 0.0
        %991 = vmatpush1.msra.mxu0 0.0
        %992 = vmatprep.subr.mxu0 0.0
        %993 = vmatpush1.msra.mxu0 0.0
        %994 = vmatprep.subr.mxu0 0.0
        %995 = vmatpush1.msra.mxu0 0.0
        %996 = vmatprep.subr.mxu0 0.0
        %997 = vmatpush1.msra.mxu0 0.0
        %998 = vmatprep.subr.mxu0 0.0
        %999 = vmatpush1.msra.mxu0 0.0
        %1000 = vmatprep.subr.mxu0 0.0
        %1001 = vmatpush1.msra.mxu0 0.0
        %1002 = vmatprep.subr.mxu0 0.0
        %1003 = vmatpush1.msra.mxu0 0.0
        %1004 = vmatprep.subr.mxu0 0.0
        %1005 = vmatpush1.msra.mxu0 0.0
        %1006 = vmatprep.subr.mxu0 0.0
        %1007 = vmatpush1.msra.mxu0 0.0
        %1008 = vmatprep.subr.mxu0 0.0
        %1009 = vmatpush1.msra.mxu0 0.0
        %1010 = vmatprep.subr.mxu0 0.0
        %1011 = vmatpush1.msra.mxu0 0.0
        %1012 = vmatprep.mubr.f32.mxu0 0.0
        %1013 = vmatmul.mubr.f32.gmra.mrb[0].mxu0 %v925
        %v1014 = vpop.f32.mrb[0].mxu0
        %v1015 = vadd.f32 %v923, %v1014
        %v1016 = vpop.f32.mrb[0].mxu0
        %1017 = vmatprep.mubr.f32.mxu0 0.0
        %1018 = vmatmul.mubr.f32.gmra.mrb[0].mxu0 %v928
        %v1019 = vpop.f32.mrb[0].mxu0
        %v1020 = vadd.f32 %v923, %v1019
        %v1021 = vpop.f32.mrb[0].mxu0
        %1022 = vmatprep.mubr.f32.mxu0 0.0
        %1023 = vmatmul.mubr.f32.gmra.mrb[0].mxu0 %v931
        %v1024 = vpop.f32.mrb[0].mxu0
        %v1025 = vadd.f32 %v923, %v1024
        %v1026 = vpop.f32.mrb[0].mxu0
        %1027 = vmatprep.mubr.f32.mxu0 0.0
        %1028 = vmatmul.mubr.f32.gmra.mrb[0].mxu0 %v934
        %v1029 = vpop.f32.mrb[0].mxu0
        %v1030 = vadd.f32 %v923, %v1029
        %v1031 = vpop.f32.mrb[0].mxu0
        %1032 = vmatprep.mubr.f32.mxu0 0.0
        %1033 = vmatmul.mubr.f32.gmra.mrb[0].mxu0 %v937
        %v1034 = vpop.f32.mrb[0].mxu0
        %v1035 = vadd.f32 %v923, %v1034
        %v1036 = vpop.f32.mrb[0].mxu0
        %1037 = vmatprep.mubr.f32.mxu0 0.0
        %1038 = vmatmul.mubr.f32.gmra.mrb[0].mxu0 %v940
        %v1039 = vpop.f32.mrb[0].mxu0
        %v1040 = vadd.f32 %v923, %v1039
        %v1041 = vpop.f32.mrb[0].mxu0
        %1042 = vmatprep.mubr.f32.mxu0 0.0
        %1043 = vmatmul.mubr.f32.gmra.mrb[0].mxu0 %v943
        %v1044 = vpop.f32.mrb[0].mxu0
        %v1045 = vadd.f32 %v923, %v1044
        %v1046 = vpop.f32.mrb[0].mxu0
        %1047 = vmatprep.mubr.f32.mxu0 0.0
        %1048 = vmatmul.mubr.f32.gmra.mrb[0].mxu0 %v946
        %v1049 = vpop.f32.mrb[0].mxu0
        %v1050 = vadd.f32 %v923, %v1049
        %v1051 = vpop.f32.mrb[0].mxu0
        %1052 = vdwg.mxu0
        %v1053 = vlaneseq
        %v1054 = vshrl.u32 %v1053, 7
        %v1055 = vsub.s32 0, %v1054
        %v1056 = vrot.slane %v422, %v1055
        %v1058 = vsel %vm430, %v364, 0
        %v1061 = vsel %vm430, %v365, 0
        %v1064 = vsel %vm430, %v366, 0
        %v1067 = vsel %vm430, %v367, 0
        %v1070 = vsel %vm430, %v368, 0
        %v1073 = vsel %vm430, %v369, 0
        %v1076 = vsel %vm430, %v370, 0
        %v1079 = vsel %vm430, %v371, 0
        %1081 = vmatprep.subr.mxu0 0.0
        %1082 = vmatpush1.msra.mxu0 %v389
        %1083 = vmatprep.subr.mxu0 0.0
        %1084 = vmatpush1.msra.mxu0 %v390
        %1085 = vmatprep.subr.mxu0 0.0
        %1086 = vmatpush1.msra.mxu0 %v391
        %1087 = vmatprep.subr.mxu0 0.0
        %1088 = vmatpush1.msra.mxu0 %v392
        %1089 = vmatprep.subr.mxu0 0.0
        %1090 = vmatpush1.msra.mxu0 0.0
        %1091 = vmatprep.subr.mxu0 0.0
        %1092 = vmatpush1.msra.mxu0 0.0
        %1093 = vmatprep.subr.mxu0 0.0
        %1094 = vmatpush1.msra.mxu0 0.0
        %1095 = vmatprep.subr.mxu0 0.0
        %1096 = vmatpush1.msra.mxu0 0.0
        %1097 = vmatprep.subr.mxu0 0.0
        %1098 = vmatpush1.msra.mxu0 0.0
        %1099 = vmatprep.subr.mxu0 0.0
        %1100 = vmatpush1.msra.mxu0 0.0
        %1101 = vmatprep.subr.mxu0 0.0
        %1102 = vmatpush1.msra.mxu0 0.0
        %1103 = vmatprep.subr.mxu0 0.0
        %1104 = vmatpush1.msra.mxu0 0.0
        %1105 = vmatprep.subr.mxu0 0.0
        %1106 = vmatpush1.msra.mxu0 0.0
        %1107 = vmatprep.subr.mxu0 0.0
        %1108 = vmatpush1.msra.mxu0 0.0
        %1109 = vmatprep.subr.mxu0 0.0
        %1110 = vmatpush1.msra.mxu0 0.0
        %1111 = vmatprep.subr.mxu0 0.0
        %1112 = vmatpush1.msra.mxu0 0.0
        %1113 = vmatprep.subr.mxu0 0.0
        %1114 = vmatpush1.msra.mxu0 0.0
        %1115 = vmatprep.subr.mxu0 0.0
        %1116 = vmatpush1.msra.mxu0 0.0
        %1117 = vmatprep.subr.mxu0 0.0
        %1118 = vmatpush1.msra.mxu0 0.0
        %1119 = vmatprep.subr.mxu0 0.0
        %1120 = vmatpush1.msra.mxu0 0.0
        %1121 = vmatprep.subr.mxu0 0.0
        %1122 = vmatpush1.msra.mxu0 0.0
        %1123 = vmatprep.subr.mxu0 0.0
        %1124 = vmatpush1.msra.mxu0 0.0
        %1125 = vmatprep.subr.mxu0 0.0
        %1126 = vmatpush1.msra.mxu0 0.0
        %1127 = vmatprep.subr.mxu0 0.0
        %1128 = vmatpush1.msra.mxu0 0.0
        %1129 = vmatprep.subr.mxu0 0.0
        %1130 = vmatpush1.msra.mxu0 0.0
        %1131 = vmatprep.subr.mxu0 0.0
        %1132 = vmatpush1.msra.mxu0 0.0
        %1133 = vmatprep.subr.mxu0 0.0
        %1134 = vmatpush1.msra.mxu0 0.0
        %1135 = vmatprep.subr.mxu0 0.0
        %1136 = vmatpush1.msra.mxu0 0.0
        %1137 = vmatprep.subr.mxu0 0.0
        %1138 = vmatpush1.msra.mxu0 0.0
        %1139 = vmatprep.subr.mxu0 0.0
        %1140 = vmatpush1.msra.mxu0 0.0
        %1141 = vmatprep.subr.mxu0 0.0
        %1142 = vmatpush1.msra.mxu0 0.0
        %1143 = vmatprep.subr.mxu0 0.0
        %1144 = vmatpush1.msra.mxu0 0.0
        %1145 = vmatprep.mubr.f32.mxu0 0.0
        %1146 = vmatmul.mubr.f32.gmra.mrb[0].mxu0 %v1058
        %v1147 = vpop.f32.mrb[0].mxu0
        %v1148 = vadd.f32 %v1056, %v1147
        %v1149 = vpop.f32.mrb[0].mxu0
        %1150 = vmatprep.mubr.f32.mxu0 0.0
        %1151 = vmatmul.mubr.f32.gmra.mrb[0].mxu0 %v1061
        %v1152 = vpop.f32.mrb[0].mxu0
        %v1153 = vadd.f32 %v1056, %v1152
        %v1154 = vpop.f32.mrb[0].mxu0
        %1155 = vmatprep.mubr.f32.mxu0 0.0
        %1156 = vmatmul.mubr.f32.gmra.mrb[0].mxu0 %v1064
        %v1157 = vpop.f32.mrb[0].mxu0
        %v1158 = vadd.f32 %v1056, %v1157
        %v1159 = vpop.f32.mrb[0].mxu0
        %1160 = vmatprep.mubr.f32.mxu0 0.0
        %1161 = vmatmul.mubr.f32.gmra.mrb[0].mxu0 %v1067
        %v1162 = vpop.f32.mrb[0].mxu0
        %v1163 = vadd.f32 %v1056, %v1162
        %v1164 = vpop.f32.mrb[0].mxu0
        %1165 = vmatprep.mubr.f32.mxu0 0.0
        %1166 = vmatmul.mubr.f32.gmra.mrb[0].mxu0 %v1070
        %v1167 = vpop.f32.mrb[0].mxu0
        %v1168 = vadd.f32 %v1056, %v1167
        %v1169 = vpop.f32.mrb[0].mxu0
        %1170 = vmatprep.mubr.f32.mxu0 0.0
        %1171 = vmatmul.mubr.f32.gmra.mrb[0].mxu0 %v1073
        %v1172 = vpop.f32.mrb[0].mxu0
        %v1173 = vadd.f32 %v1056, %v1172
        %v1174 = vpop.f32.mrb[0].mxu0
        %1175 = vmatprep.mubr.f32.mxu0 0.0
        %1176 = vmatmul.mubr.f32.gmra.mrb[0].mxu0 %v1076
        %v1177 = vpop.f32.mrb[0].mxu0
        %v1178 = vadd.f32 %v1056, %v1177
        %v1179 = vpop.f32.mrb[0].mxu0
        %1180 = vmatprep.mubr.f32.mxu0 0.0
        %1181 = vmatmul.mubr.f32.gmra.mrb[0].mxu0 %v1079
        %v1182 = vpop.f32.mrb[0].mxu0
        %v1183 = vadd.f32 %v1056, %v1182
        %v1184 = vpop.f32.mrb[0].mxu0
        %1185 = vdwg.mxu0
        %1194 = vrot.lane.b32.xlu0 %v882, 112
        %v1195 = vpop.permute.xlu0 %1194
        %1196 = vrot.lane.b32.xlu0 %v887, 112
        %v1197 = vpop.permute.xlu0 %1196
        %1198 = vrot.lane.b32.xlu0 %v892, 112
        %v1199 = vpop.permute.xlu0 %1198
        %1200 = vrot.lane.b32.xlu0 %v897, 112
        %v1201 = vpop.permute.xlu0 %1200
        %1202 = vrot.lane.b32.xlu0 %v902, 112
        %v1203 = vpop.permute.xlu0 %1202
        %1204 = vrot.lane.b32.xlu0 %v907, 112
        %v1205 = vpop.permute.xlu0 %1204
        %1206 = vrot.lane.b32.xlu0 %v912, 112
        %v1207 = vpop.permute.xlu0 %1206
        %1208 = vrot.lane.b32.xlu0 %v917, 112
        %v1209 = vpop.permute.xlu0 %1208
        %1210 = vrot.lane.b32.xlu0 %v882, 96
        %v1211 = vpop.permute.xlu0 %1210
        %1212 = vrot.lane.b32.xlu0 %v887, 96
        %v1213 = vpop.permute.xlu0 %1212
        %1214 = vrot.lane.b32.xlu0 %v892, 96
        %v1215 = vpop.permute.xlu0 %1214
        %1216 = vrot.lane.b32.xlu0 %v897, 96
        %v1217 = vpop.permute.xlu0 %1216
        %1218 = vrot.lane.b32.xlu0 %v902, 96
        %v1219 = vpop.permute.xlu0 %1218
        %1220 = vrot.lane.b32.xlu0 %v907, 96
        %v1221 = vpop.permute.xlu0 %1220
        %1222 = vrot.lane.b32.xlu0 %v912, 96
        %v1223 = vpop.permute.xlu0 %1222
        %1224 = vrot.lane.b32.xlu0 %v917, 96
        %v1225 = vpop.permute.xlu0 %1224
        %1226 = vrot.lane.b32.xlu0 %v882, 80
        %v1227 = vpop.permute.xlu0 %1226
        %1228 = vrot.lane.b32.xlu0 %v887, 80
        %v1229 = vpop.permute.xlu0 %1228
        %1230 = vrot.lane.b32.xlu0 %v892, 80
        %v1231 = vpop.permute.xlu0 %1230
        %1232 = vrot.lane.b32.xlu0 %v897, 80
        %v1233 = vpop.permute.xlu0 %1232
        %1234 = vrot.lane.b32.xlu0 %v902, 80
        %v1235 = vpop.permute.xlu0 %1234
        %1236 = vrot.lane.b32.xlu0 %v907, 80
        %v1237 = vpop.permute.xlu0 %1236
        %1238 = vrot.lane.b32.xlu0 %v912, 80
        %v1239 = vpop.permute.xlu0 %1238
        %1240 = vrot.lane.b32.xlu0 %v917, 80
        %v1241 = vpop.permute.xlu0 %1240
        %1250 = vrot.lane.b32.xlu0 %v1015, 112
        %v1251 = vpop.permute.xlu0 %1250
        %1252 = vrot.lane.b32.xlu0 %v1020, 112
        %v1253 = vpop.permute.xlu0 %1252
        %1254 = vrot.lane.b32.xlu0 %v1025, 112
        %v1255 = vpop.permute.xlu0 %1254
        %1256 = vrot.lane.b32.xlu0 %v1030, 112
        %v1257 = vpop.permute.xlu0 %1256
        %1258 = vrot.lane.b32.xlu0 %v1035, 112
        %v1259 = vpop.permute.xlu0 %1258
        %1260 = vrot.lane.b32.xlu0 %v1040, 112
        %v1261 = vpop.permute.xlu0 %1260
        %1262 = vrot.lane.b32.xlu0 %v1045, 112
        %v1263 = vpop.permute.xlu0 %1262
        %1264 = vrot.lane.b32.xlu0 %v1050, 112
        %v1265 = vpop.permute.xlu0 %1264
        %1274 = vrot.lane.b32.xlu0 %v1148, 112
        %v1275 = vpop.permute.xlu0 %1274
        %1276 = vrot.lane.b32.xlu0 %v1153, 112
        %v1277 = vpop.permute.xlu0 %1276
        %1278 = vrot.lane.b32.xlu0 %v1158, 112
        %v1279 = vpop.permute.xlu0 %1278
        %1280 = vrot.lane.b32.xlu0 %v1163, 112
        %v1281 = vpop.permute.xlu0 %1280
        %1282 = vrot.lane.b32.xlu0 %v1168, 112
        %v1283 = vpop.permute.xlu0 %1282
        %1284 = vrot.lane.b32.xlu0 %v1173, 112
        %v1285 = vpop.permute.xlu0 %1284
        %1286 = vrot.lane.b32.xlu0 %v1178, 112
        %v1287 = vpop.permute.xlu0 %1286
        %1288 = vrot.lane.b32.xlu0 %v1183, 112
        %v1289 = vpop.permute.xlu0 %1288
        %vm1290 = vcmask 130048
        %v1291 = vsel %vm1290, %v882, 0
        %v1293 = vsel %vm1290, %v887, 0
        %v1295 = vsel %vm1290, %v892, 0
        %v1297 = vsel %vm1290, %v897, 0
        %v1299 = vsel %vm1290, %v902, 0
        %v1301 = vsel %vm1290, %v907, 0
        %v1303 = vsel %vm1290, %v912, 0
        %v1305 = vsel %vm1290, %v917, 0
        %v1307 = vsel %vm1290, %v1015, 0
        %v1309 = vsel %vm1290, %v1020, 0
        %v1311 = vsel %vm1290, %v1025, 0
        %v1313 = vsel %vm1290, %v1030, 0
        %v1315 = vsel %vm1290, %v1035, 0
        %v1317 = vsel %vm1290, %v1040, 0
        %v1319 = vsel %vm1290, %v1045, 0
        %v1321 = vsel %vm1290, %v1050, 0
        %1323 = vmatprep.subr.mxu0 0.0
        %1324 = vmatpush1.xpose.msra.mxu0 %v1307
        %1325 = vmatprep.subr.mxu0 0.0
        %1326 = vmatpush1.xpose.msra.mxu0 %v1309
        %1327 = vmatprep.subr.mxu0 0.0
        %1328 = vmatpush1.xpose.msra.mxu0 %v1311
        %1329 = vmatprep.subr.mxu0 0.0
        %1330 = vmatpush1.xpose.msra.mxu0 %v1313
        %1331 = vmatprep.subr.mxu0 0.0
        %1332 = vmatpush1.xpose.msra.mxu0 %v1315
        %1333 = vmatprep.subr.mxu0 0.0
        %1334 = vmatpush1.xpose.msra.mxu0 %v1317
        %1335 = vmatprep.subr.mxu0 0.0
        %1336 = vmatpush1.xpose.msra.mxu0 %v1319
        %1337 = vmatprep.subr.mxu0 0.0
        %1338 = vmatpush1.xpose.msra.mxu0 %v1321
        %1339 = vmatprep.subr.mxu0 0.0
        %1340 = vmatpush1.xpose.msra.mxu0 0.0
        %1341 = vmatprep.subr.mxu0 0.0
        %1342 = vmatpush1.xpose.msra.mxu0 0.0
        %1343 = vmatprep.subr.mxu0 0.0
        %1344 = vmatpush1.xpose.msra.mxu0 0.0
        %1345 = vmatprep.subr.mxu0 0.0
        %1346 = vmatpush1.xpose.msra.mxu0 0.0
        %1347 = vmatprep.subr.mxu0 0.0
        %1348 = vmatpush1.xpose.msra.mxu0 0.0
        %1349 = vmatprep.subr.mxu0 0.0
        %1350 = vmatpush1.xpose.msra.mxu0 0.0
        %1351 = vmatprep.subr.mxu0 0.0
        %1352 = vmatpush1.xpose.msra.mxu0 0.0
        %1353 = vmatprep.subr.mxu0 0.0
        %1354 = vmatpush1.xpose.msra.mxu0 0.0
        %1355 = vmatprep.subr.mxu0 0.0
        %1356 = vmatpush1.xpose.msra.mxu0 0.0
        %1357 = vmatprep.subr.mxu0 0.0
        %1358 = vmatpush1.xpose.msra.mxu0 0.0
        %1359 = vmatprep.subr.mxu0 0.0
        %1360 = vmatpush1.xpose.msra.mxu0 0.0
        %1361 = vmatprep.subr.mxu0 0.0
        %1362 = vmatpush1.xpose.msra.mxu0 0.0
        %1363 = vmatprep.subr.mxu0 0.0
        %1364 = vmatpush1.xpose.msra.mxu0 0.0
        %1365 = vmatprep.subr.mxu0 0.0
        %1366 = vmatpush1.xpose.msra.mxu0 0.0
        %1367 = vmatprep.subr.mxu0 0.0
        %1368 = vmatpush1.xpose.msra.mxu0 0.0
        %1369 = vmatprep.subr.mxu0 0.0
        %1370 = vmatpush1.xpose.msra.mxu0 0.0
        %1371 = vmatprep.subr.mxu0 0.0
        %1372 = vmatpush1.xpose.msra.mxu0 0.0
        %1373 = vmatprep.subr.mxu0 0.0
        %1374 = vmatpush1.xpose.msra.mxu0 0.0
        %1375 = vmatprep.subr.mxu0 0.0
        %1376 = vmatpush1.xpose.msra.mxu0 0.0
        %1377 = vmatprep.subr.mxu0 0.0
        %1378 = vmatpush1.xpose.msra.mxu0 0.0
        %1379 = vmatprep.subr.mxu0 0.0
        %1380 = vmatpush1.xpose.msra.mxu0 0.0
        %1381 = vmatprep.subr.mxu0 0.0
        %1382 = vmatpush1.xpose.msra.mxu0 0.0
        %1383 = vmatprep.subr.mxu0 0.0
        %1384 = vmatpush1.xpose.msra.mxu0 0.0
        %1385 = vmatprep.subr.mxu0 0.0
        %1386 = vmatpush1.xpose.msra.mxu0 0.0
        %1387 = vmatprep.mubr.f32.mxu0 0.0
        %1388 = vmatmul.mubr.f32.gmra.mrb[0].mxu0 %v1291
        %v1389 = vpop.f32.mrb[0].mxu0
        %v1390 = vadd.f32 0.0, %v1389
        %v1391 = vpop.f32.mrb[0].mxu0
        %1392 = vmatprep.mubr.f32.mxu0 0.0
        %1393 = vmatmul.mubr.f32.gmra.mrb[0].mxu0 %v1293
        %v1394 = vpop.f32.mrb[0].mxu0
        %v1395 = vadd.f32 0.0, %v1394
        %v1396 = vpop.f32.mrb[0].mxu0
        %1397 = vmatprep.mubr.f32.mxu0 0.0
        %1398 = vmatmul.mubr.f32.gmra.mrb[0].mxu0 %v1295
        %v1399 = vpop.f32.mrb[0].mxu0
        %v1400 = vadd.f32 0.0, %v1399
        %v1401 = vpop.f32.mrb[0].mxu0
        %1402 = vmatprep.mubr.f32.mxu0 0.0
        %1403 = vmatmul.mubr.f32.gmra.mrb[0].mxu0 %v1297
        %v1404 = vpop.f32.mrb[0].mxu0
        %v1405 = vadd.f32 0.0, %v1404
        %v1406 = vpop.f32.mrb[0].mxu0
        %1407 = vmatprep.mubr.f32.mxu0 0.0
        %1408 = vmatmul.mubr.f32.gmra.mrb[0].mxu0 %v1299
        %v1409 = vpop.f32.mrb[0].mxu0
        %v1410 = vadd.f32 0.0, %v1409
        %v1411 = vpop.f32.mrb[0].mxu0
        %1412 = vmatprep.mubr.f32.mxu0 0.0
        %1413 = vmatmul.mubr.f32.gmra.mrb[0].mxu0 %v1301
        %v1414 = vpop.f32.mrb[0].mxu0
        %v1415 = vadd.f32 0.0, %v1414
        %v1416 = vpop.f32.mrb[0].mxu0
        %1417 = vmatprep.mubr.f32.mxu0 0.0
        %1418 = vmatmul.mubr.f32.gmra.mrb[0].mxu0 %v1303
        %v1419 = vpop.f32.mrb[0].mxu0
        %v1420 = vadd.f32 0.0, %v1419
        %v1421 = vpop.f32.mrb[0].mxu0
        %1422 = vmatprep.mubr.f32.mxu0 0.0
        %1423 = vmatmul.mubr.f32.gmra.mrb[0].mxu0 %v1305
        %v1424 = vpop.f32.mrb[0].mxu0
        %v1425 = vadd.f32 0.0, %v1424
        %v1426 = vpop.f32.mrb[0].mxu0
        %1427 = vdwg.mxu0
        %v1428 = vsel %vm1290, %v1195, 0
        %v1430 = vsel %vm1290, %v1197, 0
        %v1432 = vsel %vm1290, %v1199, 0
        %v1434 = vsel %vm1290, %v1201, 0
        %v1436 = vsel %vm1290, %v1203, 0
        %v1438 = vsel %vm1290, %v1205, 0
        %v1440 = vsel %vm1290, %v1207, 0
        %v1442 = vsel %vm1290, %v1209, 0
        %v1444 = vsel %vm1290, %v1251, 0
        %v1446 = vsel %vm1290, %v1253, 0
        %v1448 = vsel %vm1290, %v1255, 0
        %v1450 = vsel %vm1290, %v1257, 0
        %v1452 = vsel %vm1290, %v1259, 0
        %v1454 = vsel %vm1290, %v1261, 0
        %v1456 = vsel %vm1290, %v1263, 0
        %v1458 = vsel %vm1290, %v1265, 0
        %1460 = vmatprep.subr.mxu0 0.0
        %1461 = vmatpush1.xpose.msra.mxu0 %v1444
        %1462 = vmatprep.subr.mxu0 0.0
        %1463 = vmatpush1.xpose.msra.mxu0 %v1446
        %1464 = vmatprep.subr.mxu0 0.0
        %1465 = vmatpush1.xpose.msra.mxu0 %v1448
        %1466 = vmatprep.subr.mxu0 0.0
        %1467 = vmatpush1.xpose.msra.mxu0 %v1450
        %1468 = vmatprep.subr.mxu0 0.0
        %1469 = vmatpush1.xpose.msra.mxu0 %v1452
        %1470 = vmatprep.subr.mxu0 0.0
        %1471 = vmatpush1.xpose.msra.mxu0 %v1454
        %1472 = vmatprep.subr.mxu0 0.0
        %1473 = vmatpush1.xpose.msra.mxu0 %v1456
        %1474 = vmatprep.subr.mxu0 0.0
        %1475 = vmatpush1.xpose.msra.mxu0 %v1458
        %1476 = vmatprep.subr.mxu0 0.0
        %1477 = vmatpush1.xpose.msra.mxu0 0.0
        %1478 = vmatprep.subr.mxu0 0.0
        %1479 = vmatpush1.xpose.msra.mxu0 0.0
        %1480 = vmatprep.subr.mxu0 0.0
        %1481 = vmatpush1.xpose.msra.mxu0 0.0
        %1482 = vmatprep.subr.mxu0 0.0
        %1483 = vmatpush1.xpose.msra.mxu0 0.0
        %1484 = vmatprep.subr.mxu0 0.0
        %1485 = vmatpush1.xpose.msra.mxu0 0.0
        %1486 = vmatprep.subr.mxu0 0.0
        %1487 = vmatpush1.xpose.msra.mxu0 0.0
        %1488 = vmatprep.subr.mxu0 0.0
        %1489 = vmatpush1.xpose.msra.mxu0 0.0
        %1490 = vmatprep.subr.mxu0 0.0
        %1491 = vmatpush1.xpose.msra.mxu0 0.0
        %1492 = vmatprep.subr.mxu0 0.0
        %1493 = vmatpush1.xpose.msra.mxu0 0.0
        %1494 = vmatprep.subr.mxu0 0.0
        %1495 = vmatpush1.xpose.msra.mxu0 0.0
        %1496 = vmatprep.subr.mxu0 0.0
        %1497 = vmatpush1.xpose.msra.mxu0 0.0
        %1498 = vmatprep.subr.mxu0 0.0
        %1499 = vmatpush1.xpose.msra.mxu0 0.0
        %1500 = vmatprep.subr.mxu0 0.0
        %1501 = vmatpush1.xpose.msra.mxu0 0.0
        %1502 = vmatprep.subr.mxu0 0.0
        %1503 = vmatpush1.xpose.msra.mxu0 0.0
        %1504 = vmatprep.subr.mxu0 0.0
        %1505 = vmatpush1.xpose.msra.mxu0 0.0
        %1506 = vmatprep.subr.mxu0 0.0
        %1507 = vmatpush1.xpose.msra.mxu0 0.0
        %1508 = vmatprep.subr.mxu0 0.0
        %1509 = vmatpush1.xpose.msra.mxu0 0.0
        %1510 = vmatprep.subr.mxu0 0.0
        %1511 = vmatpush1.xpose.msra.mxu0 0.0
        %1512 = vmatprep.subr.mxu0 0.0
        %1513 = vmatpush1.xpose.msra.mxu0 0.0
        %1514 = vmatprep.subr.mxu0 0.0
        %1515 = vmatpush1.xpose.msra.mxu0 0.0
        %1516 = vmatprep.subr.mxu0 0.0
        %1517 = vmatpush1.xpose.msra.mxu0 0.0
        %1518 = vmatprep.subr.mxu0 0.0
        %1519 = vmatpush1.xpose.msra.mxu0 0.0
        %1520 = vmatprep.subr.mxu0 0.0
        %1521 = vmatpush1.xpose.msra.mxu0 0.0
        %1522 = vmatprep.subr.mxu0 0.0
        %1523 = vmatpush1.xpose.msra.mxu0 0.0
        %1524 = vmatprep.mubr.f32.mxu0 0.0
        %1525 = vmatmul.mubr.f32.gmra.mrb[0].mxu0 %v1428
        %v1526 = vpop.f32.mrb[0].mxu0
        %v1527 = vadd.f32 0.0, %v1526
        %v1528 = vpop.f32.mrb[0].mxu0
        %1529 = vmatprep.mubr.f32.mxu0 0.0
        %1530 = vmatmul.mubr.f32.gmra.mrb[0].mxu0 %v1430
        %v1531 = vpop.f32.mrb[0].mxu0
        %v1532 = vadd.f32 0.0, %v1531
        %v1533 = vpop.f32.mrb[0].mxu0
        %1534 = vmatprep.mubr.f32.mxu0 0.0
        %1535 = vmatmul.mubr.f32.gmra.mrb[0].mxu0 %v1432
        %v1536 = vpop.f32.mrb[0].mxu0
        %v1537 = vadd.f32 0.0, %v1536
        %v1538 = vpop.f32.mrb[0].mxu0
        %1539 = vmatprep.mubr.f32.mxu0 0.0
        %1540 = vmatmul.mubr.f32.gmra.mrb[0].mxu0 %v1434
        %v1541 = vpop.f32.mrb[0].mxu0
        %v1542 = vadd.f32 0.0, %v1541
        %v1543 = vpop.f32.mrb[0].mxu0
        %1544 = vmatprep.mubr.f32.mxu0 0.0
        %1545 = vmatmul.mubr.f32.gmra.mrb[0].mxu0 %v1436
        %v1546 = vpop.f32.mrb[0].mxu0
        %v1547 = vadd.f32 0.0, %v1546
        %v1548 = vpop.f32.mrb[0].mxu0
        %1549 = vmatprep.mubr.f32.mxu0 0.0
        %1550 = vmatmul.mubr.f32.gmra.mrb[0].mxu0 %v1438
        %v1551 = vpop.f32.mrb[0].mxu0
        %v1552 = vadd.f32 0.0, %v1551
        %v1553 = vpop.f32.mrb[0].mxu0
        %1554 = vmatprep.mubr.f32.mxu0 0.0
        %1555 = vmatmul.mubr.f32.gmra.mrb[0].mxu0 %v1440
        %v1556 = vpop.f32.mrb[0].mxu0
        %v1557 = vadd.f32 0.0, %v1556
        %v1558 = vpop.f32.mrb[0].mxu0
        %1559 = vmatprep.mubr.f32.mxu0 0.0
        %1560 = vmatmul.mubr.f32.gmra.mrb[0].mxu0 %v1442
        %v1561 = vpop.f32.mrb[0].mxu0
        %v1562 = vadd.f32 0.0, %v1561
        %v1563 = vpop.f32.mrb[0].mxu0
        %1564 = vdwg.mxu0
        %v1565 = vsel %vm1290, %v1211, 0
        %v1567 = vsel %vm1290, %v1213, 0
        %v1569 = vsel %vm1290, %v1215, 0
        %v1571 = vsel %vm1290, %v1217, 0
        %v1573 = vsel %vm1290, %v1219, 0
        %v1575 = vsel %vm1290, %v1221, 0
        %v1577 = vsel %vm1290, %v1223, 0
        %v1579 = vsel %vm1290, %v1225, 0
        %v1581 = vsel %vm1290, %v1148, 0
        %v1583 = vsel %vm1290, %v1153, 0
        %v1585 = vsel %vm1290, %v1158, 0
        %v1587 = vsel %vm1290, %v1163, 0
        %v1589 = vsel %vm1290, %v1168, 0
        %v1591 = vsel %vm1290, %v1173, 0
        %v1593 = vsel %vm1290, %v1178, 0
        %v1595 = vsel %vm1290, %v1183, 0
        %1597 = vmatprep.subr.mxu0 0.0
        %1598 = vmatpush1.xpose.msra.mxu0 %v1581
        %1599 = vmatprep.subr.mxu0 0.0
        %1600 = vmatpush1.xpose.msra.mxu0 %v1583
        %1601 = vmatprep.subr.mxu0 0.0
        %1602 = vmatpush1.xpose.msra.mxu0 %v1585
        %1603 = vmatprep.subr.mxu0 0.0
        %1604 = vmatpush1.xpose.msra.mxu0 %v1587
        %1605 = vmatprep.subr.mxu0 0.0
        %1606 = vmatpush1.xpose.msra.mxu0 %v1589
        %1607 = vmatprep.subr.mxu0 0.0
        %1608 = vmatpush1.xpose.msra.mxu0 %v1591
        %1609 = vmatprep.subr.mxu0 0.0
        %1610 = vmatpush1.xpose.msra.mxu0 %v1593
        %1611 = vmatprep.subr.mxu0 0.0
        %1612 = vmatpush1.xpose.msra.mxu0 %v1595
        %1613 = vmatprep.subr.mxu0 0.0
        %1614 = vmatpush1.xpose.msra.mxu0 0.0
        %1615 = vmatprep.subr.mxu0 0.0
        %1616 = vmatpush1.xpose.msra.mxu0 0.0
        %1617 = vmatprep.subr.mxu0 0.0
        %1618 = vmatpush1.xpose.msra.mxu0 0.0
        %1619 = vmatprep.subr.mxu0 0.0
        %1620 = vmatpush1.xpose.msra.mxu0 0.0
        %1621 = vmatprep.subr.mxu0 0.0
        %1622 = vmatpush1.xpose.msra.mxu0 0.0
        %1623 = vmatprep.subr.mxu0 0.0
        %1624 = vmatpush1.xpose.msra.mxu0 0.0
        %1625 = vmatprep.subr.mxu0 0.0
        %1626 = vmatpush1.xpose.msra.mxu0 0.0
        %1627 = vmatprep.subr.mxu0 0.0
        %1628 = vmatpush1.xpose.msra.mxu0 0.0
        %1629 = vmatprep.subr.mxu0 0.0
        %1630 = vmatpush1.xpose.msra.mxu0 0.0
        %1631 = vmatprep.subr.mxu0 0.0
        %1632 = vmatpush1.xpose.msra.mxu0 0.0
        %1633 = vmatprep.subr.mxu0 0.0
        %1634 = vmatpush1.xpose.msra.mxu0 0.0
        %1635 = vmatprep.subr.mxu0 0.0
        %1636 = vmatpush1.xpose.msra.mxu0 0.0
        %1637 = vmatprep.subr.mxu0 0.0
        %1638 = vmatpush1.xpose.msra.mxu0 0.0
        %1639 = vmatprep.subr.mxu0 0.0
        %1640 = vmatpush1.xpose.msra.mxu0 0.0
        %1641 = vmatprep.subr.mxu0 0.0
        %1642 = vmatpush1.xpose.msra.mxu0 0.0
        %1643 = vmatprep.subr.mxu0 0.0
        %1644 = vmatpush1.xpose.msra.mxu0 0.0
        %1645 = vmatprep.subr.mxu0 0.0
        %1646 = vmatpush1.xpose.msra.mxu0 0.0
        %1647 = vmatprep.subr.mxu0 0.0
        %1648 = vmatpush1.xpose.msra.mxu0 0.0
        %1649 = vmatprep.subr.mxu0 0.0
        %1650 = vmatpush1.xpose.msra.mxu0 0.0
        %1651 = vmatprep.subr.mxu0 0.0
        %1652 = vmatpush1.xpose.msra.mxu0 0.0
        %1653 = vmatprep.subr.mxu0 0.0
        %1654 = vmatpush1.xpose.msra.mxu0 0.0
        %1655 = vmatprep.subr.mxu0 0.0
        %1656 = vmatpush1.xpose.msra.mxu0 0.0
        %1657 = vmatprep.subr.mxu0 0.0
        %1658 = vmatpush1.xpose.msra.mxu0 0.0
        %1659 = vmatprep.subr.mxu0 0.0
        %1660 = vmatpush1.xpose.msra.mxu0 0.0
        %1661 = vmatprep.mubr.f32.mxu0 0.0
        %1662 = vmatmul.mubr.f32.gmra.mrb[0].mxu0 %v1565
        %v1663 = vpop.f32.mrb[0].mxu0
        %v1664 = vadd.f32 0.0, %v1663
        %v1665 = vpop.f32.mrb[0].mxu0
        %1666 = vmatprep.mubr.f32.mxu0 0.0
        %1667 = vmatmul.mubr.f32.gmra.mrb[0].mxu0 %v1567
        %v1668 = vpop.f32.mrb[0].mxu0
        %v1669 = vadd.f32 0.0, %v1668
        %v1670 = vpop.f32.mrb[0].mxu0
        %1671 = vmatprep.mubr.f32.mxu0 0.0
        %1672 = vmatmul.mubr.f32.gmra.mrb[0].mxu0 %v1569
        %v1673 = vpop.f32.mrb[0].mxu0
        %v1674 = vadd.f32 0.0, %v1673
        %v1675 = vpop.f32.mrb[0].mxu0
        %1676 = vmatprep.mubr.f32.mxu0 0.0
        %1677 = vmatmul.mubr.f32.gmra.mrb[0].mxu0 %v1571
        %v1678 = vpop.f32.mrb[0].mxu0
        %v1679 = vadd.f32 0.0, %v1678
        %v1680 = vpop.f32.mrb[0].mxu0
        %1681 = vmatprep.mubr.f32.mxu0 0.0
        %1682 = vmatmul.mubr.f32.gmra.mrb[0].mxu0 %v1573
        %v1683 = vpop.f32.mrb[0].mxu0
        %v1684 = vadd.f32 0.0, %v1683
        %v1685 = vpop.f32.mrb[0].mxu0
        %1686 = vmatprep.mubr.f32.mxu0 0.0
        %1687 = vmatmul.mubr.f32.gmra.mrb[0].mxu0 %v1575
        %v1688 = vpop.f32.mrb[0].mxu0
        %v1689 = vadd.f32 0.0, %v1688
        %v1690 = vpop.f32.mrb[0].mxu0
        %1691 = vmatprep.mubr.f32.mxu0 0.0
        %1692 = vmatmul.mubr.f32.gmra.mrb[0].mxu0 %v1577
        %v1693 = vpop.f32.mrb[0].mxu0
        %v1694 = vadd.f32 0.0, %v1693
        %v1695 = vpop.f32.mrb[0].mxu0
        %1696 = vmatprep.mubr.f32.mxu0 0.0
        %1697 = vmatmul.mubr.f32.gmra.mrb[0].mxu0 %v1579
        %v1698 = vpop.f32.mrb[0].mxu0
        %v1699 = vadd.f32 0.0, %v1698
        %v1700 = vpop.f32.mrb[0].mxu0
        %1701 = vdwg.mxu0
        %v1702 = vsel %vm1290, %v1227, 0
        %v1704 = vsel %vm1290, %v1229, 0
        %v1706 = vsel %vm1290, %v1231, 0
        %v1708 = vsel %vm1290, %v1233, 0
        %v1710 = vsel %vm1290, %v1235, 0
        %v1712 = vsel %vm1290, %v1237, 0
        %v1714 = vsel %vm1290, %v1239, 0
        %v1716 = vsel %vm1290, %v1241, 0
        %v1718 = vsel %vm1290, %v1275, 0
        %v1720 = vsel %vm1290, %v1277, 0
        %v1722 = vsel %vm1290, %v1279, 0
        %v1724 = vsel %vm1290, %v1281, 0
        %v1726 = vsel %vm1290, %v1283, 0
        %v1728 = vsel %vm1290, %v1285, 0
        %v1730 = vsel %vm1290, %v1287, 0
        %v1732 = vsel %vm1290, %v1289, 0
        %1734 = vmatprep.subr.mxu0 0.0
        %1735 = vmatpush1.xpose.msra.mxu0 %v1718
        %1736 = vmatprep.subr.mxu0 0.0
        %1737 = vmatpush1.xpose.msra.mxu0 %v1720
        %1738 = vmatprep.subr.mxu0 0.0
        %1739 = vmatpush1.xpose.msra.mxu0 %v1722
        %1740 = vmatprep.subr.mxu0 0.0
        %1741 = vmatpush1.xpose.msra.mxu0 %v1724
        %1742 = vmatprep.subr.mxu0 0.0
        %1743 = vmatpush1.xpose.msra.mxu0 %v1726
        %1744 = vmatprep.subr.mxu0 0.0
        %1745 = vmatpush1.xpose.msra.mxu0 %v1728
        %1746 = vmatprep.subr.mxu0 0.0
        %1747 = vmatpush1.xpose.msra.mxu0 %v1730
        %1748 = vmatprep.subr.mxu0 0.0
        %1749 = vmatpush1.xpose.msra.mxu0 %v1732
        %1750 = vmatprep.subr.mxu0 0.0
        %1751 = vmatpush1.xpose.msra.mxu0 0.0
        %1752 = vmatprep.subr.mxu0 0.0
        %1753 = vmatpush1.xpose.msra.mxu0 0.0
        %1754 = vmatprep.subr.mxu0 0.0
        %1755 = vmatpush1.xpose.msra.mxu0 0.0
        %1756 = vmatprep.subr.mxu0 0.0
        %1757 = vmatpush1.xpose.msra.mxu0 0.0
        %1758 = vmatprep.subr.mxu0 0.0
        %1759 = vmatpush1.xpose.msra.mxu0 0.0
        %1760 = vmatprep.subr.mxu0 0.0
        %1761 = vmatpush1.xpose.msra.mxu0 0.0
        %1762 = vmatprep.subr.mxu0 0.0
        %1763 = vmatpush1.xpose.msra.mxu0 0.0
        %1764 = vmatprep.subr.mxu0 0.0
        %1765 = vmatpush1.xpose.msra.mxu0 0.0
        %1766 = vmatprep.subr.mxu0 0.0
        %1767 = vmatpush1.xpose.msra.mxu0 0.0
        %1768 = vmatprep.subr.mxu0 0.0
        %1769 = vmatpush1.xpose.msra.mxu0 0.0
        %1770 = vmatprep.subr.mxu0 0.0
        %1771 = vmatpush1.xpose.msra.mxu0 0.0
        %1772 = vmatprep.subr.mxu0 0.0
        %1773 = vmatpush1.xpose.msra.mxu0 0.0
        %1774 = vmatprep.subr.mxu0 0.0
        %1775 = vmatpush1.xpose.msra.mxu0 0.0
        %1776 = vmatprep.subr.mxu0 0.0
        %1777 = vmatpush1.xpose.msra.mxu0 0.0
        %1778 = vmatprep.subr.mxu0 0.0
        %1779 = vmatpush1.xpose.msra.mxu0 0.0
        %1780 = vmatprep.subr.mxu0 0.0
        %1781 = vmatpush1.xpose.msra.mxu0 0.0
        %1782 = vmatprep.subr.mxu0 0.0
        %1783 = vmatpush1.xpose.msra.mxu0 0.0
        %1784 = vmatprep.subr.mxu0 0.0
        %1785 = vmatpush1.xpose.msra.mxu0 0.0
        %1786 = vmatprep.subr.mxu0 0.0
        %1787 = vmatpush1.xpose.msra.mxu0 0.0
        %1788 = vmatprep.subr.mxu0 0.0
        %1789 = vmatpush1.xpose.msra.mxu0 0.0
        %1790 = vmatprep.subr.mxu0 0.0
        %1791 = vmatpush1.xpose.msra.mxu0 0.0
        %1792 = vmatprep.subr.mxu0 0.0
        %1793 = vmatpush1.xpose.msra.mxu0 0.0
        %1794 = vmatprep.subr.mxu0 0.0
        %1795 = vmatpush1.xpose.msra.mxu0 0.0
        %1796 = vmatprep.subr.mxu0 0.0
        %1797 = vmatpush1.xpose.msra.mxu0 0.0
        %1798 = vmatprep.mubr.f32.mxu0 0.0
        %1799 = vmatmul.mubr.f32.gmra.mrb[0].mxu0 %v1702
        %v1800 = vpop.f32.mrb[0].mxu0
        %v1801 = vadd.f32 0.0, %v1800
        %v1802 = vpop.f32.mrb[0].mxu0
        %1803 = vmatprep.mubr.f32.mxu0 0.0
        %1804 = vmatmul.mubr.f32.gmra.mrb[0].mxu0 %v1704
        %v1805 = vpop.f32.mrb[0].mxu0
        %v1806 = vadd.f32 0.0, %v1805
        %v1807 = vpop.f32.mrb[0].mxu0
        %1808 = vmatprep.mubr.f32.mxu0 0.0
        %1809 = vmatmul.mubr.f32.gmra.mrb[0].mxu0 %v1706
        %v1810 = vpop.f32.mrb[0].mxu0
        %v1811 = vadd.f32 0.0, %v1810
        %v1812 = vpop.f32.mrb[0].mxu0
        %1813 = vmatprep.mubr.f32.mxu0 0.0
        %1814 = vmatmul.mubr.f32.gmra.mrb[0].mxu0 %v1708
        %v1815 = vpop.f32.mrb[0].mxu0
        %v1816 = vadd.f32 0.0, %v1815
        %v1817 = vpop.f32.mrb[0].mxu0
        %1818 = vmatprep.mubr.f32.mxu0 0.0
        %1819 = vmatmul.mubr.f32.gmra.mrb[0].mxu0 %v1710
        %v1820 = vpop.f32.mrb[0].mxu0
        %v1821 = vadd.f32 0.0, %v1820
        %v1822 = vpop.f32.mrb[0].mxu0
        %1823 = vmatprep.mubr.f32.mxu0 0.0
        %1824 = vmatmul.mubr.f32.gmra.mrb[0].mxu0 %v1712
        %v1825 = vpop.f32.mrb[0].mxu0
        %v1826 = vadd.f32 0.0, %v1825
        %v1827 = vpop.f32.mrb[0].mxu0
        %1828 = vmatprep.mubr.f32.mxu0 0.0
        %1829 = vmatmul.mubr.f32.gmra.mrb[0].mxu0 %v1714
        %v1830 = vpop.f32.mrb[0].mxu0
        %v1831 = vadd.f32 0.0, %v1830
        %v1832 = vpop.f32.mrb[0].mxu0
        %1833 = vmatprep.mubr.f32.mxu0 0.0
        %1834 = vmatmul.mubr.f32.gmra.mrb[0].mxu0 %v1716
        %v1835 = vpop.f32.mrb[0].mxu0
        %v1836 = vadd.f32 0.0, %v1835
        %v1837 = vpop.f32.mrb[0].mxu0
        %1838 = vdwg.mxu0
        %v1839 = vmul.f32 %v1390, 0.25
        %v1840 = vmul.f32 %v1395, 0.25
        %v1841 = vmul.f32 %v1400, 0.25
        %v1842 = vmul.f32 %v1405, 0.25
        %v1843 = vmul.f32 %v1410, 0.25
        %v1844 = vmul.f32 %v1415, 0.25
        %v1845 = vmul.f32 %v1420, 0.25
        %v1846 = vmul.f32 %v1425, 0.25
        %v1847 = vmul.f32 %v1527, 0.25
        %v1848 = vmul.f32 %v1532, 0.25
        %v1849 = vmul.f32 %v1537, 0.25
        %v1850 = vmul.f32 %v1542, 0.25
        %v1851 = vmul.f32 %v1547, 0.25
        %v1852 = vmul.f32 %v1552, 0.25
        %v1853 = vmul.f32 %v1557, 0.25
        %v1854 = vmul.f32 %v1562, 0.25
        %v1855 = vmul.f32 %v1664, 0.25
        %v1856 = vmul.f32 %v1669, 0.25
        %v1857 = vmul.f32 %v1674, 0.25
        %v1858 = vmul.f32 %v1679, 0.25
        %v1859 = vmul.f32 %v1684, 0.25
        %v1860 = vmul.f32 %v1689, 0.25
        %v1861 = vmul.f32 %v1694, 0.25
        %v1862 = vmul.f32 %v1699, 0.25
        %v1863 = vmul.f32 %v1801, 0.25
        %v1864 = vmul.f32 %v1806, 0.25
        %v1865 = vmul.f32 %v1811, 0.25
        %v1866 = vmul.f32 %v1816, 0.25
        %v1867 = vmul.f32 %v1821, 0.25
        %v1868 = vmul.f32 %v1826, 0.25
        %v1869 = vmul.f32 %v1831, 0.25
        %v1870 = vmul.f32 %v1836, 0.25
        %v1875 = vlaneseq
        %v1876 = vshrl.u32 %v1875, 7
        %v1877 = vsub.s32 0, %v1876
        %v1878 = vrot.slane %v372, %v1877
        %v1879 = vlaneseq
        %v1880 = vshrl.u32 %v1879, 7
        %v1881 = vsub.s32 0, %v1880
        %v1882 = vrot.slane %v373, %v1881
        %v1883 = vlaneseq
        %v1884 = vshrl.u32 %v1883, 7
        %v1885 = vsub.s32 0, %v1884
        %v1886 = vrot.slane %v374, %v1885
        %v1887 = vlaneseq
        %v1888 = vshrl.u32 %v1887, 7
        %v1889 = vsub.s32 0, %v1888
        %v1890 = vrot.slane %v375, %v1889
        %v1895 = vadd.f32 %v1839, %v1878
        %v1896 = vadd.f32 %v1840, %v1878
        %v1897 = vadd.f32 %v1841, %v1878
        %v1898 = vadd.f32 %v1842, %v1878
        %v1899 = vadd.f32 %v1843, %v1878
        %v1900 = vadd.f32 %v1844, %v1878
        %v1901 = vadd.f32 %v1845, %v1878
        %v1902 = vadd.f32 %v1846, %v1878
        %v1903 = vadd.f32 %v1847, %v1882
        %v1904 = vadd.f32 %v1848, %v1882
        %v1905 = vadd.f32 %v1849, %v1882
        %v1906 = vadd.f32 %v1850, %v1882
        %v1907 = vadd.f32 %v1851, %v1882
        %v1908 = vadd.f32 %v1852, %v1882
        %v1909 = vadd.f32 %v1853, %v1882
        %v1910 = vadd.f32 %v1854, %v1882
        %v1911 = vadd.f32 %v1855, %v1886
        %v1912 = vadd.f32 %v1856, %v1886
        %v1913 = vadd.f32 %v1857, %v1886
        %v1914 = vadd.f32 %v1858, %v1886
        %v1915 = vadd.f32 %v1859, %v1886
        %v1916 = vadd.f32 %v1860, %v1886
        %v1917 = vadd.f32 %v1861, %v1886
        %v1918 = vadd.f32 %v1862, %v1886
        %v1919 = vadd.f32 %v1863, %v1890
        %v1920 = vadd.f32 %v1864, %v1890
        %v1921 = vadd.f32 %v1865, %v1890
        %v1922 = vadd.f32 %v1866, %v1890
        %v1923 = vadd.f32 %v1867, %v1890
        %v1924 = vadd.f32 %v1868, %v1890
        %v1925 = vadd.f32 %v1869, %v1890
        %v1926 = vadd.f32 %v1870, %v1890
        %vm1927 = vcmask 523264
        %v1928 = vsel %vm1927, %v1895, -inf
        %1929 = vmax.xlane.f32.xlu0 %v1928
        %v1930 = vpop.xlane.xlu0 %1929
        %v1931 = vsel %vm1927, %v1896, -inf
        %1932 = vmax.xlane.f32.xlu0 %v1931
        %v1933 = vpop.xlane.xlu0 %1932
        %v1934 = vsel %vm1927, %v1897, -inf
        %1935 = vmax.xlane.f32.xlu0 %v1934
        %v1936 = vpop.xlane.xlu0 %1935
        %v1937 = vsel %vm1927, %v1898, -inf
        %1938 = vmax.xlane.f32.xlu0 %v1937
        %v1939 = vpop.xlane.xlu0 %1938
        %v1940 = vsel %vm1927, %v1899, -inf
        %1941 = vmax.xlane.f32.xlu0 %v1940
        %v1942 = vpop.xlane.xlu0 %1941
        %v1943 = vsel %vm1927, %v1900, -inf
        %1944 = vmax.xlane.f32.xlu0 %v1943
        %v1945 = vpop.xlane.xlu0 %1944
        %v1946 = vsel %vm1927, %v1901, -inf
        %1947 = vmax.xlane.f32.xlu0 %v1946
        %v1948 = vpop.xlane.xlu0 %1947
        %v1949 = vsel %vm1927, %v1902, -inf
        %1950 = vmax.xlane.f32.xlu0 %v1949
        %v1951 = vpop.xlane.xlu0 %1950
        %v1952 = vsel %vm1927, %v1903, -inf
        %1953 = vmax.xlane.f32.xlu0 %v1952
        %v1954 = vpop.xlane.xlu0 %1953
        %v1955 = vsel %vm1927, %v1904, -inf
        %1956 = vmax.xlane.f32.xlu0 %v1955
        %v1957 = vpop.xlane.xlu0 %1956
        %v1958 = vsel %vm1927, %v1905, -inf
        %1959 = vmax.xlane.f32.xlu0 %v1958
        %v1960 = vpop.xlane.xlu0 %1959
        %v1961 = vsel %vm1927, %v1906, -inf
        %1962 = vmax.xlane.f32.xlu0 %v1961
        %v1963 = vpop.xlane.xlu0 %1962
        %v1964 = vsel %vm1927, %v1907, -inf
        %1965 = vmax.xlane.f32.xlu0 %v1964
        %v1966 = vpop.xlane.xlu0 %1965
        %v1967 = vsel %vm1927, %v1908, -inf
        %1968 = vmax.xlane.f32.xlu0 %v1967
        %v1969 = vpop.xlane.xlu0 %1968
        %v1970 = vsel %vm1927, %v1909, -inf
        %1971 = vmax.xlane.f32.xlu0 %v1970
        %v1972 = vpop.xlane.xlu0 %1971
        %v1973 = vsel %vm1927, %v1910, -inf
        %1974 = vmax.xlane.f32.xlu0 %v1973
        %v1975 = vpop.xlane.xlu0 %1974
        %v1976 = vsel %vm1927, %v1911, -inf
        %1977 = vmax.xlane.f32.xlu0 %v1976
        %v1978 = vpop.xlane.xlu0 %1977
        %v1979 = vsel %vm1927, %v1912, -inf
        %1980 = vmax.xlane.f32.xlu0 %v1979
        %v1981 = vpop.xlane.xlu0 %1980
        %v1982 = vsel %vm1927, %v1913, -inf
        %1983 = vmax.xlane.f32.xlu0 %v1982
        %v1984 = vpop.xlane.xlu0 %1983
        %v1985 = vsel %vm1927, %v1914, -inf
        %1986 = vmax.xlane.f32.xlu0 %v1985
        %v1987 = vpop.xlane.xlu0 %1986
        %v1988 = vsel %vm1927, %v1915, -inf
        %1989 = vmax.xlane.f32.xlu0 %v1988
        %v1990 = vpop.xlane.xlu0 %1989
        %v1991 = vsel %vm1927, %v1916, -inf
        %1992 = vmax.xlane.f32.xlu0 %v1991
        %v1993 = vpop.xlane.xlu0 %1992
        %v1994 = vsel %vm1927, %v1917, -inf
        %1995 = vmax.xlane.f32.xlu0 %v1994
        %v1996 = vpop.xlane.xlu0 %1995
        %v1997 = vsel %vm1927, %v1918, -inf
        %1998 = vmax.xlane.f32.xlu0 %v1997
        %v1999 = vpop.xlane.xlu0 %1998
        %v2000 = vsel %vm1927, %v1919, -inf
        %2001 = vmax.xlane.f32.xlu0 %v2000
        %v2002 = vpop.xlane.xlu0 %2001
        %v2003 = vsel %vm1927, %v1920, -inf
        %2004 = vmax.xlane.f32.xlu0 %v2003
        %v2005 = vpop.xlane.xlu0 %2004
        %v2006 = vsel %vm1927, %v1921, -inf
        %2007 = vmax.xlane.f32.xlu0 %v2006
        %v2008 = vpop.xlane.xlu0 %2007
        %v2009 = vsel %vm1927, %v1922, -inf
        %2010 = vmax.xlane.f32.xlu0 %v2009
        %v2011 = vpop.xlane.xlu0 %2010
        %v2012 = vsel %vm1927, %v1923, -inf
        %2013 = vmax.xlane.f32.xlu0 %v2012
        %v2014 = vpop.xlane.xlu0 %2013
        %v2015 = vsel %vm1927, %v1924, -inf
        %2016 = vmax.xlane.f32.xlu0 %v2015
        %v2017 = vpop.xlane.xlu0 %2016
        %v2018 = vsel %vm1927, %v1925, -inf
        %2019 = vmax.xlane.f32.xlu0 %v2018
        %v2020 = vpop.xlane.xlu0 %2019
        %v2021 = vsel %vm1927, %v1926, -inf
        %2022 = vmax.xlane.f32.xlu0 %v2021
        %v2023 = vpop.xlane.xlu0 %2022
        %v2024 = vsub.f32 %v1895, %v1930
        %v2025 = vsub.f32 %v1896, %v1933
        %v2026 = vsub.f32 %v1897, %v1936
        %v2027 = vsub.f32 %v1898, %v1939
        %v2028 = vsub.f32 %v1899, %v1942
        %v2029 = vsub.f32 %v1900, %v1945
        %v2030 = vsub.f32 %v1901, %v1948
        %v2031 = vsub.f32 %v1902, %v1951
        %v2032 = vsub.f32 %v1903, %v1954
        %v2033 = vsub.f32 %v1904, %v1957
        %v2034 = vsub.f32 %v1905, %v1960
        %v2035 = vsub.f32 %v1906, %v1963
        %v2036 = vsub.f32 %v1907, %v1966
        %v2037 = vsub.f32 %v1908, %v1969
        %v2038 = vsub.f32 %v1909, %v1972
        %v2039 = vsub.f32 %v1910, %v1975
        %v2040 = vsub.f32 %v1911, %v1978
        %v2041 = vsub.f32 %v1912, %v1981
        %v2042 = vsub.f32 %v1913, %v1984
        %v2043 = vsub.f32 %v1914, %v1987
        %v2044 = vsub.f32 %v1915, %v1990
        %v2045 = vsub.f32 %v1916, %v1993
        %v2046 = vsub.f32 %v1917, %v1996
        %v2047 = vsub.f32 %v1918, %v1999
        %v2048 = vsub.f32 %v1919, %v2002
        %v2049 = vsub.f32 %v1920, %v2005
        %v2050 = vsub.f32 %v1921, %v2008
        %v2051 = vsub.f32 %v1922, %v2011
        %v2052 = vsub.f32 %v1923, %v2014
        %v2053 = vsub.f32 %v1924, %v2017
        %v2054 = vsub.f32 %v1925, %v2020
        %v2055 = vsub.f32 %v1926, %v2023
        %v2056 = vmul.f32 %v2024, 1.442695
        %v2057 = vpow.pop %v2056
        %v2058 = vmul.f32 %v2025, 1.442695
        %v2059 = vpow.pop %v2058
        %v2060 = vmul.f32 %v2026, 1.442695
        %v2061 = vpow.pop %v2060
        %v2062 = vmul.f32 %v2027, 1.442695
        %v2063 = vpow.pop %v2062
        %v2064 = vmul.f32 %v2028, 1.442695
        %v2065 = vpow.pop %v2064
        %v2066 = vmul.f32 %v2029, 1.442695
        %v2067 = vpow.pop %v2066
        %v2068 = vmul.f32 %v2030, 1.442695
        %v2069 = vpow.pop %v2068
        %v2070 = vmul.f32 %v2031, 1.442695
        %v2071 = vpow.pop %v2070
        %v2072 = vmul.f32 %v2032, 1.442695
        %v2073 = vpow.pop %v2072
        %v2074 = vmul.f32 %v2033, 1.442695
        %v2075 = vpow.pop %v2074
        %v2076 = vmul.f32 %v2034, 1.442695
        %v2077 = vpow.pop %v2076
        %v2078 = vmul.f32 %v2035, 1.442695
        %v2079 = vpow.pop %v2078
        %v2080 = vmul.f32 %v2036, 1.442695
        %v2081 = vpow.pop %v2080
        %v2082 = vmul.f32 %v2037, 1.442695
        %v2083 = vpow.pop %v2082
        %v2084 = vmul.f32 %v2038, 1.442695
        %v2085 = vpow.pop %v2084
        %v2086 = vmul.f32 %v2039, 1.442695
        %v2087 = vpow.pop %v2086
        %v2088 = vmul.f32 %v2040, 1.442695
        %v2089 = vpow.pop %v2088
        %v2090 = vmul.f32 %v2041, 1.442695
        %v2091 = vpow.pop %v2090
        %v2092 = vmul.f32 %v2042, 1.442695
        %v2093 = vpow.pop %v2092
        %v2094 = vmul.f32 %v2043, 1.442695
        %v2095 = vpow.pop %v2094
        %v2096 = vmul.f32 %v2044, 1.442695
        %v2097 = vpow.pop %v2096
        %v2098 = vmul.f32 %v2045, 1.442695
        %v2099 = vpow.pop %v2098
        %v2100 = vmul.f32 %v2046, 1.442695
        %v2101 = vpow.pop %v2100
        %v2102 = vmul.f32 %v2047, 1.442695
        %v2103 = vpow.pop %v2102
        %v2104 = vmul.f32 %v2048, 1.442695
        %v2105 = vpow.pop %v2104
        %v2106 = vmul.f32 %v2049, 1.442695
        %v2107 = vpow.pop %v2106
        %v2108 = vmul.f32 %v2050, 1.442695
        %v2109 = vpow.pop %v2108
        %v2110 = vmul.f32 %v2051, 1.442695
        %v2111 = vpow.pop %v2110
        %v2112 = vmul.f32 %v2052, 1.442695
        %v2113 = vpow.pop %v2112
        %v2114 = vmul.f32 %v2053, 1.442695
        %v2115 = vpow.pop %v2114
        %v2116 = vmul.f32 %v2054, 1.442695
        %v2117 = vpow.pop %v2116
        %v2118 = vmul.f32 %v2055, 1.442695
        %v2119 = vpow.pop %v2118
        %v2120 = vsel %vm1927, %v2057, 0.0
        %2121 = vadd.xlane.f32.xlu0 %v2120
        %v2122 = vpop.xlane.xlu0 %2121
        %v2123 = vsel %vm1927, %v2059, 0.0
        %2124 = vadd.xlane.f32.xlu0 %v2123
        %v2125 = vpop.xlane.xlu0 %2124
        %v2126 = vsel %vm1927, %v2061, 0.0
        %2127 = vadd.xlane.f32.xlu0 %v2126
        %v2128 = vpop.xlane.xlu0 %2127
        %v2129 = vsel %vm1927, %v2063, 0.0
        %2130 = vadd.xlane.f32.xlu0 %v2129
        %v2131 = vpop.xlane.xlu0 %2130
        %v2132 = vsel %vm1927, %v2065, 0.0
        %2133 = vadd.xlane.f32.xlu0 %v2132
        %v2134 = vpop.xlane.xlu0 %2133
        %v2135 = vsel %vm1927, %v2067, 0.0
        %2136 = vadd.xlane.f32.xlu0 %v2135
        %v2137 = vpop.xlane.xlu0 %2136
        %v2138 = vsel %vm1927, %v2069, 0.0
        %2139 = vadd.xlane.f32.xlu0 %v2138
        %v2140 = vpop.xlane.xlu0 %2139
        %v2141 = vsel %vm1927, %v2071, 0.0
        %2142 = vadd.xlane.f32.xlu0 %v2141
        %v2143 = vpop.xlane.xlu0 %2142
        %v2144 = vsel %vm1927, %v2073, 0.0
        %2145 = vadd.xlane.f32.xlu0 %v2144
        %v2146 = vpop.xlane.xlu0 %2145
        %v2147 = vsel %vm1927, %v2075, 0.0
        %2148 = vadd.xlane.f32.xlu0 %v2147
        %v2149 = vpop.xlane.xlu0 %2148
        %v2150 = vsel %vm1927, %v2077, 0.0
        %2151 = vadd.xlane.f32.xlu0 %v2150
        %v2152 = vpop.xlane.xlu0 %2151
        %v2153 = vsel %vm1927, %v2079, 0.0
        %2154 = vadd.xlane.f32.xlu0 %v2153
        %v2155 = vpop.xlane.xlu0 %2154
        %v2156 = vsel %vm1927, %v2081, 0.0
        %2157 = vadd.xlane.f32.xlu0 %v2156
        %v2158 = vpop.xlane.xlu0 %2157
        %v2159 = vsel %vm1927, %v2083, 0.0
        %2160 = vadd.xlane.f32.xlu0 %v2159
        %v2161 = vpop.xlane.xlu0 %2160
        %v2162 = vsel %vm1927, %v2085, 0.0
        %2163 = vadd.xlane.f32.xlu0 %v2162
        %v2164 = vpop.xlane.xlu0 %2163
        %v2165 = vsel %vm1927, %v2087, 0.0
        %2166 = vadd.xlane.f32.xlu0 %v2165
        %v2167 = vpop.xlane.xlu0 %2166
        %v2168 = vsel %vm1927, %v2089, 0.0
        %2169 = vadd.xlane.f32.xlu0 %v2168
        %v2170 = vpop.xlane.xlu0 %2169
        %v2171 = vsel %vm1927, %v2091, 0.0
        %2172 = vadd.xlane.f32.xlu0 %v2171
        %v2173 = vpop.xlane.xlu0 %2172
        %v2174 = vsel %vm1927, %v2093, 0.0
        %2175 = vadd.xlane.f32.xlu0 %v2174
        %v2176 = vpop.xlane.xlu0 %2175
        %v2177 = vsel %vm1927, %v2095, 0.0
        %2178 = vadd.xlane.f32.xlu0 %v2177
        %v2179 = vpop.xlane.xlu0 %2178
        %v2180 = vsel %vm1927, %v2097, 0.0
        %2181 = vadd.xlane.f32.xlu0 %v2180
        %v2182 = vpop.xlane.xlu0 %2181
        %v2183 = vsel %vm1927, %v2099, 0.0
        %2184 = vadd.xlane.f32.xlu0 %v2183
        %v2185 = vpop.xlane.xlu0 %2184
        %v2186 = vsel %vm1927, %v2101, 0.0
        %2187 = vadd.xlane.f32.xlu0 %v2186
        %v2188 = vpop.xlane.xlu0 %2187
        %v2189 = vsel %vm1927, %v2103, 0.0
        %2190 = vadd.xlane.f32.xlu0 %v2189
        %v2191 = vpop.xlane.xlu0 %2190
        %v2192 = vsel %vm1927, %v2105, 0.0
        %2193 = vadd.xlane.f32.xlu0 %v2192
        %v2194 = vpop.xlane.xlu0 %2193
        %v2195 = vsel %vm1927, %v2107, 0.0
        %2196 = vadd.xlane.f32.xlu0 %v2195
        %v2197 = vpop.xlane.xlu0 %2196
        %v2198 = vsel %vm1927, %v2109, 0.0
        %2199 = vadd.xlane.f32.xlu0 %v2198
        %v2200 = vpop.xlane.xlu0 %2199
        %v2201 = vsel %vm1927, %v2111, 0.0
        %2202 = vadd.xlane.f32.xlu0 %v2201
        %v2203 = vpop.xlane.xlu0 %2202
        %v2204 = vsel %vm1927, %v2113, 0.0
        %2205 = vadd.xlane.f32.xlu0 %v2204
        %v2206 = vpop.xlane.xlu0 %2205
        %v2207 = vsel %vm1927, %v2115, 0.0
        %2208 = vadd.xlane.f32.xlu0 %v2207
        %v2209 = vpop.xlane.xlu0 %2208
        %v2210 = vsel %vm1927, %v2117, 0.0
        %2211 = vadd.xlane.f32.xlu0 %v2210
        %v2212 = vpop.xlane.xlu0 %2211
        %v2213 = vsel %vm1927, %v2119, 0.0
        %2214 = vadd.xlane.f32.xlu0 %v2213
        %v2215 = vpop.xlane.xlu0 %2214
        %v2216 = vrcp.pop %v2122
        %v2217 = vrcp.pop %v2125
        %v2218 = vrcp.pop %v2128
        %v2219 = vrcp.pop %v2131
        %v2220 = vrcp.pop %v2134
        %v2221 = vrcp.pop %v2137
        %v2222 = vrcp.pop %v2140
        %v2223 = vrcp.pop %v2143
        %v2224 = vrcp.pop %v2146
        %v2225 = vrcp.pop %v2149
        %v2226 = vrcp.pop %v2152
        %v2227 = vrcp.pop %v2155
        %v2228 = vrcp.pop %v2158
        %v2229 = vrcp.pop %v2161
        %v2230 = vrcp.pop %v2164
        %v2231 = vrcp.pop %v2167
        %v2232 = vrcp.pop %v2170
        %v2233 = vrcp.pop %v2173
        %v2234 = vrcp.pop %v2176
        %v2235 = vrcp.pop %v2179
        %v2236 = vrcp.pop %v2182
        %v2237 = vrcp.pop %v2185
        %v2238 = vrcp.pop %v2188
        %v2239 = vrcp.pop %v2191
        %v2240 = vrcp.pop %v2194
        %v2241 = vrcp.pop %v2197
        %v2242 = vrcp.pop %v2200
        %v2243 = vrcp.pop %v2203
        %v2244 = vrcp.pop %v2206
        %v2245 = vrcp.pop %v2209
        %v2246 = vrcp.pop %v2212
        %v2247 = vrcp.pop %v2215
        %v2248 = vmul.f32 %v2057, %v2216
        %v2249 = vmul.f32 %v2059, %v2217
        %v2250 = vmul.f32 %v2061, %v2218
        %v2251 = vmul.f32 %v2063, %v2219
        %v2252 = vmul.f32 %v2065, %v2220
        %v2253 = vmul.f32 %v2067, %v2221
        %v2254 = vmul.f32 %v2069, %v2222
        %v2255 = vmul.f32 %v2071, %v2223
        %v2256 = vmul.f32 %v2073, %v2224
        %v2257 = vmul.f32 %v2075, %v2225
        %v2258 = vmul.f32 %v2077, %v2226
        %v2259 = vmul.f32 %v2079, %v2227
        %v2260 = vmul.f32 %v2081, %v2228
        %v2261 = vmul.f32 %v2083, %v2229
        %v2262 = vmul.f32 %v2085, %v2230
        %v2263 = vmul.f32 %v2087, %v2231
        %v2264 = vmul.f32 %v2089, %v2232
        %v2265 = vmul.f32 %v2091, %v2233
        %v2266 = vmul.f32 %v2093, %v2234
        %v2267 = vmul.f32 %v2095, %v2235
        %v2268 = vmul.f32 %v2097, %v2236
        %v2269 = vmul.f32 %v2099, %v2237
        %v2270 = vmul.f32 %v2101, %v2238
        %v2271 = vmul.f32 %v2103, %v2239
        %v2272 = vmul.f32 %v2105, %v2240
        %v2273 = vmul.f32 %v2107, %v2241
        %v2274 = vmul.f32 %v2109, %v2242
        %v2275 = vmul.f32 %v2111, %v2243
        %v2276 = vmul.f32 %v2113, %v2244
        %v2277 = vmul.f32 %v2115, %v2245
        %v2278 = vmul.f32 %v2117, %v2246
        %v2279 = vmul.f32 %v2119, %v2247
        %2280 = vrot.lane.b32.xlu0 %v1015, 96
        %v2281 = vpop.permute.xlu0 %2280
        %2282 = vrot.lane.b32.xlu0 %v1020, 96
        %v2283 = vpop.permute.xlu0 %2282
        %2284 = vrot.lane.b32.xlu0 %v1025, 96
        %v2285 = vpop.permute.xlu0 %2284
        %2286 = vrot.lane.b32.xlu0 %v1030, 96
        %v2287 = vpop.permute.xlu0 %2286
        %2288 = vrot.lane.b32.xlu0 %v1035, 96
        %v2289 = vpop.permute.xlu0 %2288
        %2290 = vrot.lane.b32.xlu0 %v1040, 96
        %v2291 = vpop.permute.xlu0 %2290
        %2292 = vrot.lane.b32.xlu0 %v1045, 96
        %v2293 = vpop.permute.xlu0 %2292
        %2294 = vrot.lane.b32.xlu0 %v1050, 96
        %v2295 = vpop.permute.xlu0 %2294
        %v2305 = vsel %vm1927, %v2248, 0
        %v2308 = vsel %vm1927, %v2249, 0
        %v2311 = vsel %vm1927, %v2250, 0
        %v2314 = vsel %vm1927, %v2251, 0
        %v2317 = vsel %vm1927, %v2252, 0
        %v2320 = vsel %vm1927, %v2253, 0
        %v2323 = vsel %vm1927, %v2254, 0
        %v2326 = vsel %vm1927, %v2255, 0
        %2328 = vmatprep.subr.mxu0 0.0
        %2329 = vmatpush1.msra.mxu0 %v2281
        %2330 = vmatprep.subr.mxu0 0.0
        %2331 = vmatpush1.msra.mxu0 %v2283
        %2332 = vmatprep.subr.mxu0 0.0
        %2333 = vmatpush1.msra.mxu0 %v2285
        %2334 = vmatprep.subr.mxu0 0.0
        %2335 = vmatpush1.msra.mxu0 %v2287
        %2336 = vmatprep.subr.mxu0 0.0
        %2337 = vmatpush1.msra.mxu0 %v2289
        %2338 = vmatprep.subr.mxu0 0.0
        %2339 = vmatpush1.msra.mxu0 %v2291
        %2340 = vmatprep.subr.mxu0 0.0
        %2341 = vmatpush1.msra.mxu0 %v2293
        %2342 = vmatprep.subr.mxu0 0.0
        %2343 = vmatpush1.msra.mxu0 %v2295
        %2344 = vmatprep.subr.mxu0 0.0
        %2345 = vmatpush1.msra.mxu0 0.0
        %2346 = vmatprep.subr.mxu0 0.0
        %2347 = vmatpush1.msra.mxu0 0.0
        %2348 = vmatprep.subr.mxu0 0.0
        %2349 = vmatpush1.msra.mxu0 0.0
        %2350 = vmatprep.subr.mxu0 0.0
        %2351 = vmatpush1.msra.mxu0 0.0
        %2352 = vmatprep.subr.mxu0 0.0
        %2353 = vmatpush1.msra.mxu0 0.0
        %2354 = vmatprep.subr.mxu0 0.0
        %2355 = vmatpush1.msra.mxu0 0.0
        %2356 = vmatprep.subr.mxu0 0.0
        %2357 = vmatpush1.msra.mxu0 0.0
        %2358 = vmatprep.subr.mxu0 0.0
        %2359 = vmatpush1.msra.mxu0 0.0
        %2360 = vmatprep.subr.mxu0 0.0
        %2361 = vmatpush1.msra.mxu0 0.0
        %2362 = vmatprep.subr.mxu0 0.0
        %2363 = vmatpush1.msra.mxu0 0.0
        %2364 = vmatprep.subr.mxu0 0.0
        %2365 = vmatpush1.msra.mxu0 0.0
        %2366 = vmatprep.subr.mxu0 0.0
        %2367 = vmatpush1.msra.mxu0 0.0
        %2368 = vmatprep.subr.mxu0 0.0
        %2369 = vmatpush1.msra.mxu0 0.0
        %2370 = vmatprep.subr.mxu0 0.0
        %2371 = vmatpush1.msra.mxu0 0.0
        %2372 = vmatprep.subr.mxu0 0.0
        %2373 = vmatpush1.msra.mxu0 0.0
        %2374 = vmatprep.subr.mxu0 0.0
        %2375 = vmatpush1.msra.mxu0 0.0
        %2376 = vmatprep.subr.mxu0 0.0
        %2377 = vmatpush1.msra.mxu0 0.0
        %2378 = vmatprep.subr.mxu0 0.0
        %2379 = vmatpush1.msra.mxu0 0.0
        %2380 = vmatprep.subr.mxu0 0.0
        %2381 = vmatpush1.msra.mxu0 0.0
        %2382 = vmatprep.subr.mxu0 0.0
        %2383 = vmatpush1.msra.mxu0 0.0
        %2384 = vmatprep.subr.mxu0 0.0
        %2385 = vmatpush1.msra.mxu0 0.0
        %2386 = vmatprep.subr.mxu0 0.0
        %2387 = vmatpush1.msra.mxu0 0.0
        %2388 = vmatprep.subr.mxu0 0.0
        %2389 = vmatpush1.msra.mxu0 0.0
        %2390 = vmatprep.subr.mxu0 0.0
        %2391 = vmatpush1.msra.mxu0 0.0
        %2392 = vmatprep.mubr.f32.mxu0 0.0
        %2393 = vmatmul.mubr.f32.gmra.mrb[0].mxu0 %v2305
        %v2394 = vpop.f32.mrb[0].mxu0
        %v2395 = vadd.f32 0.0, %v2394
        %v2396 = vpop.f32.mrb[0].mxu0
        %2397 = vmatprep.mubr.f32.mxu0 0.0
        %2398 = vmatmul.mubr.f32.gmra.mrb[0].mxu0 %v2308
        %v2399 = vpop.f32.mrb[0].mxu0
        %v2400 = vadd.f32 0.0, %v2399
        %v2401 = vpop.f32.mrb[0].mxu0
        %2402 = vmatprep.mubr.f32.mxu0 0.0
        %2403 = vmatmul.mubr.f32.gmra.mrb[0].mxu0 %v2311
        %v2404 = vpop.f32.mrb[0].mxu0
        %v2405 = vadd.f32 0.0, %v2404
        %v2406 = vpop.f32.mrb[0].mxu0
        %2407 = vmatprep.mubr.f32.mxu0 0.0
        %2408 = vmatmul.mubr.f32.gmra.mrb[0].mxu0 %v2314
        %v2409 = vpop.f32.mrb[0].mxu0
        %v2410 = vadd.f32 0.0, %v2409
        %v2411 = vpop.f32.mrb[0].mxu0
        %2412 = vmatprep.mubr.f32.mxu0 0.0
        %2413 = vmatmul.mubr.f32.gmra.mrb[0].mxu0 %v2317
        %v2414 = vpop.f32.mrb[0].mxu0
        %v2415 = vadd.f32 0.0, %v2414
        %v2416 = vpop.f32.mrb[0].mxu0
        %2417 = vmatprep.mubr.f32.mxu0 0.0
        %2418 = vmatmul.mubr.f32.gmra.mrb[0].mxu0 %v2320
        %v2419 = vpop.f32.mrb[0].mxu0
        %v2420 = vadd.f32 0.0, %v2419
        %v2421 = vpop.f32.mrb[0].mxu0
        %2422 = vmatprep.mubr.f32.mxu0 0.0
        %2423 = vmatmul.mubr.f32.gmra.mrb[0].mxu0 %v2323
        %v2424 = vpop.f32.mrb[0].mxu0
        %v2425 = vadd.f32 0.0, %v2424
        %v2426 = vpop.f32.mrb[0].mxu0
        %2427 = vmatprep.mubr.f32.mxu0 0.0
        %2428 = vmatmul.mubr.f32.gmra.mrb[0].mxu0 %v2326
        %v2429 = vpop.f32.mrb[0].mxu0
        %v2430 = vadd.f32 0.0, %v2429
        %v2431 = vpop.f32.mrb[0].mxu0
        %2432 = vdwg.mxu0
        %2433 = vrot.lane.b32.xlu0 %v1251, 96
        %v2434 = vpop.permute.xlu0 %2433
        %2435 = vrot.lane.b32.xlu0 %v1253, 96
        %v2436 = vpop.permute.xlu0 %2435
        %2437 = vrot.lane.b32.xlu0 %v1255, 96
        %v2438 = vpop.permute.xlu0 %2437
        %2439 = vrot.lane.b32.xlu0 %v1257, 96
        %v2440 = vpop.permute.xlu0 %2439
        %2441 = vrot.lane.b32.xlu0 %v1259, 96
        %v2442 = vpop.permute.xlu0 %2441
        %2443 = vrot.lane.b32.xlu0 %v1261, 96
        %v2444 = vpop.permute.xlu0 %2443
        %2445 = vrot.lane.b32.xlu0 %v1263, 96
        %v2446 = vpop.permute.xlu0 %2445
        %2447 = vrot.lane.b32.xlu0 %v1265, 96
        %v2448 = vpop.permute.xlu0 %2447
        %v2458 = vsel %vm1927, %v2256, 0
        %v2461 = vsel %vm1927, %v2257, 0
        %v2464 = vsel %vm1927, %v2258, 0
        %v2467 = vsel %vm1927, %v2259, 0
        %v2470 = vsel %vm1927, %v2260, 0
        %v2473 = vsel %vm1927, %v2261, 0
        %v2476 = vsel %vm1927, %v2262, 0
        %v2479 = vsel %vm1927, %v2263, 0
        %2481 = vmatprep.subr.mxu0 0.0
        %2482 = vmatpush1.msra.mxu0 %v2434
        %2483 = vmatprep.subr.mxu0 0.0
        %2484 = vmatpush1.msra.mxu0 %v2436
        %2485 = vmatprep.subr.mxu0 0.0
        %2486 = vmatpush1.msra.mxu0 %v2438
        %2487 = vmatprep.subr.mxu0 0.0
        %2488 = vmatpush1.msra.mxu0 %v2440
        %2489 = vmatprep.subr.mxu0 0.0
        %2490 = vmatpush1.msra.mxu0 %v2442
        %2491 = vmatprep.subr.mxu0 0.0
        %2492 = vmatpush1.msra.mxu0 %v2444
        %2493 = vmatprep.subr.mxu0 0.0
        %2494 = vmatpush1.msra.mxu0 %v2446
        %2495 = vmatprep.subr.mxu0 0.0
        %2496 = vmatpush1.msra.mxu0 %v2448
        %2497 = vmatprep.subr.mxu0 0.0
        %2498 = vmatpush1.msra.mxu0 0.0
        %2499 = vmatprep.subr.mxu0 0.0
        %2500 = vmatpush1.msra.mxu0 0.0
        %2501 = vmatprep.subr.mxu0 0.0
        %2502 = vmatpush1.msra.mxu0 0.0
        %2503 = vmatprep.subr.mxu0 0.0
        %2504 = vmatpush1.msra.mxu0 0.0
        %2505 = vmatprep.subr.mxu0 0.0
        %2506 = vmatpush1.msra.mxu0 0.0
        %2507 = vmatprep.subr.mxu0 0.0
        %2508 = vmatpush1.msra.mxu0 0.0
        %2509 = vmatprep.subr.mxu0 0.0
        %2510 = vmatpush1.msra.mxu0 0.0
        %2511 = vmatprep.subr.mxu0 0.0
        %2512 = vmatpush1.msra.mxu0 0.0
        %2513 = vmatprep.subr.mxu0 0.0
        %2514 = vmatpush1.msra.mxu0 0.0
        %2515 = vmatprep.subr.mxu0 0.0
        %2516 = vmatpush1.msra.mxu0 0.0
        %2517 = vmatprep.subr.mxu0 0.0
        %2518 = vmatpush1.msra.mxu0 0.0
        %2519 = vmatprep.subr.mxu0 0.0
        %2520 = vmatpush1.msra.mxu0 0.0
        %2521 = vmatprep.subr.mxu0 0.0
        %2522 = vmatpush1.msra.mxu0 0.0
        %2523 = vmatprep.subr.mxu0 0.0
        %2524 = vmatpush1.msra.mxu0 0.0
        %2525 = vmatprep.subr.mxu0 0.0
        %2526 = vmatpush1.msra.mxu0 0.0
        %2527 = vmatprep.subr.mxu0 0.0
        %2528 = vmatpush1.msra.mxu0 0.0
        %2529 = vmatprep.subr.mxu0 0.0
        %2530 = vmatpush1.msra.mxu0 0.0
        %2531 = vmatprep.subr.mxu0 0.0
        %2532 = vmatpush1.msra.mxu0 0.0
        %2533 = vmatprep.subr.mxu0 0.0
        %2534 = vmatpush1.msra.mxu0 0.0
        %2535 = vmatprep.subr.mxu0 0.0
        %2536 = vmatpush1.msra.mxu0 0.0
        %2537 = vmatprep.subr.mxu0 0.0
        %2538 = vmatpush1.msra.mxu0 0.0
        %2539 = vmatprep.subr.mxu0 0.0
        %2540 = vmatpush1.msra.mxu0 0.0
        %2541 = vmatprep.subr.mxu0 0.0
        %2542 = vmatpush1.msra.mxu0 0.0
        %2543 = vmatprep.subr.mxu0 0.0
        %2544 = vmatpush1.msra.mxu0 0.0
        %2545 = vmatprep.mubr.f32.mxu0 0.0
        %2546 = vmatmul.mubr.f32.gmra.mrb[0].mxu0 %v2458
        %v2547 = vpop.f32.mrb[0].mxu0
        %v2548 = vadd.f32 0.0, %v2547
        %v2549 = vpop.f32.mrb[0].mxu0
        %2550 = vmatprep.mubr.f32.mxu0 0.0
        %2551 = vmatmul.mubr.f32.gmra.mrb[0].mxu0 %v2461
        %v2552 = vpop.f32.mrb[0].mxu0
        %v2553 = vadd.f32 0.0, %v2552
        %v2554 = vpop.f32.mrb[0].mxu0
        %2555 = vmatprep.mubr.f32.mxu0 0.0
        %2556 = vmatmul.mubr.f32.gmra.mrb[0].mxu0 %v2464
        %v2557 = vpop.f32.mrb[0].mxu0
        %v2558 = vadd.f32 0.0, %v2557
        %v2559 = vpop.f32.mrb[0].mxu0
        %2560 = vmatprep.mubr.f32.mxu0 0.0
        %2561 = vmatmul.mubr.f32.gmra.mrb[0].mxu0 %v2467
        %v2562 = vpop.f32.mrb[0].mxu0
        %v2563 = vadd.f32 0.0, %v2562
        %v2564 = vpop.f32.mrb[0].mxu0
        %2565 = vmatprep.mubr.f32.mxu0 0.0
        %2566 = vmatmul.mubr.f32.gmra.mrb[0].mxu0 %v2470
        %v2567 = vpop.f32.mrb[0].mxu0
        %v2568 = vadd.f32 0.0, %v2567
        %v2569 = vpop.f32.mrb[0].mxu0
        %2570 = vmatprep.mubr.f32.mxu0 0.0
        %2571 = vmatmul.mubr.f32.gmra.mrb[0].mxu0 %v2473
        %v2572 = vpop.f32.mrb[0].mxu0
        %v2573 = vadd.f32 0.0, %v2572
        %v2574 = vpop.f32.mrb[0].mxu0
        %2575 = vmatprep.mubr.f32.mxu0 0.0
        %2576 = vmatmul.mubr.f32.gmra.mrb[0].mxu0 %v2476
        %v2577 = vpop.f32.mrb[0].mxu0
        %v2578 = vadd.f32 0.0, %v2577
        %v2579 = vpop.f32.mrb[0].mxu0
        %2580 = vmatprep.mubr.f32.mxu0 0.0
        %2581 = vmatmul.mubr.f32.gmra.mrb[0].mxu0 %v2479
        %v2582 = vpop.f32.mrb[0].mxu0
        %v2583 = vadd.f32 0.0, %v2582
        %v2584 = vpop.f32.mrb[0].mxu0
        %2585 = vdwg.mxu0
        %2586 = vrot.lane.b32.xlu0 %v1148, 96
        %v2587 = vpop.permute.xlu0 %2586
        %2588 = vrot.lane.b32.xlu0 %v1153, 96
        %v2589 = vpop.permute.xlu0 %2588
        %2590 = vrot.lane.b32.xlu0 %v1158, 96
        %v2591 = vpop.permute.xlu0 %2590
        %2592 = vrot.lane.b32.xlu0 %v1163, 96
        %v2593 = vpop.permute.xlu0 %2592
        %2594 = vrot.lane.b32.xlu0 %v1168, 96
        %v2595 = vpop.permute.xlu0 %2594
        %2596 = vrot.lane.b32.xlu0 %v1173, 96
        %v2597 = vpop.permute.xlu0 %2596
        %2598 = vrot.lane.b32.xlu0 %v1178, 96
        %v2599 = vpop.permute.xlu0 %2598
        %2600 = vrot.lane.b32.xlu0 %v1183, 96
        %v2601 = vpop.permute.xlu0 %2600
        %v2611 = vsel %vm1927, %v2264, 0
        %v2614 = vsel %vm1927, %v2265, 0
        %v2617 = vsel %vm1927, %v2266, 0
        %v2620 = vsel %vm1927, %v2267, 0
        %v2623 = vsel %vm1927, %v2268, 0
        %v2626 = vsel %vm1927, %v2269, 0
        %v2629 = vsel %vm1927, %v2270, 0
        %v2632 = vsel %vm1927, %v2271, 0
        %2634 = vmatprep.subr.mxu0 0.0
        %2635 = vmatpush1.msra.mxu0 %v2587
        %2636 = vmatprep.subr.mxu0 0.0
        %2637 = vmatpush1.msra.mxu0 %v2589
        %2638 = vmatprep.subr.mxu0 0.0
        %2639 = vmatpush1.msra.mxu0 %v2591
        %2640 = vmatprep.subr.mxu0 0.0
        %2641 = vmatpush1.msra.mxu0 %v2593
        %2642 = vmatprep.subr.mxu0 0.0
        %2643 = vmatpush1.msra.mxu0 %v2595
        %2644 = vmatprep.subr.mxu0 0.0
        %2645 = vmatpush1.msra.mxu0 %v2597
        %2646 = vmatprep.subr.mxu0 0.0
        %2647 = vmatpush1.msra.mxu0 %v2599
        %2648 = vmatprep.subr.mxu0 0.0
        %2649 = vmatpush1.msra.mxu0 %v2601
        %2650 = vmatprep.subr.mxu0 0.0
        %2651 = vmatpush1.msra.mxu0 0.0
        %2652 = vmatprep.subr.mxu0 0.0
        %2653 = vmatpush1.msra.mxu0 0.0
        %2654 = vmatprep.subr.mxu0 0.0
        %2655 = vmatpush1.msra.mxu0 0.0
        %2656 = vmatprep.subr.mxu0 0.0
        %2657 = vmatpush1.msra.mxu0 0.0
        %2658 = vmatprep.subr.mxu0 0.0
        %2659 = vmatpush1.msra.mxu0 0.0
        %2660 = vmatprep.subr.mxu0 0.0
        %2661 = vmatpush1.msra.mxu0 0.0
        %2662 = vmatprep.subr.mxu0 0.0
        %2663 = vmatpush1.msra.mxu0 0.0
        %2664 = vmatprep.subr.mxu0 0.0
        %2665 = vmatpush1.msra.mxu0 0.0
        %2666 = vmatprep.subr.mxu0 0.0
        %2667 = vmatpush1.msra.mxu0 0.0
        %2668 = vmatprep.subr.mxu0 0.0
        %2669 = vmatpush1.msra.mxu0 0.0
        %2670 = vmatprep.subr.mxu0 0.0
        %2671 = vmatpush1.msra.mxu0 0.0
        %2672 = vmatprep.subr.mxu0 0.0
        %2673 = vmatpush1.msra.mxu0 0.0
        %2674 = vmatprep.subr.mxu0 0.0
        %2675 = vmatpush1.msra.mxu0 0.0
        %2676 = vmatprep.subr.mxu0 0.0
        %2677 = vmatpush1.msra.mxu0 0.0
        %2678 = vmatprep.subr.mxu0 0.0
        %2679 = vmatpush1.msra.mxu0 0.0
        %2680 = vmatprep.subr.mxu0 0.0
        %2681 = vmatpush1.msra.mxu0 0.0
        %2682 = vmatprep.subr.mxu0 0.0
        %2683 = vmatpush1.msra.mxu0 0.0
        %2684 = vmatprep.subr.mxu0 0.0
        %2685 = vmatpush1.msra.mxu0 0.0
        %2686 = vmatprep.subr.mxu0 0.0
        %2687 = vmatpush1.msra.mxu0 0.0
        %2688 = vmatprep.subr.mxu0 0.0
        %2689 = vmatpush1.msra.mxu0 0.0
        %2690 = vmatprep.subr.mxu0 0.0
        %2691 = vmatpush1.msra.mxu0 0.0
        %2692 = vmatprep.subr.mxu0 0.0
        %2693 = vmatpush1.msra.mxu0 0.0
        %2694 = vmatprep.subr.mxu0 0.0
        %2695 = vmatpush1.msra.mxu0 0.0
        %2696 = vmatprep.subr.mxu0 0.0
        %2697 = vmatpush1.msra.mxu0 0.0
        %2698 = vmatprep.mubr.f32.mxu0 0.0
        %2699 = vmatmul.mubr.f32.gmra.mrb[0].mxu0 %v2611
        %v2700 = vpop.f32.mrb[0].mxu0
        %v2701 = vadd.f32 0.0, %v2700
        %v2702 = vpop.f32.mrb[0].mxu0
        %2703 = vmatprep.mubr.f32.mxu0 0.0
        %2704 = vmatmul.mubr.f32.gmra.mrb[0].mxu0 %v2614
        %v2705 = vpop.f32.mrb[0].mxu0
        %v2706 = vadd.f32 0.0, %v2705
        %v2707 = vpop.f32.mrb[0].mxu0
        %2708 = vmatprep.mubr.f32.mxu0 0.0
        %2709 = vmatmul.mubr.f32.gmra.mrb[0].mxu0 %v2617
        %v2710 = vpop.f32.mrb[0].mxu0
        %v2711 = vadd.f32 0.0, %v2710
        %v2712 = vpop.f32.mrb[0].mxu0
        %2713 = vmatprep.mubr.f32.mxu0 0.0
        %2714 = vmatmul.mubr.f32.gmra.mrb[0].mxu0 %v2620
        %v2715 = vpop.f32.mrb[0].mxu0
        %v2716 = vadd.f32 0.0, %v2715
        %v2717 = vpop.f32.mrb[0].mxu0
        %2718 = vmatprep.mubr.f32.mxu0 0.0
        %2719 = vmatmul.mubr.f32.gmra.mrb[0].mxu0 %v2623
        %v2720 = vpop.f32.mrb[0].mxu0
        %v2721 = vadd.f32 0.0, %v2720
        %v2722 = vpop.f32.mrb[0].mxu0
        %2723 = vmatprep.mubr.f32.mxu0 0.0
        %2724 = vmatmul.mubr.f32.gmra.mrb[0].mxu0 %v2626
        %v2725 = vpop.f32.mrb[0].mxu0
        %v2726 = vadd.f32 0.0, %v2725
        %v2727 = vpop.f32.mrb[0].mxu0
        %2728 = vmatprep.mubr.f32.mxu0 0.0
        %2729 = vmatmul.mubr.f32.gmra.mrb[0].mxu0 %v2629
        %v2730 = vpop.f32.mrb[0].mxu0
        %v2731 = vadd.f32 0.0, %v2730
        %v2732 = vpop.f32.mrb[0].mxu0
        %2733 = vmatprep.mubr.f32.mxu0 0.0
        %2734 = vmatmul.mubr.f32.gmra.mrb[0].mxu0 %v2632
        %v2735 = vpop.f32.mrb[0].mxu0
        %v2736 = vadd.f32 0.0, %v2735
        %v2737 = vpop.f32.mrb[0].mxu0
        %2738 = vdwg.mxu0
        %2739 = vrot.lane.b32.xlu0 %v1275, 96
        %v2740 = vpop.permute.xlu0 %2739
        %2741 = vrot.lane.b32.xlu0 %v1277, 96
        %v2742 = vpop.permute.xlu0 %2741
        %2743 = vrot.lane.b32.xlu0 %v1279, 96
        %v2744 = vpop.permute.xlu0 %2743
        %2745 = vrot.lane.b32.xlu0 %v1281, 96
        %v2746 = vpop.permute.xlu0 %2745
        %2747 = vrot.lane.b32.xlu0 %v1283, 96
        %v2748 = vpop.permute.xlu0 %2747
        %2749 = vrot.lane.b32.xlu0 %v1285, 96
        %v2750 = vpop.permute.xlu0 %2749
        %2751 = vrot.lane.b32.xlu0 %v1287, 96
        %v2752 = vpop.permute.xlu0 %2751
        %2753 = vrot.lane.b32.xlu0 %v1289, 96
        %v2754 = vpop.permute.xlu0 %2753
        %v2764 = vsel %vm1927, %v2272, 0
        %v2767 = vsel %vm1927, %v2273, 0
        %v2770 = vsel %vm1927, %v2274, 0
        %v2773 = vsel %vm1927, %v2275, 0
        %v2776 = vsel %vm1927, %v2276, 0
        %v2779 = vsel %vm1927, %v2277, 0
        %v2782 = vsel %vm1927, %v2278, 0
        %v2785 = vsel %vm1927, %v2279, 0
        %2787 = vmatprep.subr.mxu0 0.0
        %2788 = vmatpush1.msra.mxu0 %v2740
        %2789 = vmatprep.subr.mxu0 0.0
        %2790 = vmatpush1.msra.mxu0 %v2742
        %2791 = vmatprep.subr.mxu0 0.0
        %2792 = vmatpush1.msra.mxu0 %v2744
        %2793 = vmatprep.subr.mxu0 0.0
        %2794 = vmatpush1.msra.mxu0 %v2746
        %2795 = vmatprep.subr.mxu0 0.0
        %2796 = vmatpush1.msra.mxu0 %v2748
        %2797 = vmatprep.subr.mxu0 0.0
        %2798 = vmatpush1.msra.mxu0 %v2750
        %2799 = vmatprep.subr.mxu0 0.0
        %2800 = vmatpush1.msra.mxu0 %v2752
        %2801 = vmatprep.subr.mxu0 0.0
        %2802 = vmatpush1.msra.mxu0 %v2754
        %2803 = vmatprep.subr.mxu0 0.0
        %2804 = vmatpush1.msra.mxu0 0.0
        %2805 = vmatprep.subr.mxu0 0.0
        %2806 = vmatpush1.msra.mxu0 0.0
        %2807 = vmatprep.subr.mxu0 0.0
        %2808 = vmatpush1.msra.mxu0 0.0
        %2809 = vmatprep.subr.mxu0 0.0
        %2810 = vmatpush1.msra.mxu0 0.0
        %2811 = vmatprep.subr.mxu0 0.0
        %2812 = vmatpush1.msra.mxu0 0.0
        %2813 = vmatprep.subr.mxu0 0.0
        %2814 = vmatpush1.msra.mxu0 0.0
        %2815 = vmatprep.subr.mxu0 0.0
        %2816 = vmatpush1.msra.mxu0 0.0
        %2817 = vmatprep.subr.mxu0 0.0
        %2818 = vmatpush1.msra.mxu0 0.0
        %2819 = vmatprep.subr.mxu0 0.0
        %2820 = vmatpush1.msra.mxu0 0.0
        %2821 = vmatprep.subr.mxu0 0.0
        %2822 = vmatpush1.msra.mxu0 0.0
        %2823 = vmatprep.subr.mxu0 0.0
        %2824 = vmatpush1.msra.mxu0 0.0
        %2825 = vmatprep.subr.mxu0 0.0
        %2826 = vmatpush1.msra.mxu0 0.0
        %2827 = vmatprep.subr.mxu0 0.0
        %2828 = vmatpush1.msra.mxu0 0.0
        %2829 = vmatprep.subr.mxu0 0.0
        %2830 = vmatpush1.msra.mxu0 0.0
        %2831 = vmatprep.subr.mxu0 0.0
        %2832 = vmatpush1.msra.mxu0 0.0
        %2833 = vmatprep.subr.mxu0 0.0
        %2834 = vmatpush1.msra.mxu0 0.0
        %2835 = vmatprep.subr.mxu0 0.0
        %2836 = vmatpush1.msra.mxu0 0.0
        %2837 = vmatprep.subr.mxu0 0.0
        %2838 = vmatpush1.msra.mxu0 0.0
        %2839 = vmatprep.subr.mxu0 0.0
        %2840 = vmatpush1.msra.mxu0 0.0
        %2841 = vmatprep.subr.mxu0 0.0
        %2842 = vmatpush1.msra.mxu0 0.0
        %2843 = vmatprep.subr.mxu0 0.0
        %2844 = vmatpush1.msra.mxu0 0.0
        %2845 = vmatprep.subr.mxu0 0.0
        %2846 = vmatpush1.msra.mxu0 0.0
        %2847 = vmatprep.subr.mxu0 0.0
        %2848 = vmatpush1.msra.mxu0 0.0
        %2849 = vmatprep.subr.mxu0 0.0
        %2850 = vmatpush1.msra.mxu0 0.0
        %2851 = vmatprep.mubr.f32.mxu0 0.0
        %2852 = vmatmul.mubr.f32.gmra.mrb[0].mxu0 %v2764
        %v2853 = vpop.f32.mrb[0].mxu0
        %v2854 = vadd.f32 0.0, %v2853
        %v2855 = vpop.f32.mrb[0].mxu0
        %2856 = vmatprep.mubr.f32.mxu0 0.0
        %2857 = vmatmul.mubr.f32.gmra.mrb[0].mxu0 %v2767
        %v2858 = vpop.f32.mrb[0].mxu0
        %v2859 = vadd.f32 0.0, %v2858
        %v2860 = vpop.f32.mrb[0].mxu0
        %2861 = vmatprep.mubr.f32.mxu0 0.0
        %2862 = vmatmul.mubr.f32.gmra.mrb[0].mxu0 %v2770
        %v2863 = vpop.f32.mrb[0].mxu0
        %v2864 = vadd.f32 0.0, %v2863
        %v2865 = vpop.f32.mrb[0].mxu0
        %2866 = vmatprep.mubr.f32.mxu0 0.0
        %2867 = vmatmul.mubr.f32.gmra.mrb[0].mxu0 %v2773
        %v2868 = vpop.f32.mrb[0].mxu0
        %v2869 = vadd.f32 0.0, %v2868
        %v2870 = vpop.f32.mrb[0].mxu0
        %2871 = vmatprep.mubr.f32.mxu0 0.0
        %2872 = vmatmul.mubr.f32.gmra.mrb[0].mxu0 %v2776
        %v2873 = vpop.f32.mrb[0].mxu0
        %v2874 = vadd.f32 0.0, %v2873
        %v2875 = vpop.f32.mrb[0].mxu0
        %2876 = vmatprep.mubr.f32.mxu0 0.0
        %2877 = vmatmul.mubr.f32.gmra.mrb[0].mxu0 %v2779
        %v2878 = vpop.f32.mrb[0].mxu0
        %v2879 = vadd.f32 0.0, %v2878
        %v2880 = vpop.f32.mrb[0].mxu0
        %2881 = vmatprep.mubr.f32.mxu0 0.0
        %2882 = vmatmul.mubr.f32.gmra.mrb[0].mxu0 %v2782
        %v2883 = vpop.f32.mrb[0].mxu0
        %v2884 = vadd.f32 0.0, %v2883
        %v2885 = vpop.f32.mrb[0].mxu0
        %2886 = vmatprep.mubr.f32.mxu0 0.0
        %2887 = vmatmul.mubr.f32.gmra.mrb[0].mxu0 %v2785
        %v2888 = vpop.f32.mrb[0].mxu0
        %v2889 = vadd.f32 0.0, %v2888
        %v2890 = vpop.f32.mrb[0].mxu0
        %2891 = vdwg.mxu0
        %2900 = vrot.lane.b32.xlu0 %v2548, 16
        %v2901 = vpop.permute.xlu0 %2900
        %2902 = vrot.lane.b32.xlu0 %v2553, 16
        %v2903 = vpop.permute.xlu0 %2902
        %2904 = vrot.lane.b32.xlu0 %v2558, 16
        %v2905 = vpop.permute.xlu0 %2904
        %2906 = vrot.lane.b32.xlu0 %v2563, 16
        %v2907 = vpop.permute.xlu0 %2906
        %2908 = vrot.lane.b32.xlu0 %v2568, 16
        %v2909 = vpop.permute.xlu0 %2908
        %2910 = vrot.lane.b32.xlu0 %v2573, 16
        %v2911 = vpop.permute.xlu0 %2910
        %2912 = vrot.lane.b32.xlu0 %v2578, 16
        %v2913 = vpop.permute.xlu0 %2912
        %2914 = vrot.lane.b32.xlu0 %v2583, 16
        %v2915 = vpop.permute.xlu0 %2914
        %2932 = vrot.lane.b32.xlu0 %v2701, 32
        %v2933 = vpop.permute.xlu0 %2932
        %2934 = vrot.lane.b32.xlu0 %v2706, 32
        %v2935 = vpop.permute.xlu0 %2934
        %2936 = vrot.lane.b32.xlu0 %v2711, 32
        %v2937 = vpop.permute.xlu0 %2936
        %2938 = vrot.lane.b32.xlu0 %v2716, 32
        %v2939 = vpop.permute.xlu0 %2938
        %2940 = vrot.lane.b32.xlu0 %v2721, 32
        %v2941 = vpop.permute.xlu0 %2940
        %2942 = vrot.lane.b32.xlu0 %v2726, 32
        %v2943 = vpop.permute.xlu0 %2942
        %2944 = vrot.lane.b32.xlu0 %v2731, 32
        %v2945 = vpop.permute.xlu0 %2944
        %2946 = vrot.lane.b32.xlu0 %v2736, 32
        %v2947 = vpop.permute.xlu0 %2946
        %2964 = vrot.lane.b32.xlu0 %v2854, 48
        %v2965 = vpop.permute.xlu0 %2964
        %2966 = vrot.lane.b32.xlu0 %v2859, 48
        %v2967 = vpop.permute.xlu0 %2966
        %2968 = vrot.lane.b32.xlu0 %v2864, 48
        %v2969 = vpop.permute.xlu0 %2968
        %2970 = vrot.lane.b32.xlu0 %v2869, 48
        %v2971 = vpop.permute.xlu0 %2970
        %2972 = vrot.lane.b32.xlu0 %v2874, 48
        %v2973 = vpop.permute.xlu0 %2972
        %2974 = vrot.lane.b32.xlu0 %v2879, 48
        %v2975 = vpop.permute.xlu0 %2974
        %2976 = vrot.lane.b32.xlu0 %v2884, 48
        %v2977 = vpop.permute.xlu0 %2976
        %2978 = vrot.lane.b32.xlu0 %v2889, 48
        %v2979 = vpop.permute.xlu0 %2978
        %v2988 = vsel %vm1290, %v2395, %v2901
        %v2989 = vsel %vm1290, %v2400, %v2903
        %v2990 = vsel %vm1290, %v2405, %v2905
        %v2991 = vsel %vm1290, %v2410, %v2907
        %v2992 = vsel %vm1290, %v2415, %v2909
        %v2993 = vsel %vm1290, %v2420, %v2911
        %v2994 = vsel %vm1290, %v2425, %v2913
        %v2995 = vsel %vm1290, %v2430, %v2915
        %v2996 = vsel %vm430, %v2988, %v2933
        %v2997 = vsel %vm430, %v2989, %v2935
        %v2998 = vsel %vm430, %v2990, %v2937
        %v2999 = vsel %vm430, %v2991, %v2939
        %v3000 = vsel %vm430, %v2992, %v2941
        %v3001 = vsel %vm430, %v2993, %v2943
        %v3002 = vsel %vm430, %v2994, %v2945
        %v3003 = vsel %vm430, %v2995, %v2947
        %vm3004 = vcmask 392192
        %v3005 = vsel %vm3004, %v2996, %v2965
        %v3006 = vsel %vm3004, %v2997, %v2967
        %v3007 = vsel %vm3004, %v2998, %v2969
        %v3008 = vsel %vm3004, %v2999, %v2971
        %v3009 = vsel %vm3004, %v3000, %v2973
        %v3010 = vsel %vm3004, %v3001, %v2975
        %v3011 = vsel %vm3004, %v3002, %v2977
        %v3012 = vsel %vm3004, %v3003, %v2979
        %v3013 = vlaneseq
        %v3014 = vshrl.u32 %v3013, 7
        %v3015 = vsub.s32 0, %v3014
        %v3016 = vrot.slane %v423, %v3015
        %v3018 = vsel %vm1927, %v3005, 0
        %v3021 = vsel %vm1927, %v3006, 0
        %v3024 = vsel %vm1927, %v3007, 0
        %v3027 = vsel %vm1927, %v3008, 0
        %v3030 = vsel %vm1927, %v3009, 0
        %v3033 = vsel %vm1927, %v3010, 0
        %v3036 = vsel %vm1927, %v3011, 0
        %v3039 = vsel %vm1927, %v3012, 0
        %3041 = vmatprep.subr.mxu0 0.0
        %3042 = vmatpush1.msra.mxu0 %v393
        %3043 = vmatprep.subr.mxu0 0.0
        %3044 = vmatpush1.msra.mxu0 %v394
        %3045 = vmatprep.subr.mxu0 0.0
        %3046 = vmatpush1.msra.mxu0 %v395
        %3047 = vmatprep.subr.mxu0 0.0
        %3048 = vmatpush1.msra.mxu0 %v396
        %3049 = vmatprep.subr.mxu0 0.0
        %3050 = vmatpush1.msra.mxu0 %v397
        %3051 = vmatprep.subr.mxu0 0.0
        %3052 = vmatpush1.msra.mxu0 %v398
        %3053 = vmatprep.subr.mxu0 0.0
        %3054 = vmatpush1.msra.mxu0 %v399
        %3055 = vmatprep.subr.mxu0 0.0
        %3056 = vmatpush1.msra.mxu0 %v400
        %3057 = vmatprep.subr.mxu0 0.0
        %3058 = vmatpush1.msra.mxu0 0.0
        %3059 = vmatprep.subr.mxu0 0.0
        %3060 = vmatpush1.msra.mxu0 0.0
        %3061 = vmatprep.subr.mxu0 0.0
        %3062 = vmatpush1.msra.mxu0 0.0
        %3063 = vmatprep.subr.mxu0 0.0
        %3064 = vmatpush1.msra.mxu0 0.0
        %3065 = vmatprep.subr.mxu0 0.0
        %3066 = vmatpush1.msra.mxu0 0.0
        %3067 = vmatprep.subr.mxu0 0.0
        %3068 = vmatpush1.msra.mxu0 0.0
        %3069 = vmatprep.subr.mxu0 0.0
        %3070 = vmatpush1.msra.mxu0 0.0
        %3071 = vmatprep.subr.mxu0 0.0
        %3072 = vmatpush1.msra.mxu0 0.0
        %3073 = vmatprep.subr.mxu0 0.0
        %3074 = vmatpush1.msra.mxu0 0.0
        %3075 = vmatprep.subr.mxu0 0.0
        %3076 = vmatpush1.msra.mxu0 0.0
        %3077 = vmatprep.subr.mxu0 0.0
        %3078 = vmatpush1.msra.mxu0 0.0
        %3079 = vmatprep.subr.mxu0 0.0
        %3080 = vmatpush1.msra.mxu0 0.0
        %3081 = vmatprep.subr.mxu0 0.0
        %3082 = vmatpush1.msra.mxu0 0.0
        %3083 = vmatprep.subr.mxu0 0.0
        %3084 = vmatpush1.msra.mxu0 0.0
        %3085 = vmatprep.subr.mxu0 0.0
        %3086 = vmatpush1.msra.mxu0 0.0
        %3087 = vmatprep.subr.mxu0 0.0
        %3088 = vmatpush1.msra.mxu0 0.0
        %3089 = vmatprep.subr.mxu0 0.0
        %3090 = vmatpush1.msra.mxu0 0.0
        %3091 = vmatprep.subr.mxu0 0.0
        %3092 = vmatpush1.msra.mxu0 0.0
        %3093 = vmatprep.subr.mxu0 0.0
        %3094 = vmatpush1.msra.mxu0 0.0
        %3095 = vmatprep.subr.mxu0 0.0
        %3096 = vmatpush1.msra.mxu0 0.0
        %3097 = vmatprep.subr.mxu0 0.0
        %3098 = vmatpush1.msra.mxu0 0.0
        %3099 = vmatprep.subr.mxu0 0.0
        %3100 = vmatpush1.msra.mxu0 0.0
        %3101 = vmatprep.subr.mxu0 0.0
        %3102 = vmatpush1.msra.mxu0 0.0
        %3103 = vmatprep.subr.mxu0 0.0
        %3104 = vmatpush1.msra.mxu0 0.0
        %3105 = vmatprep.mubr.f32.mxu0 0.0
        %3106 = vmatmul.mubr.f32.gmra.mrb[0].mxu0 %v3018
        %v3107 = vpop.f32.mrb[0].mxu0
        %v3108 = vadd.f32 %v3016, %v3107
        %v3109 = vpop.f32.mrb[0].mxu0
        %3110 = vmatprep.mubr.f32.mxu0 0.0
        %3111 = vmatmul.mubr.f32.gmra.mrb[0].mxu0 %v3021
        %v3112 = vpop.f32.mrb[0].mxu0
        %v3113 = vadd.f32 %v3016, %v3112
        %v3114 = vpop.f32.mrb[0].mxu0
        %3115 = vmatprep.mubr.f32.mxu0 0.0
        %3116 = vmatmul.mubr.f32.gmra.mrb[0].mxu0 %v3024
        %v3117 = vpop.f32.mrb[0].mxu0
        %v3118 = vadd.f32 %v3016, %v3117
        %v3119 = vpop.f32.mrb[0].mxu0
        %3120 = vmatprep.mubr.f32.mxu0 0.0
        %3121 = vmatmul.mubr.f32.gmra.mrb[0].mxu0 %v3027
        %v3122 = vpop.f32.mrb[0].mxu0
        %v3123 = vadd.f32 %v3016, %v3122
        %v3124 = vpop.f32.mrb[0].mxu0
        %3125 = vmatprep.mubr.f32.mxu0 0.0
        %3126 = vmatmul.mubr.f32.gmra.mrb[0].mxu0 %v3030
        %v3127 = vpop.f32.mrb[0].mxu0
        %v3128 = vadd.f32 %v3016, %v3127
        %v3129 = vpop.f32.mrb[0].mxu0
        %3130 = vmatprep.mubr.f32.mxu0 0.0
        %3131 = vmatmul.mubr.f32.gmra.mrb[0].mxu0 %v3033
        %v3132 = vpop.f32.mrb[0].mxu0
        %v3133 = vadd.f32 %v3016, %v3132
        %v3134 = vpop.f32.mrb[0].mxu0
        %3135 = vmatprep.mubr.f32.mxu0 0.0
        %3136 = vmatmul.mubr.f32.gmra.mrb[0].mxu0 %v3036
        %v3137 = vpop.f32.mrb[0].mxu0
        %v3138 = vadd.f32 %v3016, %v3137
        %v3139 = vpop.f32.mrb[0].mxu0
        %3140 = vmatprep.mubr.f32.mxu0 0.0
        %3141 = vmatmul.mubr.f32.gmra.mrb[0].mxu0 %v3039
        %v3142 = vpop.f32.mrb[0].mxu0
        %v3143 = vadd.f32 %v3016, %v3142
        %v3144 = vpop.f32.mrb[0].mxu0
        %3145 = vdwg.mxu0
        %v3146 = vlaneseq
        %v3147 = vshrl.u32 %v3146, 7
        %v3148 = vsub.s32 0, %v3147
        %v3149 = vrot.slane %v355, %v3148
        %3151 = vrot.lane.b32.xlu0 %v779, 32
        %v3152 = vpop.permute.xlu0 %3151
        %3153 = vrot.lane.b32.xlu0 %v780, 32
        %v3154 = vpop.permute.xlu0 %3153
        %3155 = vrot.lane.b32.xlu0 %v781, 32
        %v3156 = vpop.permute.xlu0 %3155
        %3157 = vrot.lane.b32.xlu0 %v782, 32
        %v3158 = vpop.permute.xlu0 %3157
        %3159 = vrot.lane.b32.xlu0 %v783, 32
        %v3160 = vpop.permute.xlu0 %3159
        %3161 = vrot.lane.b32.xlu0 %v784, 32
        %v3162 = vpop.permute.xlu0 %3161
        %3163 = vrot.lane.b32.xlu0 %v785, 32
        %v3164 = vpop.permute.xlu0 %3163
        %3165 = vrot.lane.b32.xlu0 %v786, 32
        %v3166 = vpop.permute.xlu0 %3165
        %3183 = vrot.lane.b32.xlu0 %v3108, 64
        %v3184 = vpop.permute.xlu0 %3183
        %3185 = vrot.lane.b32.xlu0 %v3113, 64
        %v3186 = vpop.permute.xlu0 %3185
        %3187 = vrot.lane.b32.xlu0 %v3118, 64
        %v3188 = vpop.permute.xlu0 %3187
        %3189 = vrot.lane.b32.xlu0 %v3123, 64
        %v3190 = vpop.permute.xlu0 %3189
        %3191 = vrot.lane.b32.xlu0 %v3128, 64
        %v3192 = vpop.permute.xlu0 %3191
        %3193 = vrot.lane.b32.xlu0 %v3133, 64
        %v3194 = vpop.permute.xlu0 %3193
        %3195 = vrot.lane.b32.xlu0 %v3138, 64
        %v3196 = vpop.permute.xlu0 %3195
        %3197 = vrot.lane.b32.xlu0 %v3143, 64
        %v3198 = vpop.permute.xlu0 %3197
        %v3207 = vsel %vm430, %v3149, %v3152
        %v3208 = vsel %vm430, %v3149, %v3154
        %v3209 = vsel %vm430, %v3149, %v3156
        %v3210 = vsel %vm430, %v3149, %v3158
        %v3211 = vsel %vm430, %v3149, %v3160
        %v3212 = vsel %vm430, %v3149, %v3162
        %v3213 = vsel %vm430, %v3149, %v3164
        %v3214 = vsel %vm430, %v3149, %v3166
        %v3215 = vsel %vm1927, %v3207, %v3184
        %v3216 = vsel %vm1927, %v3208, %v3186
        %v3217 = vsel %vm1927, %v3209, %v3188
        %v3218 = vsel %vm1927, %v3210, %v3190
        %v3219 = vsel %vm1927, %v3211, %v3192
        %v3220 = vsel %vm1927, %v3212, %v3194
        %v3221 = vsel %vm1927, %v3213, %v3196
        %v3222 = vsel %vm1927, %v3214, %v3198
        %v3223 = vlaneseq
        %v3224 = vshrl.u32 %v3223, 7
        %v3225 = vsub.s32 0, %v3224
        %v3226 = vrot.slane %v424, %v3225
        %3227 = vmatprep.subr.mxu0 0.0
        %3228 = vmatpush1.msra.mxu0 %v401
        %3229 = vmatprep.subr.mxu0 0.0
        %3230 = vmatpush1.msra.mxu0 %v402
        %3231 = vmatprep.subr.mxu0 0.0
        %3232 = vmatpush1.msra.mxu0 %v403
        %3233 = vmatprep.subr.mxu0 0.0
        %3234 = vmatpush1.msra.mxu0 %v404
        %3235 = vmatprep.subr.mxu0 0.0
        %3236 = vmatpush1.msra.mxu0 %v405
        %3237 = vmatprep.subr.mxu0 0.0
        %3238 = vmatpush1.msra.mxu0 %v406
        %3239 = vmatprep.subr.mxu0 0.0
        %3240 = vmatpush1.msra.mxu0 %v407
        %3241 = vmatprep.subr.mxu0 0.0
        %3242 = vmatpush1.msra.mxu0 %v408
        %3243 = vmatprep.subr.mxu0 0.0
        %3244 = vmatpush1.msra.mxu0 %v409
        %3245 = vmatprep.subr.mxu0 0.0
        %3246 = vmatpush1.msra.mxu0 %v410
        %3247 = vmatprep.subr.mxu0 0.0
        %3248 = vmatpush1.msra.mxu0 %v411
        %3249 = vmatprep.subr.mxu0 0.0
        %3250 = vmatpush1.msra.mxu0 %v412
        %3251 = vmatprep.subr.mxu0 0.0
        %3252 = vmatpush1.msra.mxu0 %v413
        %3253 = vmatprep.subr.mxu0 0.0
        %3254 = vmatpush1.msra.mxu0 %v414
        %3255 = vmatprep.subr.mxu0 0.0
        %3256 = vmatpush1.msra.mxu0 %v415
        %3257 = vmatprep.subr.mxu0 0.0
        %3258 = vmatpush1.msra.mxu0 %v416
        %3259 = vmatprep.subr.mxu0 0.0
        %3260 = vmatpush1.msra.mxu0 0.0
        %3261 = vmatprep.subr.mxu0 0.0
        %3262 = vmatpush1.msra.mxu0 0.0
        %3263 = vmatprep.subr.mxu0 0.0
        %3264 = vmatpush1.msra.mxu0 0.0
        %3265 = vmatprep.subr.mxu0 0.0
        %3266 = vmatpush1.msra.mxu0 0.0
        %3267 = vmatprep.subr.mxu0 0.0
        %3268 = vmatpush1.msra.mxu0 0.0
        %3269 = vmatprep.subr.mxu0 0.0
        %3270 = vmatpush1.msra.mxu0 0.0
        %3271 = vmatprep.subr.mxu0 0.0
        %3272 = vmatpush1.msra.mxu0 0.0
        %3273 = vmatprep.subr.mxu0 0.0
        %3274 = vmatpush1.msra.mxu0 0.0
        %3275 = vmatprep.subr.mxu0 0.0
        %3276 = vmatpush1.msra.mxu0 0.0
        %3277 = vmatprep.subr.mxu0 0.0
        %3278 = vmatpush1.msra.mxu0 0.0
        %3279 = vmatprep.subr.mxu0 0.0
        %3280 = vmatpush1.msra.mxu0 0.0
        %3281 = vmatprep.subr.mxu0 0.0
        %3282 = vmatpush1.msra.mxu0 0.0
        %3283 = vmatprep.subr.mxu0 0.0
        %3284 = vmatpush1.msra.mxu0 0.0
        %3285 = vmatprep.subr.mxu0 0.0
        %3286 = vmatpush1.msra.mxu0 0.0
        %3287 = vmatprep.subr.mxu0 0.0
        %3288 = vmatpush1.msra.mxu0 0.0
        %3289 = vmatprep.subr.mxu0 0.0
        %3290 = vmatpush1.msra.mxu0 0.0
        %3291 = vmatprep.mubr.f32.mxu0 0.0
        %3292 = vmatmul.mubr.f32.gmra.mrb[0].mxu0 %v3215
        %v3293 = vpop.f32.mrb[0].mxu0
        %v3294 = vadd.f32 %v3226, %v3293
        %v3295 = vpop.f32.mrb[0].mxu0
        %3296 = vmatprep.mubr.f32.mxu0 0.0
        %3297 = vmatmul.mubr.f32.gmra.mrb[0].mxu0 %v3216
        %v3298 = vpop.f32.mrb[0].mxu0
        %v3299 = vadd.f32 %v3226, %v3298
        %v3300 = vpop.f32.mrb[0].mxu0
        %3301 = vmatprep.mubr.f32.mxu0 0.0
        %3302 = vmatmul.mubr.f32.gmra.mrb[0].mxu0 %v3217
        %v3303 = vpop.f32.mrb[0].mxu0
        %v3304 = vadd.f32 %v3226, %v3303
        %v3305 = vpop.f32.mrb[0].mxu0
        %3306 = vmatprep.mubr.f32.mxu0 0.0
        %3307 = vmatmul.mubr.f32.gmra.mrb[0].mxu0 %v3218
        %v3308 = vpop.f32.mrb[0].mxu0
        %v3309 = vadd.f32 %v3226, %v3308
        %v3310 = vpop.f32.mrb[0].mxu0
        %3311 = vmatprep.mubr.f32.mxu0 0.0
        %3312 = vmatmul.mubr.f32.gmra.mrb[0].mxu0 %v3219
        %v3313 = vpop.f32.mrb[0].mxu0
        %v3314 = vadd.f32 %v3226, %v3313
        %v3315 = vpop.f32.mrb[0].mxu0
        %3316 = vmatprep.mubr.f32.mxu0 0.0
        %3317 = vmatmul.mubr.f32.gmra.mrb[0].mxu0 %v3220
        %v3318 = vpop.f32.mrb[0].mxu0
        %v3319 = vadd.f32 %v3226, %v3318
        %v3320 = vpop.f32.mrb[0].mxu0
        %3321 = vmatprep.mubr.f32.mxu0 0.0
        %3322 = vmatmul.mubr.f32.gmra.mrb[0].mxu0 %v3221
        %v3323 = vpop.f32.mrb[0].mxu0
        %v3324 = vadd.f32 %v3226, %v3323
        %v3325 = vpop.f32.mrb[0].mxu0
        %3326 = vmatprep.mubr.f32.mxu0 0.0
        %3327 = vmatmul.mubr.f32.gmra.mrb[0].mxu0 %v3222
        %v3328 = vpop.f32.mrb[0].mxu0
        %v3329 = vadd.f32 %v3226, %v3328
        %v3330 = vpop.f32.mrb[0].mxu0
        %3331 = vdwg.mxu0
        %v3332 = vsel %vm430, %v3294, 0.0
        %3333 = vadd.xlane.f32.xlu0 %v3332
        %v3334 = vpop.xlane.xlu0 %3333
        %v3335 = vsel %vm430, %v3299, 0.0
        %3336 = vadd.xlane.f32.xlu0 %v3335
        %v3337 = vpop.xlane.xlu0 %3336
        %v3338 = vsel %vm430, %v3304, 0.0
        %3339 = vadd.xlane.f32.xlu0 %v3338
        %v3340 = vpop.xlane.xlu0 %3339
        %v3341 = vsel %vm430, %v3309, 0.0
        %3342 = vadd.xlane.f32.xlu0 %v3341
        %v3343 = vpop.xlane.xlu0 %3342
        %v3344 = vsel %vm430, %v3314, 0.0
        %3345 = vadd.xlane.f32.xlu0 %v3344
        %v3346 = vpop.xlane.xlu0 %3345
        %v3347 = vsel %vm430, %v3319, 0.0
        %3348 = vadd.xlane.f32.xlu0 %v3347
        %v3349 = vpop.xlane.xlu0 %3348
        %v3350 = vsel %vm430, %v3324, 0.0
        %3351 = vadd.xlane.f32.xlu0 %v3350
        %v3352 = vpop.xlane.xlu0 %3351
        %v3353 = vsel %vm430, %v3329, 0.0
        %3354 = vadd.xlane.f32.xlu0 %v3353
        %v3355 = vpop.xlane.xlu0 %3354
        %v3356 = vmul.f32 %v3334, %v674
        %v3357 = vmul.f32 %v3337, %v674
        %v3358 = vmul.f32 %v3340, %v674
        %v3359 = vmul.f32 %v3343, %v674
        %v3360 = vmul.f32 %v3346, %v674
        %v3361 = vmul.f32 %v3349, %v674
        %v3362 = vmul.f32 %v3352, %v674
        %v3363 = vmul.f32 %v3355, %v674
        %v3364 = vsub.f32 %v3294, %v3356
        %v3365 = vsub.f32 %v3299, %v3357
        %v3366 = vsub.f32 %v3304, %v3358
        %v3367 = vsub.f32 %v3309, %v3359
        %v3368 = vsub.f32 %v3314, %v3360
        %v3369 = vsub.f32 %v3319, %v3361
        %v3370 = vsub.f32 %v3324, %v3362
        %v3371 = vsub.f32 %v3329, %v3363
        %v3372 = vmul.f32 %v3364, %v3364
        %v3373 = vmul.f32 %v3365, %v3365
        %v3374 = vmul.f32 %v3366, %v3366
        %v3375 = vmul.f32 %v3367, %v3367
        %v3376 = vmul.f32 %v3368, %v3368
        %v3377 = vmul.f32 %v3369, %v3369
        %v3378 = vmul.f32 %v3370, %v3370
        %v3379 = vmul.f32 %v3371, %v3371
        %v3380 = vsel %vm430, %v3372, 0.0
        %3381 = vadd.xlane.f32.xlu0 %v3380
        %v3382 = vpop.xlane.xlu0 %3381
        %v3383 = vsel %vm430, %v3373, 0.0
        %3384 = vadd.xlane.f32.xlu0 %v3383
        %v3385 = vpop.xlane.xlu0 %3384
        %v3386 = vsel %vm430, %v3374, 0.0
        %3387 = vadd.xlane.f32.xlu0 %v3386
        %v3388 = vpop.xlane.xlu0 %3387
        %v3389 = vsel %vm430, %v3375, 0.0
        %3390 = vadd.xlane.f32.xlu0 %v3389
        %v3391 = vpop.xlane.xlu0 %3390
        %v3392 = vsel %vm430, %v3376, 0.0
        %3393 = vadd.xlane.f32.xlu0 %v3392
        %v3394 = vpop.xlane.xlu0 %3393
        %v3395 = vsel %vm430, %v3377, 0.0
        %3396 = vadd.xlane.f32.xlu0 %v3395
        %v3397 = vpop.xlane.xlu0 %3396
        %v3398 = vsel %vm430, %v3378, 0.0
        %3399 = vadd.xlane.f32.xlu0 %v3398
        %v3400 = vpop.xlane.xlu0 %3399
        %v3401 = vsel %vm430, %v3379, 0.0
        %3402 = vadd.xlane.f32.xlu0 %v3401
        %v3403 = vpop.xlane.xlu0 %3402
        %v3404 = vmul.f32 %v3382, %v674
        %v3405 = vmul.f32 %v3385, %v674
        %v3406 = vmul.f32 %v3388, %v674
        %v3407 = vmul.f32 %v3391, %v674
        %v3408 = vmul.f32 %v3394, %v674
        %v3409 = vmul.f32 %v3397, %v674
        %v3410 = vmul.f32 %v3400, %v674
        %v3411 = vmul.f32 %v3403, %v674
        %v3412 = vadd.f32 %v3404, 1e-05
        %v3413 = vadd.f32 %v3405, 1e-05
        %v3414 = vadd.f32 %v3406, 1e-05
        %v3415 = vadd.f32 %v3407, 1e-05
        %v3416 = vadd.f32 %v3408, 1e-05
        %v3417 = vadd.f32 %v3409, 1e-05
        %v3418 = vadd.f32 %v3410, 1e-05
        %v3419 = vadd.f32 %v3411, 1e-05
        %v3420 = vrsqrt.pop %v3412
        %v3421 = vrsqrt.pop %v3413
        %v3422 = vrsqrt.pop %v3414
        %v3423 = vrsqrt.pop %v3415
        %v3424 = vrsqrt.pop %v3416
        %v3425 = vrsqrt.pop %v3417
        %v3426 = vrsqrt.pop %v3418
        %v3427 = vrsqrt.pop %v3419
        %v3428 = vmul.f32 %v3364, %v3420
        %v3429 = vmul.f32 %v3365, %v3421
        %v3430 = vmul.f32 %v3366, %v3422
        %v3431 = vmul.f32 %v3367, %v3423
        %v3432 = vmul.f32 %v3368, %v3424
        %v3433 = vmul.f32 %v3369, %v3425
        %v3434 = vmul.f32 %v3370, %v3426
        %v3435 = vmul.f32 %v3371, %v3427
        %v3436 = vlaneseq
        %v3437 = vshrl.u32 %v3436, 7
        %v3438 = vsub.s32 0, %v3437
        %v3439 = vrot.slane %v425, %v3438
        %v3440 = vmul.f32 %v3428, %v3439
        %v3441 = vmul.f32 %v3429, %v3439
        %v3442 = vmul.f32 %v3430, %v3439
        %v3443 = vmul.f32 %v3431, %v3439
        %v3444 = vmul.f32 %v3432, %v3439
        %v3445 = vmul.f32 %v3433, %v3439
        %v3446 = vmul.f32 %v3434, %v3439
        %v3447 = vmul.f32 %v3435, %v3439
        %v3448 = vlaneseq
        %v3449 = vshrl.u32 %v3448, 7
        %v3450 = vsub.s32 0, %v3449
        %v3451 = vrot.slane %v426, %v3450
        %v3452 = vadd.f32 %v3440, %v3451
        %v3453 = vadd.f32 %v3441, %v3451
        %v3454 = vadd.f32 %v3442, %v3451
        %v3455 = vadd.f32 %v3443, %v3451
        %v3456 = vadd.f32 %v3444, %v3451
        %v3457 = vadd.f32 %v3445, %v3451
        %v3458 = vadd.f32 %v3446, %v3451
        %v3459 = vadd.f32 %v3447, %v3451
        %v3460 = vmax.f32 %v3452, 0.0
        %v3461 = vmax.f32 %v3453, 0.0
        %v3462 = vmax.f32 %v3454, 0.0
        %v3463 = vmax.f32 %v3455, 0.0
        %v3464 = vmax.f32 %v3456, 0.0
        %v3465 = vmax.f32 %v3457, 0.0
        %v3466 = vmax.f32 %v3458, 0.0
        %v3467 = vmax.f32 %v3459, 0.0
        %v3469 = vsel %vm430, %v428, 0
        %v3472 = vsel %vm430, %v3460, 0
        %v3475 = vsel %vm430, %v3461, 0
        %v3478 = vsel %vm430, %v3462, 0
        %v3481 = vsel %vm430, %v3463, 0
        %v3484 = vsel %vm430, %v3464, 0
        %v3487 = vsel %vm430, %v3465, 0
        %v3490 = vsel %vm430, %v3466, 0
        %v3493 = vsel %vm430, %v3467, 0
        %3495 = vmatprep.subr.mxu0 0.0
        %3496 = vmatpush1.xpose.msra.mxu0 %v3472
        %3497 = vmatprep.subr.mxu0 0.0
        %3498 = vmatpush1.xpose.msra.mxu0 %v3475
        %3499 = vmatprep.subr.mxu0 0.0
        %3500 = vmatpush1.xpose.msra.mxu0 %v3478
        %3501 = vmatprep.subr.mxu0 0.0
        %3502 = vmatpush1.xpose.msra.mxu0 %v3481
        %3503 = vmatprep.subr.mxu0 0.0
        %3504 = vmatpush1.xpose.msra.mxu0 %v3484
        %3505 = vmatprep.subr.mxu0 0.0
        %3506 = vmatpush1.xpose.msra.mxu0 %v3487
        %3507 = vmatprep.subr.mxu0 0.0
        %3508 = vmatpush1.xpose.msra.mxu0 %v3490
        %3509 = vmatprep.subr.mxu0 0.0
        %3510 = vmatpush1.xpose.msra.mxu0 %v3493
        %3511 = vmatprep.subr.mxu0 0.0
        %3512 = vmatpush1.xpose.msra.mxu0 0.0
        %3513 = vmatprep.subr.mxu0 0.0
        %3514 = vmatpush1.xpose.msra.mxu0 0.0
        %3515 = vmatprep.subr.mxu0 0.0
        %3516 = vmatpush1.xpose.msra.mxu0 0.0
        %3517 = vmatprep.subr.mxu0 0.0
        %3518 = vmatpush1.xpose.msra.mxu0 0.0
        %3519 = vmatprep.subr.mxu0 0.0
        %3520 = vmatpush1.xpose.msra.mxu0 0.0
        %3521 = vmatprep.subr.mxu0 0.0
        %3522 = vmatpush1.xpose.msra.mxu0 0.0
        %3523 = vmatprep.subr.mxu0 0.0
        %3524 = vmatpush1.xpose.msra.mxu0 0.0
        %3525 = vmatprep.subr.mxu0 0.0
        %3526 = vmatpush1.xpose.msra.mxu0 0.0
        %3527 = vmatprep.subr.mxu0 0.0
        %3528 = vmatpush1.xpose.msra.mxu0 0.0
        %3529 = vmatprep.subr.mxu0 0.0
        %3530 = vmatpush1.xpose.msra.mxu0 0.0
        %3531 = vmatprep.subr.mxu0 0.0
        %3532 = vmatpush1.xpose.msra.mxu0 0.0
        %3533 = vmatprep.subr.mxu0 0.0
        %3534 = vmatpush1.xpose.msra.mxu0 0.0
        %3535 = vmatprep.subr.mxu0 0.0
        %3536 = vmatpush1.xpose.msra.mxu0 0.0
        %3537 = vmatprep.subr.mxu0 0.0
        %3538 = vmatpush1.xpose.msra.mxu0 0.0
        %3539 = vmatprep.subr.mxu0 0.0
        %3540 = vmatpush1.xpose.msra.mxu0 0.0
        %3541 = vmatprep.subr.mxu0 0.0
        %3542 = vmatpush1.xpose.msra.mxu0 0.0
        %3543 = vmatprep.subr.mxu0 0.0
        %3544 = vmatpush1.xpose.msra.mxu0 0.0
        %3545 = vmatprep.subr.mxu0 0.0
        %3546 = vmatpush1.xpose.msra.mxu0 0.0
        %3547 = vmatprep.subr.mxu0 0.0
        %3548 = vmatpush1.xpose.msra.mxu0 0.0
        %3549 = vmatprep.subr.mxu0 0.0
        %3550 = vmatpush1.xpose.msra.mxu0 0.0
        %3551 = vmatprep.subr.mxu0 0.0
        %3552 = vmatpush1.xpose.msra.mxu0 0.0
        %3553 = vmatprep.subr.mxu0 0.0
        %3554 = vmatpush1.xpose.msra.mxu0 0.0
        %3555 = vmatprep.subr.mxu0 0.0
        %3556 = vmatpush1.xpose.msra.mxu0 0.0
        %3557 = vmatprep.subr.mxu0 0.0
        %3558 = vmatpush1.xpose.msra.mxu0 0.0
        %3559 = vmatprep.mubr.f32.mxu0 0.0
        %3560 = vmatmul.mubr.f32.gmra.mrb[0].mxu0 %v3469
        %v3561 = vpop.f32.mrb[0].mxu0
        %v3562 = vadd.f32 0.0, %v3561
        %v3563 = vpop.f32.mrb[0].mxu0
        %3564 = vdwg.mxu0
        %3565 = vmatprep.subr.mxu0 0.0
        %3566 = vmatpush1.xpose.msra.mxu0 %v3215
        %3567 = vmatprep.subr.mxu0 0.0
        %3568 = vmatpush1.xpose.msra.mxu0 %v3216
        %3569 = vmatprep.subr.mxu0 0.0
        %3570 = vmatpush1.xpose.msra.mxu0 %v3217
        %3571 = vmatprep.subr.mxu0 0.0
        %3572 = vmatpush1.xpose.msra.mxu0 %v3218
        %3573 = vmatprep.subr.mxu0 0.0
        %3574 = vmatpush1.xpose.msra.mxu0 %v3219
        %3575 = vmatprep.subr.mxu0 0.0
        %3576 = vmatpush1.xpose.msra.mxu0 %v3220
        %3577 = vmatprep.subr.mxu0 0.0
        %3578 = vmatpush1.xpose.msra.mxu0 %v3221
        %3579 = vmatprep.subr.mxu0 0.0
        %3580 = vmatpush1.xpose.msra.mxu0 %v3222
        %3581 = vmatprep.subr.mxu0 0.0
        %3582 = vmatpush1.xpose.msra.mxu0 0.0
        %3583 = vmatprep.subr.mxu0 0.0
        %3584 = vmatpush1.xpose.msra.mxu0 0.0
        %3585 = vmatprep.subr.mxu0 0.0
        %3586 = vmatpush1.xpose.msra.mxu0 0.0
        %3587 = vmatprep.subr.mxu0 0.0
        %3588 = vmatpush1.xpose.msra.mxu0 0.0
        %3589 = vmatprep.subr.mxu0 0.0
        %3590 = vmatpush1.xpose.msra.mxu0 0.0
        %3591 = vmatprep.subr.mxu0 0.0
        %3592 = vmatpush1.xpose.msra.mxu0 0.0
        %3593 = vmatprep.subr.mxu0 0.0
        %3594 = vmatpush1.xpose.msra.mxu0 0.0
        %3595 = vmatprep.subr.mxu0 0.0
        %3596 = vmatpush1.xpose.msra.mxu0 0.0
        %3597 = vmatprep.subr.mxu0 0.0
        %3598 = vmatpush1.xpose.msra.mxu0 0.0
        %3599 = vmatprep.subr.mxu0 0.0
        %3600 = vmatpush1.xpose.msra.mxu0 0.0
        %3601 = vmatprep.subr.mxu0 0.0
        %3602 = vmatpush1.xpose.msra.mxu0 0.0
        %3603 = vmatprep.subr.mxu0 0.0
        %3604 = vmatpush1.xpose.msra.mxu0 0.0
        %3605 = vmatprep.subr.mxu0 0.0
        %3606 = vmatpush1.xpose.msra.mxu0 0.0
        %3607 = vmatprep.subr.mxu0 0.0
        %3608 = vmatpush1.xpose.msra.mxu0 0.0
        %3609 = vmatprep.subr.mxu0 0.0
        %3610 = vmatpush1.xpose.msra.mxu0 0.0
        %3611 = vmatprep.subr.mxu0 0.0
        %3612 = vmatpush1.xpose.msra.mxu0 0.0
        %3613 = vmatprep.subr.mxu0 0.0
        %3614 = vmatpush1.xpose.msra.mxu0 0.0
        %3615 = vmatprep.subr.mxu0 0.0
        %3616 = vmatpush1.xpose.msra.mxu0 0.0
        %3617 = vmatprep.subr.mxu0 0.0
        %3618 = vmatpush1.xpose.msra.mxu0 0.0
        %3619 = vmatprep.subr.mxu0 0.0
        %3620 = vmatpush1.xpose.msra.mxu0 0.0
        %3621 = vmatprep.subr.mxu0 0.0
        %3622 = vmatpush1.xpose.msra.mxu0 0.0
        %3623 = vmatprep.subr.mxu0 0.0
        %3624 = vmatpush1.xpose.msra.mxu0 0.0
        %3625 = vmatprep.subr.mxu0 0.0
        %3626 = vmatpush1.xpose.msra.mxu0 0.0
        %3627 = vmatprep.subr.mxu0 0.0
        %3628 = vmatpush1.xpose.msra.mxu0 0.0
        %3629 = vmatprep.mubr.f32.mxu0 0.0
        %3630 = vmatmul.mubr.f32.gmra.mrb[0].mxu0 %v427
        %v3631 = vpop.f32.mrb[0].mxu0
        %v3632 = vadd.f32 %v3562, %v3631
        %v3633 = vpop.f32.mrb[0].mxu0
        %3634 = vdwg.mxu0
        %3636 = vset.pattern.permute.xlu0 0
        %3637 = vperm.xlu0 %3636, %v429
        %v3638 = vpop.permute.xlu0 %3637
        %v3640 = vadd.f32 %v3632, %v3638
        %vm3641 = vcmask 516096
        %3642 = vst.msk [vmem:[%s324] sm:$0x1] %vm3641, %v3640
        %s3643 = sand.u32 %s201, 1
        %s3644 = scalar_lea.sflag [#allocation3], %s3643
        %s3645 = sand.u32 %s201, 1
        %s3646 = scalar_lea.vmem [#allocation2], %s3645
        // Predicated region
        $region49: #{tpu_custom_call.1} parent=47 // pred_check
          %p3647 = pneg %p211
        $region50: #{tpu_custom_call.1} parent=47 // pred_check_branch
          %3649 = sbr.rel (%p3647) target = $region52
        $region51: #{tpu_custom_call.1} parent=47 // pred_region
          %s3651 = ssub.s32 16, 16
          %3652 = vsyncadd %s3644, %s3651
          %s3653 = smul.addr %s21, 16
          %s3654 = scalar_lea.hbm %s7, %s3653
          %s3656 = sshll.u32 %s3646, 4
          %s3657 = int_to_ptr.vmem [resolvable:$true] %s3656
          %3659 = dma.vmem_to_hbm [thread:$0]  %s3657, 16, %s3654, %s3644
        $region52: #{tpu_custom_call.1} parent=47 // pred_fallthru
          _
      $region48: #{tpu_custom_call.1} parent=5 // pred_fallthru
        _
      %p3660 = scmp.le.s32.totalorder 2, %s16
      // Predicated region
      $region53: #{tpu_custom_call.1} parent=5 // pred_check
        %p3661 = pneg %p3660
      $region54: #{tpu_custom_call.1} parent=5 // pred_check_branch
        %3663 = sbr.rel (%p3661) target = $region56
      $region55: #{tpu_custom_call.1} parent=5 // pred_region
        %s3664 = ssub.s32 %s16, 2
        // Predicated region
        $region57: #{tpu_custom_call.1} parent=55 // pred_check
          %p3665 = pneg %p217
        $region58: #{tpu_custom_call.1} parent=55 // pred_check_branch
          %3667 = sbr.rel (%p3665) target = $region60
        $region59: #{tpu_custom_call.1} parent=55 // pred_region
          %s3668 = sand.u32 %s202, 1
          %s3669 = scalar_lea.sflag [#allocation3], %s3668
          %s3670 = sand.u32 %s202, 1
          %s3671 = scalar_lea.vmem [#allocation2], %s3670
          %3672 = dma.done %s3669, 16
        $region60: #{tpu_custom_call.1} parent=55 // pred_fallthru
          _
      $region56: #{tpu_custom_call.1} parent=5 // pred_fallthru
        _
    $region6: #{tpu_custom_call.1} parent=1 // loop_footer
      %s20 = sadd.s32 1, %s16
    $region7: #{tpu_custom_call.1} parent=1 // loop_footer_branch
      %15 = sbr.rel target = $region3
    $region8: #{tpu_custom_call.1} parent=1 // loop_exit
      _
    %3673 = vsyncpa [#allocation3], 1
    %s3674 = scalar_lea.sflag [#allocation3], 1
    %3675 = vsyncpa %s3674, 1

</llo_original>
